<compile_context>
chip_gen: v7x
topology: tpu7x:2x2x1
jax: 0.10.0
libtpu: 0.0.40
codegen_flags: <defaults>
</compile_context>

<pallas_src>
import functools

import jax
import jax.numpy as jnp
from jax.experimental import pallas as pl
from jax.experimental.pallas import tpu as pltpu


# ---------------------------------------------------------------------------
# Fused Conv2d + ReLU + (folded) BatchNorm kernel
# ---------------------------------------------------------------------------
def _conv_relu_bn_kernel(x_ref, w_ref, b_ref, scale_ref, shift_ref, o_ref,
                         *, kh, kw, cin, cout, wout, th):
    # x_ref : (1, Hp_eff, Wp, Cin)  bf16 -- whole padded sample resident in VMEM
    # w_ref : (KH, Cin, KW*Cout)    bf16 -- KW taps stacked along the matmul N dim
    # b_ref / scale_ref / shift_ref : (1, Cout) f32
    # o_ref : (1, TH, Wout, Cout)   bf16 -- TH output rows per grid step
    h0 = pl.program_id(1) * th
    bias = b_ref[...]
    scale = scale_ref[...]
    shift = shift_ref[...]

    def row_body(t, carry):
        acc = jnp.zeros((wout, cout), jnp.float32)
        for i in range(kh):                                    # KH taps, one dot each
            row = x_ref[0, pl.ds(h0 + t + i, 1), :, :][0]      # (Wp, Cin) bf16
            wi = w_ref[i]                                      # (Cin, KW*Cout) bf16
            if cin == 1:
                # degenerate K=1: broadcast multiply instead of a K=1 matmul
                tmp = row.astype(jnp.float32) * wi.astype(jnp.float32)
            else:
                tmp = jnp.dot(row, wi, preferred_element_type=jnp.float32)
            # combine the KW tap outputs (shifted along W, stacked along channels)
            for j in range(kw):
                acc = acc + tmp[j:j + wout, j * cout:(j + 1) * cout]
        y = jnp.maximum(acc + bias, 0.0) * scale + shift        # bias + ReLU + BN(eval)
        o_ref[0, pl.ds(t, 1), :, :] = y.astype(o_ref.dtype)[None, :, :]
        return carry

    jax.lax.fori_loop(0, th, row_body, 0)


def conv_relu_bn(x, w, b, scale, shift, pad_h, pad_w, th=8):
    """x: (N, H, W, Cin) bf16, w: (KH, KW, Cin, Cout) bf16 -> (N, Hout, Wout, Cout) bf16."""
    n, h, wd, cin = x.shape
    kh, kw, _, cout = w.shape
    hp = h + 2 * pad_h
    wp = wd + 2 * pad_w
    hout = hp - kh + 1
    wout = wp - kw + 1
    n_ht = pl.cdiv(hout, th)
    # Pad H a few extra rows so every TH-row tile's receptive field stays in bounds
    # (the extra output rows of the last tile are dropped by the partial output block).
    hp_eff = n_ht * th + kh - 1
    xp = jnp.pad(x, ((0, 0), (pad_h, hp_eff - h - pad_h), (pad_w, pad_w), (0, 0)))

    # Fold the KW taps into the matmul N dimension: wstack[i, ci, j*Cout + co] = w[i, j, ci, co]
    wstack = jnp.transpose(w, (0, 2, 1, 3)).reshape(kh, cin, kw * cout)

    kern = functools.partial(_conv_relu_bn_kernel, kh=kh, kw=kw, cin=cin,
                             cout=cout, wout=wout, th=th)
    return pl.pallas_call(
        kern,
        out_shape=jax.ShapeDtypeStruct((n, hout, wout, cout), jnp.bfloat16),
        grid=(n, n_ht),
        in_specs=[
            pl.BlockSpec((1, hp_eff, wp, cin), lambda i, j: (i, 0, 0, 0)),
            pl.BlockSpec((kh, cin, kw * cout), lambda i, j: (0, 0, 0)),
            pl.BlockSpec((1, cout), lambda i, j: (0, 0)),
            pl.BlockSpec((1, cout), lambda i, j: (0, 0)),
            pl.BlockSpec((1, cout), lambda i, j: (0, 0)),
        ],
        out_specs=pl.BlockSpec((1, th, wout, cout), lambda i, j: (i, j, 0, 0)),
        compiler_params=pltpu.CompilerParams(
            dimension_semantics=("parallel", "parallel"),
            vmem_limit_bytes=64 * 1024 * 1024),
    )(xp, wstack, b.reshape(1, cout), scale.reshape(1, cout), shift.reshape(1, cout))


# ---------------------------------------------------------------------------
# MaxPool2d(kernel_size=(1, k)) along W: elementwise max over k phase-sliced views
# ---------------------------------------------------------------------------
def _maxpool_kernel(*refs):
    xs, o_ref = refs[:-1], refs[-1]
    m = xs[0][...]
    for r in xs[1:]:
        m = jnp.maximum(m, r[...])
    o_ref[...] = m


def maxpool_w(x, k):
    n, h, wd, c = x.shape
    wq = wd // k
    phases = [x[:, :, r:wq * k:k, :] for r in range(k)]        # glue: k strided views
    spec = pl.BlockSpec((1, h, wq, c), lambda i: (i, 0, 0, 0))
    return pl.pallas_call(
        _maxpool_kernel,
        out_shape=jax.ShapeDtypeStruct((n, h, wq, c), x.dtype),
        grid=(n,),
        in_specs=[spec] * k,
        out_specs=spec,
        compiler_params=pltpu.CompilerParams(dimension_semantics=("parallel",)),
    )(*phases)


# ---------------------------------------------------------------------------
# AdaptiveAvgPool2d(output_size=(12, 1))  (H divisible by 12 by construction)
# ---------------------------------------------------------------------------
def _avgpool_kernel(x_ref, o_ref):
    # x_ref: (1, 12, bin_h*W, C) bf16 ; o_ref: (1, 12, C) f32
    o_ref[0] = jnp.mean(x_ref[0].astype(jnp.float32), axis=1)


def adaptive_avgpool_12x1(x):
    n, h, wd, c = x.shape
    assert h % 12 == 0
    bin_h = h // 12
    xg = x.reshape(n, 12, bin_h * wd, c)                        # glue reshape
    return pl.pallas_call(
        _avgpool_kernel,
        out_shape=jax.ShapeDtypeStruct((n, 12, c), jnp.float32),
        grid=(n,),
        in_specs=[pl.BlockSpec((1, 12, bin_h * wd, c), lambda i: (i, 0, 0, 0))],
        out_specs=pl.BlockSpec((1, 12, c), lambda i: (i, 0, 0)),
        compiler_params=pltpu.CompilerParams(dimension_semantics=("parallel",)),
    )(xg)


# ---------------------------------------------------------------------------
# Linear classifier
# ---------------------------------------------------------------------------
def _linear_kernel(x_ref, w_ref, b_ref, o_ref):
    o_ref[...] = jnp.dot(x_ref[...], w_ref[...],
                         preferred_element_type=jnp.float32) + b_ref[...]


def linear(x, w, b):
    n, _ = x.shape
    dout = w.shape[1]
    return pl.pallas_call(
        _linear_kernel,
        out_shape=jax.ShapeDtypeStruct((n, dout), jnp.float32),
    )(x, w, b.reshape(1, dout))


# ---------------------------------------------------------------------------
# Model definition (parameters + forward)
# ---------------------------------------------------------------------------
# (Cin, Cout, KH, KW, padH, padW) for the 12 conv layers, in forward order.
_CONV_CFG = [
    (1, 16, 12, 5, 12, 5), (16, 16, 12, 5, 12, 5),
    (16, 16, 12, 5, 12, 5), (16, 16, 12, 5, 12, 5),
    (16, 32, 12, 5, 12, 5), (32, 32, 12, 5, 12, 5),
    (32, 32, 12, 3, 12, 3), (32, 32, 12, 3, 12, 3),
    (32, 64, 12, 3, 12, 3), (64, 64, 12, 3, 12, 3),
    (64, 64, 12, 3, 12, 3), (64, 64, 12, 3, 12, 3),
]
_POOLS = [2, 2, 4, 2, 2, 2]
_NUM_CLASSES = 2
_BN_EPS = 1e-5


def init_params(key):
    conv_params = []
    for (cin, cout, kh, kw, ph, pw) in _CONV_CFG:
        key, k1, k2, k3, k4, k5, k6 = jax.random.split(key, 7)
        fan_in = cin * kh * kw
        w = jax.random.normal(k1, (kh, kw, cin, cout), jnp.float32) * jnp.sqrt(2.0 / fan_in)
        b = 0.01 * jax.random.normal(k2, (cout,), jnp.float32)
        gamma = 1.0 + 0.1 * jax.random.normal(k3, (cout,), jnp.float32)
        beta = 0.1 * jax.random.normal(k4, (cout,), jnp.float32)
        r_mean = 0.1 * jax.random.normal(k5, (cout,), jnp.float32)
        r_var = 1.0 + 0.1 * jnp.abs(jax.random.normal(k6, (cout,), jnp.float32))
        scale = gamma / jnp.sqrt(r_var + _BN_EPS)
        shift = beta - r_mean * scale
        conv_params.append((w, b, scale, shift, ph, pw))

    key, kw1, kb1 = jax.random.split(key, 3)
    d_in = 64 * 12
    wl = jax.random.normal(kw1, (d_in, _NUM_CLASSES), jnp.float32) / jnp.sqrt(d_in)
    bl = 0.01 * jax.random.normal(kb1, (_NUM_CLASSES,), jnp.float32)
    return conv_params, (wl, bl)


def mayo_v3_forward(x_nchw, params):
    """x_nchw: (N, 1, 12, W) float32 — same layout as the PyTorch module input."""
    conv_params, (wl, bl) = params
    x = jnp.transpose(x_nchw, (0, 2, 3, 1)).astype(jnp.bfloat16)   # NCHW -> NHWC (glue)
    for blk in range(6):
        for sub in range(2):
            w, b, scale, shift, ph, pw = conv_params[blk * 2 + sub]
            x = conv_relu_bn(x, w.astype(jnp.bfloat16), b, scale, shift, ph, pw)
        x = maxpool_w(x, _POOLS[blk])
    x = adaptive_avgpool_12x1(x)                                   # (N, 12, 64) f32
    # match PyTorch NCHW flatten order (C-major, then H)
    x = jnp.transpose(x, (0, 2, 1)).reshape(x.shape[0], -1)        # (N, 768)
    return linear(x, wl, bl)                                       # (N, num_classes)


# ---------------------------------------------------------------------------
# Pure-JAX reference (same math, XLA conv, identical bf16 quantization points)
# ---------------------------------------------------------------------------
def mayo_v3_reference(x_nchw, params):
    conv_params, (wl, bl) = params
    x = jnp.transpose(x_nchw, (0, 2, 3, 1)).astype(jnp.bfloat16)
    for blk in range(6):
        for sub in range(2):
            w, b, scale, shift, ph, pw = conv_params[blk * 2 + sub]
            wq = w.astype(jnp.bfloat16).astype(jnp.float32)
            y = jax.lax.conv_general_dilated(
                x.astype(jnp.float32), wq, window_strides=(1, 1),
                padding=((ph, ph), (pw, pw)),
                dimension_numbers=("NHWC", "HWIO", "NHWC"),
                precision=jax.lax.Precision.HIGHEST)
            y = jnp.maximum(y + b.reshape(1, 1, 1, -1), 0.0)
            y = y * scale.reshape(1, 1, 1, -1) + shift.reshape(1, 1, 1, -1)
            x = y.astype(jnp.bfloat16)
        k = _POOLS[blk]
        n_, h_, w_, c_ = x.shape
        wp_ = w_ // k
        x = x[:, :, :wp_ * k, :].reshape(n_, h_, wp_, k, c_).max(axis=3)
    n_, h_, w_, c_ = x.shape
    x = x.astype(jnp.float32).reshape(n_, 12, (h_ // 12) * w_, c_).mean(axis=2)
    x = jnp.transpose(x, (0, 2, 1)).reshape(n_, -1)
    return jnp.dot(x, wl, precision=jax.lax.Precision.HIGHEST) + bl


if __name__ == "__main__":
    key = jax.random.PRNGKey(0)
    key, kx = jax.random.split(key)

    # Small ECG-like input consistent with the module: NCHW = (batch=2, 1 channel,
    # 12 leads (H), 64 samples (W)) instead of the full 5000-sample trace.
    x = jax.random.normal(kx, (2, 1, 12, 64), jnp.float32)

    params = init_params(key)

    out = mayo_v3_forward(x, params)
    out = jax.block_until_ready(out)

    ref = jax.block_until_ready(mayo_v3_reference(x, params))
    max_diff = float(jnp.max(jnp.abs(out - ref)))
    tol = 2e-2 * max(1.0, float(jnp.max(jnp.abs(ref))))   # bf16 activations on both paths
    assert out.shape == (2, _NUM_CLASSES), out.shape
    assert max_diff < tol, f"mismatch vs reference: {max_diff} (tol {tol})"

    print("KERNEL_OK")
</pallas_src>

<mosaic_0001>
module attributes {stable_mosaic.version = 11 : i64} {
  func.func @_conv_relu_bn_kernel(%arg0: i32, %arg1: i32, %arg2: memref<1x43x74x1xbf16, #tpu.memory_space<vmem>>, %arg3: memref<12x1x80xbf16, #tpu.memory_space<vmem>>, %arg4: memref<1x16xf32, #tpu.memory_space<vmem>>, %arg5: memref<1x16xf32, #tpu.memory_space<vmem>>, %arg6: memref<1x16xf32, #tpu.memory_space<vmem>>, %arg7: memref<1x8x70x16xbf16, #tpu.memory_space<vmem>>) attributes {dimension_semantics = [#tpu.dimension_semantics<parallel>, #tpu.dimension_semantics<parallel>], iteration_bounds = array<i64: 2, 4>, scalar_prefetch = 0 : i64, scratch_operands = 0 : i64, tpu.core_type = #tpu.core_type<tc>, window_params = [{transform_indices = @transform_0, window_bounds = array<i64: 1, 43, 74, 1>}, {pipeline_mode = #tpu.pipeline_mode<synchronous>, transform_indices = @transform_1, window_bounds = array<i64: 12, 1, 80>}, {pipeline_mode = #tpu.pipeline_mode<synchronous>, transform_indices = @transform_2, window_bounds = array<i64: 1, 16>}, {pipeline_mode = #tpu.pipeline_mode<synchronous>, transform_indices = @transform_3, window_bounds = array<i64: 1, 16>}, {pipeline_mode = #tpu.pipeline_mode<synchronous>, transform_indices = @transform_4, window_bounds = array<i64: 1, 16>}, {transform_indices = @transform_5, window_bounds = array<i64: 1, 8, 70, 16>}]} {
    %c8_i32 = arith.constant 8 : i32
    %0 = arith.muli %arg1, %c8_i32 : i32
    %c0 = arith.constant 0 : index
    %c0_0 = arith.constant 0 : index
    %1 = vector.load %arg4[%c0, %c0_0] : memref<1x16xf32, #tpu.memory_space<vmem>>, vector<1x16xf32>
    %c0_1 = arith.constant 0 : index
    %c0_2 = arith.constant 0 : index
    %2 = vector.load %arg5[%c0_1, %c0_2] : memref<1x16xf32, #tpu.memory_space<vmem>>, vector<1x16xf32>
    %c0_3 = arith.constant 0 : index
    %c0_4 = arith.constant 0 : index
    %3 = vector.load %arg6[%c0_3, %c0_4] : memref<1x16xf32, #tpu.memory_space<vmem>>, vector<1x16xf32>
    %c0_i32 = arith.constant 0 : i32
    %c8_i32_5 = arith.constant 8 : i32
    %4 = arith.addi %c0_i32, %c8_i32_5 : i32
    %c1_i32 = arith.constant 1 : i32
    scf.for %arg8 = %c0_i32 to %4 step %c1_i32  : i32 {
      %cst = arith.constant 0.000000e+00 : f32
      %5 = vector.broadcast %cst : f32 to vector<70x16xf32>
      %6 = arith.addi %0, %arg8 : i32
      %c0_i32_7 = arith.constant 0 : i32
      %7 = arith.addi %6, %c0_i32_7 : i32
      %c0_8 = arith.constant 0 : index
      %8 = arith.index_cast %7 : i32 to index
      %c0_9 = arith.constant 0 : index
      %c0_10 = arith.constant 0 : index
      %9 = vector.load %arg2[%c0_8, %8, %c0_9, %c0_10] : memref<1x43x74x1xbf16, #tpu.memory_space<vmem>>, vector<1x1x74x1xbf16>
      %10 = vector.shape_cast %9 : vector<1x1x74x1xbf16> to vector<1x74x1xbf16>
      %11 = vector.shape_cast %10 : vector<1x74x1xbf16> to vector<74x1xbf16>
      %c0_11 = arith.constant 0 : index
      %c0_12 = arith.constant 0 : index
      %c0_13 = arith.constant 0 : index
      %12 = vector.load %arg3[%c0_11, %c0_12, %c0_13] : memref<12x1x80xbf16, #tpu.memory_space<vmem>>, vector<1x1x80xbf16>
      %13 = vector.shape_cast %12 : vector<1x1x80xbf16> to vector<1x80xbf16>
      %14 = arith.extf %11 : vector<74x1xbf16> to vector<74x1xf32>
      %15 = arith.extf %13 : vector<1x80xbf16> to vector<1x80xf32>
      %16 = vector.broadcast %14 : vector<74x1xf32> to vector<74x80xf32>
      %17 = vector.broadcast %15 : vector<1x80xf32> to vector<74x80xf32>
      %18 = arith.mulf %16, %17 : vector<74x80xf32>
      %19 = vector.extract_strided_slice %18 {offsets = [0, 0], sizes = [70, 16], strides = [1, 1]} : vector<74x80xf32> to vector<70x16xf32>
      %20 = arith.addf %5, %19 : vector<70x16xf32>
      %21 = vector.extract_strided_slice %18 {offsets = [1, 16], sizes = [70, 16], strides = [1, 1]} : vector<74x80xf32> to vector<70x16xf32>
      %22 = arith.addf %20, %21 : vector<70x16xf32>
      %23 = vector.extract_strided_slice %18 {offsets = [2, 32], sizes = [70, 16], strides = [1, 1]} : vector<74x80xf32> to vector<70x16xf32>
      %24 = arith.addf %22, %23 : vector<70x16xf32>
      %25 = vector.extract_strided_slice %18 {offsets = [3, 48], sizes = [70, 16], strides = [1, 1]} : vector<74x80xf32> to vector<70x16xf32>
      %26 = arith.addf %24, %25 : vector<70x16xf32>
      %27 = vector.extract_strided_slice %18 {offsets = [4, 64], sizes = [70, 16], strides = [1, 1]} : vector<74x80xf32> to vector<70x16xf32>
      %28 = arith.addf %26, %27 : vector<70x16xf32>
      %29 = arith.addi %0, %arg8 : i32
      %c1_i32_14 = arith.constant 1 : i32
      %30 = arith.addi %29, %c1_i32_14 : i32
      %c0_15 = arith.constant 0 : index
      %31 = arith.index_cast %30 : i32 to index
      %c0_16 = arith.constant 0 : index
      %c0_17 = arith.constant 0 : index
      %32 = vector.load %arg2[%c0_15, %31, %c0_16, %c0_17] : memref<1x43x74x1xbf16, #tpu.memory_space<vmem>>, vector<1x1x74x1xbf16>
      %33 = vector.shape_cast %32 : vector<1x1x74x1xbf16> to vector<1x74x1xbf16>
      %34 = vector.shape_cast %33 : vector<1x74x1xbf16> to vector<74x1xbf16>
      %c1 = arith.constant 1 : index
      %c0_18 = arith.constant 0 : index
      %c0_19 = arith.constant 0 : index
      %35 = vector.load %arg3[%c1, %c0_18, %c0_19] : memref<12x1x80xbf16, #tpu.memory_space<vmem>>, vector<1x1x80xbf16>
      %36 = vector.shape_cast %35 : vector<1x1x80xbf16> to vector<1x80xbf16>
      %37 = arith.extf %34 : vector<74x1xbf16> to vector<74x1xf32>
      %38 = arith.extf %36 : vector<1x80xbf16> to vector<1x80xf32>
      %39 = vector.broadcast %37 : vector<74x1xf32> to vector<74x80xf32>
      %40 = vector.broadcast %38 : vector<1x80xf32> to vector<74x80xf32>
      %41 = arith.mulf %39, %40 : vector<74x80xf32>
      %42 = vector.extract_strided_slice %41 {offsets = [0, 0], sizes = [70, 16], strides = [1, 1]} : vector<74x80xf32> to vector<70x16xf32>
      %43 = arith.addf %28, %42 : vector<70x16xf32>
      %44 = vector.extract_strided_slice %41 {offsets = [1, 16], sizes = [70, 16], strides = [1, 1]} : vector<74x80xf32> to vector<70x16xf32>
      %45 = arith.addf %43, %44 : vector<70x16xf32>
      %46 = vector.extract_strided_slice %41 {offsets = [2, 32], sizes = [70, 16], strides = [1, 1]} : vector<74x80xf32> to vector<70x16xf32>
      %47 = arith.addf %45, %46 : vector<70x16xf32>
      %48 = vector.extract_strided_slice %41 {offsets = [3, 48], sizes = [70, 16], strides = [1, 1]} : vector<74x80xf32> to vector<70x16xf32>
      %49 = arith.addf %47, %48 : vector<70x16xf32>
      %50 = vector.extract_strided_slice %41 {offsets = [4, 64], sizes = [70, 16], strides = [1, 1]} : vector<74x80xf32> to vector<70x16xf32>
      %51 = arith.addf %49, %50 : vector<70x16xf32>
      %52 = arith.addi %0, %arg8 : i32
      %c2_i32 = arith.constant 2 : i32
      %53 = arith.addi %52, %c2_i32 : i32
      %c0_20 = arith.constant 0 : index
      %54 = arith.index_cast %53 : i32 to index
      %c0_21 = arith.constant 0 : index
      %c0_22 = arith.constant 0 : index
      %55 = vector.load %arg2[%c0_20, %54, %c0_21, %c0_22] : memref<1x43x74x1xbf16, #tpu.memory_space<vmem>>, vector<1x1x74x1xbf16>
      %56 = vector.shape_cast %55 : vector<1x1x74x1xbf16> to vector<1x74x1xbf16>
      %57 = vector.shape_cast %56 : vector<1x74x1xbf16> to vector<74x1xbf16>
      %c2 = arith.constant 2 : index
      %c0_23 = arith.constant 0 : index
      %c0_24 = arith.constant 0 : index
      %58 = vector.load %arg3[%c2, %c0_23, %c0_24] : memref<12x1x80xbf16, #tpu.memory_space<vmem>>, vector<1x1x80xbf16>
      %59 = vector.shape_cast %58 : vector<1x1x80xbf16> to vector<1x80xbf16>
      %60 = arith.extf %57 : vector<74x1xbf16> to vector<74x1xf32>
      %61 = arith.extf %59 : vector<1x80xbf16> to vector<1x80xf32>
      %62 = vector.broadcast %60 : vector<74x1xf32> to vector<74x80xf32>
      %63 = vector.broadcast %61 : vector<1x80xf32> to vector<74x80xf32>
      %64 = arith.mulf %62, %63 : vector<74x80xf32>
      %65 = vector.extract_strided_slice %64 {offsets = [0, 0], sizes = [70, 16], strides = [1, 1]} : vector<74x80xf32> to vector<70x16xf32>
      %66 = arith.addf %51, %65 : vector<70x16xf32>
      %67 = vector.extract_strided_slice %64 {offsets = [1, 16], sizes = [70, 16], strides = [1, 1]} : vector<74x80xf32> to vector<70x16xf32>
      %68 = arith.addf %66, %67 : vector<70x16xf32>
      %69 = vector.extract_strided_slice %64 {offsets = [2, 32], sizes = [70, 16], strides = [1, 1]} : vector<74x80xf32> to vector<70x16xf32>
      %70 = arith.addf %68, %69 : vector<70x16xf32>
      %71 = vector.extract_strided_slice %64 {offsets = [3, 48], sizes = [70, 16], strides = [1, 1]} : vector<74x80xf32> to vector<70x16xf32>
      %72 = arith.addf %70, %71 : vector<70x16xf32>
      %73 = vector.extract_strided_slice %64 {offsets = [4, 64], sizes = [70, 16], strides = [1, 1]} : vector<74x80xf32> to vector<70x16xf32>
      %74 = arith.addf %72, %73 : vector<70x16xf32>
      %75 = arith.addi %0, %arg8 : i32
      %c3_i32 = arith.constant 3 : i32
      %76 = arith.addi %75, %c3_i32 : i32
      %c0_25 = arith.constant 0 : index
      %77 = arith.index_cast %76 : i32 to index
      %c0_26 = arith.constant 0 : index
      %c0_27 = arith.constant 0 : index
      %78 = vector.load %arg2[%c0_25, %77, %c0_26, %c0_27] : memref<1x43x74x1xbf16, #tpu.memory_space<vmem>>, vector<1x1x74x1xbf16>
      %79 = vector.shape_cast %78 : vector<1x1x74x1xbf16> to vector<1x74x1xbf16>
      %80 = vector.shape_cast %79 : vector<1x74x1xbf16> to vector<74x1xbf16>
      %c3 = arith.constant 3 : index
      %c0_28 = arith.constant 0 : index
      %c0_29 = arith.constant 0 : index
      %81 = vector.load %arg3[%c3, %c0_28, %c0_29] : memref<12x1x80xbf16, #tpu.memory_space<vmem>>, vector<1x1x80xbf16>
      %82 = vector.shape_cast %81 : vector<1x1x80xbf16> to vector<1x80xbf16>
      %83 = arith.extf %80 : vector<74x1xbf16> to vector<74x1xf32>
      %84 = arith.extf %82 : vector<1x80xbf16> to vector<1x80xf32>
      %85 = vector.broadcast %83 : vector<74x1xf32> to vector<74x80xf32>
      %86 = vector.broadcast %84 : vector<1x80xf32> to vector<74x80xf32>
      %87 = arith.mulf %85, %86 : vector<74x80xf32>
      %88 = vector.extract_strided_slice %87 {offsets = [0, 0], sizes = [70, 16], strides = [1, 1]} : vector<74x80xf32> to vector<70x16xf32>
      %89 = arith.addf %74, %88 : vector<70x16xf32>
      %90 = vector.extract_strided_slice %87 {offsets = [1, 16], sizes = [70, 16], strides = [1, 1]} : vector<74x80xf32> to vector<70x16xf32>
      %91 = arith.addf %89, %90 : vector<70x16xf32>
      %92 = vector.extract_strided_slice %87 {offsets = [2, 32], sizes = [70, 16], strides = [1, 1]} : vector<74x80xf32> to vector<70x16xf32>
      %93 = arith.addf %91, %92 : vector<70x16xf32>
      %94 = vector.extract_strided_slice %87 {offsets = [3, 48], sizes = [70, 16], strides = [1, 1]} : vector<74x80xf32> to vector<70x16xf32>
      %95 = arith.addf %93, %94 : vector<70x16xf32>
      %96 = vector.extract_strided_slice %87 {offsets = [4, 64], sizes = [70, 16], strides = [1, 1]} : vector<74x80xf32> to vector<70x16xf32>
      %97 = arith.addf %95, %96 : vector<70x16xf32>
      %98 = arith.addi %0, %arg8 : i32
      %c4_i32 = arith.constant 4 : i32
      %99 = arith.addi %98, %c4_i32 : i32
      %c0_30 = arith.constant 0 : index
      %100 = arith.index_cast %99 : i32 to index
      %c0_31 = arith.constant 0 : index
      %c0_32 = arith.constant 0 : index
      %101 = vector.load %arg2[%c0_30, %100, %c0_31, %c0_32] : memref<1x43x74x1xbf16, #tpu.memory_space<vmem>>, vector<1x1x74x1xbf16>
      %102 = vector.shape_cast %101 : vector<1x1x74x1xbf16> to vector<1x74x1xbf16>
      %103 = vector.shape_cast %102 : vector<1x74x1xbf16> to vector<74x1xbf16>
      %c4 = arith.constant 4 : index
      %c0_33 = arith.constant 0 : index
      %c0_34 = arith.constant 0 : index
      %104 = vector.load %arg3[%c4, %c0_33, %c0_34] : memref<12x1x80xbf16, #tpu.memory_space<vmem>>, vector<1x1x80xbf16>
      %105 = vector.shape_cast %104 : vector<1x1x80xbf16> to vector<1x80xbf16>
      %106 = arith.extf %103 : vector<74x1xbf16> to vector<74x1xf32>
      %107 = arith.extf %105 : vector<1x80xbf16> to vector<1x80xf32>
      %108 = vector.broadcast %106 : vector<74x1xf32> to vector<74x80xf32>
      %109 = vector.broadcast %107 : vector<1x80xf32> to vector<74x80xf32>
      %110 = arith.mulf %108, %109 : vector<74x80xf32>
      %111 = vector.extract_strided_slice %110 {offsets = [0, 0], sizes = [70, 16], strides = [1, 1]} : vector<74x80xf32> to vector<70x16xf32>
      %112 = arith.addf %97, %111 : vector<70x16xf32>
      %113 = vector.extract_strided_slice %110 {offsets = [1, 16], sizes = [70, 16], strides = [1, 1]} : vector<74x80xf32> to vector<70x16xf32>
      %114 = arith.addf %112, %113 : vector<70x16xf32>
      %115 = vector.extract_strided_slice %110 {offsets = [2, 32], sizes = [70, 16], strides = [1, 1]} : vector<74x80xf32> to vector<70x16xf32>
      %116 = arith.addf %114, %115 : vector<70x16xf32>
      %117 = vector.extract_strided_slice %110 {offsets = [3, 48], sizes = [70, 16], strides = [1, 1]} : vector<74x80xf32> to vector<70x16xf32>
      %118 = arith.addf %116, %117 : vector<70x16xf32>
      %119 = vector.extract_strided_slice %110 {offsets = [4, 64], sizes = [70, 16], strides = [1, 1]} : vector<74x80xf32> to vector<70x16xf32>
      %120 = arith.addf %118, %119 : vector<70x16xf32>
      %121 = arith.addi %0, %arg8 : i32
      %c5_i32 = arith.constant 5 : i32
      %122 = arith.addi %121, %c5_i32 : i32
      %c0_35 = arith.constant 0 : index
      %123 = arith.index_cast %122 : i32 to index
      %c0_36 = arith.constant 0 : index
      %c0_37 = arith.constant 0 : index
      %124 = vector.load %arg2[%c0_35, %123, %c0_36, %c0_37] : memref<1x43x74x1xbf16, #tpu.memory_space<vmem>>, vector<1x1x74x1xbf16>
      %125 = vector.shape_cast %124 : vector<1x1x74x1xbf16> to vector<1x74x1xbf16>
      %126 = vector.shape_cast %125 : vector<1x74x1xbf16> to vector<74x1xbf16>
      %c5 = arith.constant 5 : index
      %c0_38 = arith.constant 0 : index
      %c0_39 = arith.constant 0 : index
      %127 = vector.load %arg3[%c5, %c0_38, %c0_39] : memref<12x1x80xbf16, #tpu.memory_space<vmem>>, vector<1x1x80xbf16>
      %128 = vector.shape_cast %127 : vector<1x1x80xbf16> to vector<1x80xbf16>
      %129 = arith.extf %126 : vector<74x1xbf16> to vector<74x1xf32>
      %130 = arith.extf %128 : vector<1x80xbf16> to vector<1x80xf32>
      %131 = vector.broadcast %129 : vector<74x1xf32> to vector<74x80xf32>
      %132 = vector.broadcast %130 : vector<1x80xf32> to vector<74x80xf32>
      %133 = arith.mulf %131, %132 : vector<74x80xf32>
      %134 = vector.extract_strided_slice %133 {offsets = [0, 0], sizes = [70, 16], strides = [1, 1]} : vector<74x80xf32> to vector<70x16xf32>
      %135 = arith.addf %120, %134 : vector<70x16xf32>
      %136 = vector.extract_strided_slice %133 {offsets = [1, 16], sizes = [70, 16], strides = [1, 1]} : vector<74x80xf32> to vector<70x16xf32>
      %137 = arith.addf %135, %136 : vector<70x16xf32>
      %138 = vector.extract_strided_slice %133 {offsets = [2, 32], sizes = [70, 16], strides = [1, 1]} : vector<74x80xf32> to vector<70x16xf32>
      %139 = arith.addf %137, %138 : vector<70x16xf32>
      %140 = vector.extract_strided_slice %133 {offsets = [3, 48], sizes = [70, 16], strides = [1, 1]} : vector<74x80xf32> to vector<70x16xf32>
      %141 = arith.addf %139, %140 : vector<70x16xf32>
      %142 = vector.extract_strided_slice %133 {offsets = [4, 64], sizes = [70, 16], strides = [1, 1]} : vector<74x80xf32> to vector<70x16xf32>
      %143 = arith.addf %141, %142 : vector<70x16xf32>
      %144 = arith.addi %0, %arg8 : i32
      %c6_i32 = arith.constant 6 : i32
      %145 = arith.addi %144, %c6_i32 : i32
      %c0_40 = arith.constant 0 : index
      %146 = arith.index_cast %145 : i32 to index
      %c0_41 = arith.constant 0 : index
      %c0_42 = arith.constant 0 : index
      %147 = vector.load %arg2[%c0_40, %146, %c0_41, %c0_42] : memref<1x43x74x1xbf16, #tpu.memory_space<vmem>>, vector<1x1x74x1xbf16>
      %148 = vector.shape_cast %147 : vector<1x1x74x1xbf16> to vector<1x74x1xbf16>
      %149 = vector.shape_cast %148 : vector<1x74x1xbf16> to vector<74x1xbf16>
      %c6 = arith.constant 6 : index
      %c0_43 = arith.constant 0 : index
      %c0_44 = arith.constant 0 : index
      %150 = vector.load %arg3[%c6, %c0_43, %c0_44] : memref<12x1x80xbf16, #tpu.memory_space<vmem>>, vector<1x1x80xbf16>
      %151 = vector.shape_cast %150 : vector<1x1x80xbf16> to vector<1x80xbf16>
      %152 = arith.extf %149 : vector<74x1xbf16> to vector<74x1xf32>
      %153 = arith.extf %151 : vector<1x80xbf16> to vector<1x80xf32>
      %154 = vector.broadcast %152 : vector<74x1xf32> to vector<74x80xf32>
      %155 = vector.broadcast %153 : vector<1x80xf32> to vector<74x80xf32>
      %156 = arith.mulf %154, %155 : vector<74x80xf32>
      %157 = vector.extract_strided_slice %156 {offsets = [0, 0], sizes = [70, 16], strides = [1, 1]} : vector<74x80xf32> to vector<70x16xf32>
      %158 = arith.addf %143, %157 : vector<70x16xf32>
      %159 = vector.extract_strided_slice %156 {offsets = [1, 16], sizes = [70, 16], strides = [1, 1]} : vector<74x80xf32> to vector<70x16xf32>
      %160 = arith.addf %158, %159 : vector<70x16xf32>
      %161 = vector.extract_strided_slice %156 {offsets = [2, 32], sizes = [70, 16], strides = [1, 1]} : vector<74x80xf32> to vector<70x16xf32>
      %162 = arith.addf %160, %161 : vector<70x16xf32>
      %163 = vector.extract_strided_slice %156 {offsets = [3, 48], sizes = [70, 16], strides = [1, 1]} : vector<74x80xf32> to vector<70x16xf32>
      %164 = arith.addf %162, %163 : vector<70x16xf32>
      %165 = vector.extract_strided_slice %156 {offsets = [4, 64], sizes = [70, 16], strides = [1, 1]} : vector<74x80xf32> to vector<70x16xf32>
      %166 = arith.addf %164, %165 : vector<70x16xf32>
      %167 = arith.addi %0, %arg8 : i32
      %c7_i32 = arith.constant 7 : i32
      %168 = arith.addi %167, %c7_i32 : i32
      %c0_45 = arith.constant 0 : index
      %169 = arith.index_cast %168 : i32 to index
      %c0_46 = arith.constant 0 : index
      %c0_47 = arith.constant 0 : index
      %170 = vector.load %arg2[%c0_45, %169, %c0_46, %c0_47] : memref<1x43x74x1xbf16, #tpu.memory_space<vmem>>, vector<1x1x74x1xbf16>
      %171 = vector.shape_cast %170 : vector<1x1x74x1xbf16> to vector<1x74x1xbf16>
      %172 = vector.shape_cast %171 : vector<1x74x1xbf16> to vector<74x1xbf16>
      %c7 = arith.constant 7 : index
      %c0_48 = arith.constant 0 : index
      %c0_49 = arith.constant 0 : index
      %173 = vector.load %arg3[%c7, %c0_48, %c0_49] : memref<12x1x80xbf16, #tpu.memory_space<vmem>>, vector<1x1x80xbf16>
      %174 = vector.shape_cast %173 : vector<1x1x80xbf16> to vector<1x80xbf16>
      %175 = arith.extf %172 : vector<74x1xbf16> to vector<74x1xf32>
      %176 = arith.extf %174 : vector<1x80xbf16> to vector<1x80xf32>
      %177 = vector.broadcast %175 : vector<74x1xf32> to vector<74x80xf32>
      %178 = vector.broadcast %176 : vector<1x80xf32> to vector<74x80xf32>
      %179 = arith.mulf %177, %178 : vector<74x80xf32>
      %180 = vector.extract_strided_slice %179 {offsets = [0, 0], sizes = [70, 16], strides = [1, 1]} : vector<74x80xf32> to vector<70x16xf32>
      %181 = arith.addf %166, %180 : vector<70x16xf32>
      %182 = vector.extract_strided_slice %179 {offsets = [1, 16], sizes = [70, 16], strides = [1, 1]} : vector<74x80xf32> to vector<70x16xf32>
      %183 = arith.addf %181, %182 : vector<70x16xf32>
      %184 = vector.extract_strided_slice %179 {offsets = [2, 32], sizes = [70, 16], strides = [1, 1]} : vector<74x80xf32> to vector<70x16xf32>
      %185 = arith.addf %183, %184 : vector<70x16xf32>
      %186 = vector.extract_strided_slice %179 {offsets = [3, 48], sizes = [70, 16], strides = [1, 1]} : vector<74x80xf32> to vector<70x16xf32>
      %187 = arith.addf %185, %186 : vector<70x16xf32>
      %188 = vector.extract_strided_slice %179 {offsets = [4, 64], sizes = [70, 16], strides = [1, 1]} : vector<74x80xf32> to vector<70x16xf32>
      %189 = arith.addf %187, %188 : vector<70x16xf32>
      %190 = arith.addi %0, %arg8 : i32
      %c8_i32_50 = arith.constant 8 : i32
      %191 = arith.addi %190, %c8_i32_50 : i32
      %c0_51 = arith.constant 0 : index
      %192 = arith.index_cast %191 : i32 to index
      %c0_52 = arith.constant 0 : index
      %c0_53 = arith.constant 0 : index
      %193 = vector.load %arg2[%c0_51, %192, %c0_52, %c0_53] : memref<1x43x74x1xbf16, #tpu.memory_space<vmem>>, vector<1x1x74x1xbf16>
      %194 = vector.shape_cast %193 : vector<1x1x74x1xbf16> to vector<1x74x1xbf16>
      %195 = vector.shape_cast %194 : vector<1x74x1xbf16> to vector<74x1xbf16>
      %c8 = arith.constant 8 : index
      %c0_54 = arith.constant 0 : index
      %c0_55 = arith.constant 0 : index
      %196 = vector.load %arg3[%c8, %c0_54, %c0_55] : memref<12x1x80xbf16, #tpu.memory_space<vmem>>, vector<1x1x80xbf16>
      %197 = vector.shape_cast %196 : vector<1x1x80xbf16> to vector<1x80xbf16>
      %198 = arith.extf %195 : vector<74x1xbf16> to vector<74x1xf32>
      %199 = arith.extf %197 : vector<1x80xbf16> to vector<1x80xf32>
      %200 = vector.broadcast %198 : vector<74x1xf32> to vector<74x80xf32>
      %201 = vector.broadcast %199 : vector<1x80xf32> to vector<74x80xf32>
      %202 = arith.mulf %200, %201 : vector<74x80xf32>
      %203 = vector.extract_strided_slice %202 {offsets = [0, 0], sizes = [70, 16], strides = [1, 1]} : vector<74x80xf32> to vector<70x16xf32>
      %204 = arith.addf %189, %203 : vector<70x16xf32>
      %205 = vector.extract_strided_slice %202 {offsets = [1, 16], sizes = [70, 16], strides = [1, 1]} : vector<74x80xf32> to vector<70x16xf32>
      %206 = arith.addf %204, %205 : vector<70x16xf32>
      %207 = vector.extract_strided_slice %202 {offsets = [2, 32], sizes = [70, 16], strides = [1, 1]} : vector<74x80xf32> to vector<70x16xf32>
      %208 = arith.addf %206, %207 : vector<70x16xf32>
      %209 = vector.extract_strided_slice %202 {offsets = [3, 48], sizes = [70, 16], strides = [1, 1]} : vector<74x80xf32> to vector<70x16xf32>
      %210 = arith.addf %208, %209 : vector<70x16xf32>
      %211 = vector.extract_strided_slice %202 {offsets = [4, 64], sizes = [70, 16], strides = [1, 1]} : vector<74x80xf32> to vector<70x16xf32>
      %212 = arith.addf %210, %211 : vector<70x16xf32>
      %213 = arith.addi %0, %arg8 : i32
      %c9_i32 = arith.constant 9 : i32
      %214 = arith.addi %213, %c9_i32 : i32
      %c0_56 = arith.constant 0 : index
      %215 = arith.index_cast %214 : i32 to index
      %c0_57 = arith.constant 0 : index
      %c0_58 = arith.constant 0 : index
      %216 = vector.load %arg2[%c0_56, %215, %c0_57, %c0_58] : memref<1x43x74x1xbf16, #tpu.memory_space<vmem>>, vector<1x1x74x1xbf16>
      %217 = vector.shape_cast %216 : vector<1x1x74x1xbf16> to vector<1x74x1xbf16>
      %218 = vector.shape_cast %217 : vector<1x74x1xbf16> to vector<74x1xbf16>
      %c9 = arith.constant 9 : index
      %c0_59 = arith.constant 0 : index
      %c0_60 = arith.constant 0 : index
      %219 = vector.load %arg3[%c9, %c0_59, %c0_60] : memref<12x1x80xbf16, #tpu.memory_space<vmem>>, vector<1x1x80xbf16>
      %220 = vector.shape_cast %219 : vector<1x1x80xbf16> to vector<1x80xbf16>
      %221 = arith.extf %218 : vector<74x1xbf16> to vector<74x1xf32>
      %222 = arith.extf %220 : vector<1x80xbf16> to vector<1x80xf32>
      %223 = vector.broadcast %221 : vector<74x1xf32> to vector<74x80xf32>
      %224 = vector.broadcast %222 : vector<1x80xf32> to vector<74x80xf32>
      %225 = arith.mulf %223, %224 : vector<74x80xf32>
      %226 = vector.extract_strided_slice %225 {offsets = [0, 0], sizes = [70, 16], strides = [1, 1]} : vector<74x80xf32> to vector<70x16xf32>
      %227 = arith.addf %212, %226 : vector<70x16xf32>
      %228 = vector.extract_strided_slice %225 {offsets = [1, 16], sizes = [70, 16], strides = [1, 1]} : vector<74x80xf32> to vector<70x16xf32>
      %229 = arith.addf %227, %228 : vector<70x16xf32>
      %230 = vector.extract_strided_slice %225 {offsets = [2, 32], sizes = [70, 16], strides = [1, 1]} : vector<74x80xf32> to vector<70x16xf32>
      %231 = arith.addf %229, %230 : vector<70x16xf32>
      %232 = vector.extract_strided_slice %225 {offsets = [3, 48], sizes = [70, 16], strides = [1, 1]} : vector<74x80xf32> to vector<70x16xf32>
      %233 = arith.addf %231, %232 : vector<70x16xf32>
      %234 = vector.extract_strided_slice %225 {offsets = [4, 64], sizes = [70, 16], strides = [1, 1]} : vector<74x80xf32> to vector<70x16xf32>
      %235 = arith.addf %233, %234 : vector<70x16xf32>
      %236 = arith.addi %0, %arg8 : i32
      %c10_i32 = arith.constant 10 : i32
      %237 = arith.addi %236, %c10_i32 : i32
      %c0_61 = arith.constant 0 : index
      %238 = arith.index_cast %237 : i32 to index
      %c0_62 = arith.constant 0 : index
      %c0_63 = arith.constant 0 : index
      %239 = vector.load %arg2[%c0_61, %238, %c0_62, %c0_63] : memref<1x43x74x1xbf16, #tpu.memory_space<vmem>>, vector<1x1x74x1xbf16>
      %240 = vector.shape_cast %239 : vector<1x1x74x1xbf16> to vector<1x74x1xbf16>
      %241 = vector.shape_cast %240 : vector<1x74x1xbf16> to vector<74x1xbf16>
      %c10 = arith.constant 10 : index
      %c0_64 = arith.constant 0 : index
      %c0_65 = arith.constant 0 : index
      %242 = vector.load %arg3[%c10, %c0_64, %c0_65] : memref<12x1x80xbf16, #tpu.memory_space<vmem>>, vector<1x1x80xbf16>
      %243 = vector.shape_cast %242 : vector<1x1x80xbf16> to vector<1x80xbf16>
      %244 = arith.extf %241 : vector<74x1xbf16> to vector<74x1xf32>
      %245 = arith.extf %243 : vector<1x80xbf16> to vector<1x80xf32>
      %246 = vector.broadcast %244 : vector<74x1xf32> to vector<74x80xf32>
      %247 = vector.broadcast %245 : vector<1x80xf32> to vector<74x80xf32>
      %248 = arith.mulf %246, %247 : vector<74x80xf32>
      %249 = vector.extract_strided_slice %248 {offsets = [0, 0], sizes = [70, 16], strides = [1, 1]} : vector<74x80xf32> to vector<70x16xf32>
      %250 = arith.addf %235, %249 : vector<70x16xf32>
      %251 = vector.extract_strided_slice %248 {offsets = [1, 16], sizes = [70, 16], strides = [1, 1]} : vector<74x80xf32> to vector<70x16xf32>
      %252 = arith.addf %250, %251 : vector<70x16xf32>
      %253 = vector.extract_strided_slice %248 {offsets = [2, 32], sizes = [70, 16], strides = [1, 1]} : vector<74x80xf32> to vector<70x16xf32>
      %254 = arith.addf %252, %253 : vector<70x16xf32>
      %255 = vector.extract_strided_slice %248 {offsets = [3, 48], sizes = [70, 16], strides = [1, 1]} : vector<74x80xf32> to vector<70x16xf32>
      %256 = arith.addf %254, %255 : vector<70x16xf32>
      %257 = vector.extract_strided_slice %248 {offsets = [4, 64], sizes = [70, 16], strides = [1, 1]} : vector<74x80xf32> to vector<70x16xf32>
      %258 = arith.addf %256, %257 : vector<70x16xf32>
      %259 = arith.addi %0, %arg8 : i32
      %c11_i32 = arith.constant 11 : i32
      %260 = arith.addi %259, %c11_i32 : i32
      %c0_66 = arith.constant 0 : index
      %261 = arith.index_cast %260 : i32 to index
      %c0_67 = arith.constant 0 : index
      %c0_68 = arith.constant 0 : index
      %262 = vector.load %arg2[%c0_66, %261, %c0_67, %c0_68] : memref<1x43x74x1xbf16, #tpu.memory_space<vmem>>, vector<1x1x74x1xbf16>
      %263 = vector.shape_cast %262 : vector<1x1x74x1xbf16> to vector<1x74x1xbf16>
      %264 = vector.shape_cast %263 : vector<1x74x1xbf16> to vector<74x1xbf16>
      %c11 = arith.constant 11 : index
      %c0_69 = arith.constant 0 : index
      %c0_70 = arith.constant 0 : index
      %265 = vector.load %arg3[%c11, %c0_69, %c0_70] : memref<12x1x80xbf16, #tpu.memory_space<vmem>>, vector<1x1x80xbf16>
      %266 = vector.shape_cast %265 : vector<1x1x80xbf16> to vector<1x80xbf16>
      %267 = arith.extf %264 : vector<74x1xbf16> to vector<74x1xf32>
      %268 = arith.extf %266 : vector<1x80xbf16> to vector<1x80xf32>
      %269 = vector.broadcast %267 : vector<74x1xf32> to vector<74x80xf32>
      %270 = vector.broadcast %268 : vector<1x80xf32> to vector<74x80xf32>
      %271 = arith.mulf %269, %270 : vector<74x80xf32>
      %272 = vector.extract_strided_slice %271 {offsets = [0, 0], sizes = [70, 16], strides = [1, 1]} : vector<74x80xf32> to vector<70x16xf32>
      %273 = arith.addf %258, %272 : vector<70x16xf32>
      %274 = vector.extract_strided_slice %271 {offsets = [1, 16], sizes = [70, 16], strides = [1, 1]} : vector<74x80xf32> to vector<70x16xf32>
      %275 = arith.addf %273, %274 : vector<70x16xf32>
      %276 = vector.extract_strided_slice %271 {offsets = [2, 32], sizes = [70, 16], strides = [1, 1]} : vector<74x80xf32> to vector<70x16xf32>
      %277 = arith.addf %275, %276 : vector<70x16xf32>
      %278 = vector.extract_strided_slice %271 {offsets = [3, 48], sizes = [70, 16], strides = [1, 1]} : vector<74x80xf32> to vector<70x16xf32>
      %279 = arith.addf %277, %278 : vector<70x16xf32>
      %280 = vector.extract_strided_slice %271 {offsets = [4, 64], sizes = [70, 16], strides = [1, 1]} : vector<74x80xf32> to vector<70x16xf32>
      %281 = arith.addf %279, %280 : vector<70x16xf32>
      %282 = vector.broadcast %1 : vector<1x16xf32> to vector<70x16xf32>
      %283 = arith.addf %281, %282 : vector<70x16xf32>
      %cst_71 = arith.constant 0.000000e+00 : f32
      %284 = vector.broadcast %cst_71 : f32 to vector<70x16xf32>
      %285 = arith.maximumf %283, %284 : vector<70x16xf32>
      %286 = vector.broadcast %2 : vector<1x16xf32> to vector<70x16xf32>
      %287 = arith.mulf %285, %286 : vector<70x16xf32>
      %288 = vector.broadcast %3 : vector<1x16xf32> to vector<70x16xf32>
      %289 = arith.addf %287, %288 : vector<70x16xf32>
      %290 = arith.truncf %289 : vector<70x16xf32> to vector<70x16xbf16>
      %291 = vector.shape_cast %290 : vector<70x16xbf16> to vector<1x70x16xbf16>
      %c0_72 = arith.constant 0 : index
      %292 = arith.index_cast %arg8 : i32 to index
      %c0_73 = arith.constant 0 : index
      %c0_74 = arith.constant 0 : index
      %293 = vector.load %arg7[%c0_72, %292, %c0_73, %c0_74] : memref<1x8x70x16xbf16, #tpu.memory_space<vmem>>, vector<1x1x70x16xbf16>
      %294 = vector.shape_cast %293 : vector<1x1x70x16xbf16> to vector<1x70x16xbf16>
      %295 = vector.shape_cast %291 : vector<1x70x16xbf16> to vector<1x1x70x16xbf16>
      tpu.vector_store %arg7[%c0_72, %292, %c0_73, %c0_74], %295 {strides = array<i32>} : memref<1x8x70x16xbf16, #tpu.memory_space<vmem>>, vector<1x1x70x16xbf16>,
    }
    %c8_i32_6 = arith.constant 8 : i32
    return
  }
  func.func @transform_0(%arg0: i32, %arg1: i32) -> (i32, i32, i32, i32) {
    %c0_i32 = arith.constant 0 : i32
    %c0_i32_0 = arith.constant 0 : i32
    %c0_i32_1 = arith.constant 0 : i32
    %c0_i32_2 = arith.constant 0 : i32
    return %arg0, %c0_i32, %c0_i32_0, %c0_i32_1 : i32, i32, i32, i32
  }
  func.func @transform_1(%arg0: i32, %arg1: i32) -> (i32, i32, i32) {
    %c0_i32 = arith.constant 0 : i32
    %c0_i32_0 = arith.constant 0 : i32
    %c0_i32_1 = arith.constant 0 : i32
    %c0_i32_2 = arith.constant 0 : i32
    return %c0_i32, %c0_i32_0, %c0_i32_1 : i32, i32, i32
  }
  func.func @transform_2(%arg0: i32, %arg1: i32) -> (i32, i32) {
    %c0_i32 = arith.constant 0 : i32
    %c0_i32_0 = arith.constant 0 : i32
    %c0_i32_1 = arith.constant 0 : i32
    return %c0_i32, %c0_i32_0 : i32, i32
  }
  func.func @transform_3(%arg0: i32, %arg1: i32) -> (i32, i32) {
    %c0_i32 = arith.constant 0 : i32
    %c0_i32_0 = arith.constant 0 : i32
    %c0_i32_1 = arith.constant 0 : i32
    return %c0_i32, %c0_i32_0 : i32, i32
  }
  func.func @transform_4(%arg0: i32, %arg1: i32) -> (i32, i32) {
    %c0_i32 = arith.constant 0 : i32
    %c0_i32_0 = arith.constant 0 : i32
    %c0_i32_1 = arith.constant 0 : i32
    return %c0_i32, %c0_i32_0 : i32, i32
  }
  func.func @transform_5(%arg0: i32, %arg1: i32) -> (i32, i32, i32, i32) {
    %c0_i32 = arith.constant 0 : i32
    %c0_i32_0 = arith.constant 0 : i32
    %c0_i32_1 = arith.constant 0 : i32
    return %arg0, %arg1, %c0_i32, %c0_i32_0 : i32, i32, i32, i32
  }
}

</mosaic_0001>

<llo_original>
// kernel: tpu_custom_call.1
$region0: #{tpu_custom_call.1}
  #allocation0 [shape = 'u32[]', space=smem, size = 0x4, offset = 0x4, fixed_abs, tag = 'smem constant byte address 0x4 - core index']
  #allocation1 [shape = 'u32[144,128]{1,0:T(1,128)}', space=vmem, size = 0x12000, scoped, tag = 'internal scratch']
  %s0 = inlined_call_operand.hbm [shape: bf16[2,43,74,1], index: 0, kind: input, shape index: {}]
  %s1 = inlined_call_operand.hbm [shape: bf16[12,1,80], index: 1, kind: input, shape index: {}]
  %s2 = inlined_call_operand.hbm [shape: f32[1,16], index: 2, kind: input, shape index: {}]
  %s3 = inlined_call_operand.hbm [shape: f32[1,16], index: 3, kind: input, shape index: {}]
  %s4 = inlined_call_operand.hbm [shape: f32[1,16], index: 4, kind: input, shape index: {}]
  %s5 = inlined_call_operand.hbm [shape: bf16[2,25,70,16], index: 5, kind: output, shape index: {}]
  %s6 = sld [smem:[#allocation0]]
  $region80: #{tpu_custom_call.1} parent=0
    _
  %s8 = ssub.s32 1, %s6
  %s9 = scalar_select 0, %s8, %s6
  $region1: #{tpu_custom_call.1} parent=0
    #allocation2 [shape = 'u8[1761280]{0}', space=vmem, size = 0x1ae000, scoped, tag = 'input window, operand 0']
    #allocation3 [shape = 's32[2]{0}', space=sflag, size = 0x8, scoped, tag = 'scoped memory for tpu_custom_call.1']
    #allocation4 [shape = 's32[2]{0}', space=sflag, size = 0x8, scoped, tag = 'scoped memory for tpu_custom_call.1']
    #allocation5 [shape = 'u8[6144]{0}', space=vmem, size = 0x1800, scoped, tag = 'input window, operand 1, single buffered']
    #allocation6 [shape = 's32[1]{0}', space=sflag, size = 0x4, scoped, tag = 'scoped memory for tpu_custom_call.1']
    #allocation7 [shape = 'u8[512]{0}', space=vmem, size = 0x400, scoped, tag = 'input window, operand 2, single buffered']
    #allocation8 [shape = 'u8[512]{0}', space=vmem, size = 0x400, scoped, tag = 'input window, operand 3, single buffered']
    #allocation9 [shape = 's32[1]{0}', space=sflag, size = 0x4, scoped, tag = 'scoped memory for tpu_custom_call.1']
    #allocation10 [shape = 'u8[512]{0}', space=vmem, size = 0x400, scoped, tag = 'input window, operand 4, single buffered']
    #allocation11 [shape = 'u8[294912]{0}', space=vmem, size = 0x48000, scoped, tag = 'output window, operand 0']
    %10 = vsyncpa [#allocation3], 0
    %s11 = scalar_lea.sflag [#allocation3], 1
    %12 = vsyncpa %s11, 0
    %13 = vsyncpa [#allocation6], 0
    %14 = vsyncpa [#allocation9], 0
    %15 = vsyncpa [#allocation4], 0
    %s16 = scalar_lea.sflag [#allocation4], 1
    %17 = vsyncpa %s16, 0
    loop: start=0, step=1, limit=10
    $region2: #{tpu_custom_call.1} parent=1 // loop_pre_header
      _
    $region3: #{tpu_custom_call.1} parent=1 // loop_header
      %s19 = sphi 0, %s23
      %p20 = scmp.ge.s32.totalorder %s19, 10
      %s26 = sphi 0, %s38
      %s27 = sphi 0, %s34
      %s28 = sphi 0, %s26
      %s29 = sphi 0, %s27
      %s30 = sphi 0, %s28
      %s31 = sphi 0, %s29
      %s41 = sphi 0, %s43
      %s44 = sphi 0, %s41
      %s45 = sphi 0, %s44
      %s61 = sphi 0, %s45
      %s65 = sphi 0, %s65
      %s67 = sphi 0, %s65
      %s68 = sphi 0, %s67
      %s82 = sphi 0, %s68
      %s86 = sphi 0, %s86
      %s88 = sphi 0, %s86
      %s89 = sphi 0, %s88
      %s103 = sphi 0, %s89
      %s107 = sphi 0, %s107
      %s109 = sphi 0, %s107
      %s110 = sphi 0, %s109
      %s124 = sphi 0, %s110
      %s128 = sphi 0, %s128
      %s130 = sphi 0, %s128
      %s131 = sphi 0, %s130
      %s145 = sphi 0, %s131
      %s153 = sphi 0, %s155
      %s156 = sphi 0, %s153
      %s157 = sphi 0, %s156
      %s173 = sphi 0, %s157
    $region4: #{tpu_custom_call.1} parent=1 // loop_header_branch
      %22 = sbr.rel (%p20) target = $region8
    $region5: #{tpu_custom_call.1} parent=1 // loop_body
      %s24 = ssub.s32 %s19, 1
      %s25 = ssub.s32 %s19, 2
      %s32 = sadd.s32 1, %s27
      %p33 = scmp.ge.s32.totalorder %s32, 4
      %s34 = scalar_select %p33, 0, %s32
      %s35 = sadd.s32 1, %s26
      %s36 = scalar_select %p33, %s35, %s26
      %p37 = scmp.ge.s32.totalorder %s36, 2
      %s38 = scalar_select %p37, 0, %s36
      %s39 = ssub.s32 %s26, %s38
      %p40 = scmp.eq.s32.totalorder %s39, 0
      %s42 = sadd.s32 %s41, 1
      %s43 = scalar_select %p40, %s41, %s42
      %p46 = pneg %p40
      %p47 = scmp.eq.s32.totalorder %s19, 7
      %p48 = por %p46, %p47
      %p49 = scmp.ne.s32.totalorder %s41, %s44
      %p50 = scmp.eq.s32.totalorder %s19, 0
      %p51 = por %p49, %p50
      %p52 = scmp.ne.s32.totalorder %s41, %s44
      %p53 = scmp.eq.s32.totalorder %s24, 7
      %p54 = por %p52, %p53
      %p55 = scmp.ne.s32.totalorder %s44, %s45
      %p56 = scmp.eq.s32.totalorder %s24, 0
      %p57 = por %p55, %p56
      %p58 = scmp.ne.s32.totalorder %s44, %s45
      %p59 = scmp.eq.s32.totalorder %s25, 7
      %p60 = por %p58, %p59
      %p62 = scmp.ne.s32.totalorder %s45, %s61
      %p63 = scmp.eq.s32.totalorder %s25, 0
      %p64 = por %p62, %p63
      %s66 = sadd.s32 %s65, 1
      %p69 = scmp.eq.s32.totalorder %s19, 7
      %p70 = scmp.ne.s32.totalorder %s65, %s67
      %p71 = scmp.eq.s32.totalorder %s19, 0
      %p72 = por %p70, %p71
      %p73 = scmp.ne.s32.totalorder %s65, %s67
      %p74 = scmp.eq.s32.totalorder %s24, 7
      %p75 = por %p73, %p74
      %p76 = scmp.ne.s32.totalorder %s67, %s68
      %p77 = scmp.eq.s32.totalorder %s24, 0
      %p78 = por %p76, %p77
      %p79 = scmp.ne.s32.totalorder %s67, %s68
      %p80 = scmp.eq.s32.totalorder %s25, 7
      %p81 = por %p79, %p80
      %p83 = scmp.ne.s32.totalorder %s68, %s82
      %p84 = scmp.eq.s32.totalorder %s25, 0
      %p85 = por %p83, %p84
      %s87 = sadd.s32 %s86, 1
      %p90 = scmp.eq.s32.totalorder %s19, 7
      %p91 = scmp.ne.s32.totalorder %s86, %s88
      %p92 = scmp.eq.s32.totalorder %s19, 0
      %p93 = por %p91, %p92
      %p94 = scmp.ne.s32.totalorder %s86, %s88
      %p95 = scmp.eq.s32.totalorder %s24, 7
      %p96 = por %p94, %p95
      %p97 = scmp.ne.s32.totalorder %s88, %s89
      %p98 = scmp.eq.s32.totalorder %s24, 0
      %p99 = por %p97, %p98
      %p100 = scmp.ne.s32.totalorder %s88, %s89
      %p101 = scmp.eq.s32.totalorder %s25, 7
      %p102 = por %p100, %p101
      %p104 = scmp.ne.s32.totalorder %s89, %s103
      %p105 = scmp.eq.s32.totalorder %s25, 0
      %p106 = por %p104, %p105
      %s108 = sadd.s32 %s107, 1
      %p111 = scmp.eq.s32.totalorder %s19, 7
      %p112 = scmp.ne.s32.totalorder %s107, %s109
      %p113 = scmp.eq.s32.totalorder %s19, 0
      %p114 = por %p112, %p113
      %p115 = scmp.ne.s32.totalorder %s107, %s109
      %p116 = scmp.eq.s32.totalorder %s24, 7
      %p117 = por %p115, %p116
      %p118 = scmp.ne.s32.totalorder %s109, %s110
      %p119 = scmp.eq.s32.totalorder %s24, 0
      %p120 = por %p118, %p119
      %p121 = scmp.ne.s32.totalorder %s109, %s110
      %p122 = scmp.eq.s32.totalorder %s25, 7
      %p123 = por %p121, %p122
      %p125 = scmp.ne.s32.totalorder %s110, %s124
      %p126 = scmp.eq.s32.totalorder %s25, 0
      %p127 = por %p125, %p126
      %s129 = sadd.s32 %s128, 1
      %p132 = scmp.eq.s32.totalorder %s19, 7
      %p133 = scmp.ne.s32.totalorder %s128, %s130
      %p134 = scmp.eq.s32.totalorder %s19, 0
      %p135 = por %p133, %p134
      %p136 = scmp.ne.s32.totalorder %s128, %s130
      %p137 = scmp.eq.s32.totalorder %s24, 7
      %p138 = por %p136, %p137
      %p139 = scmp.ne.s32.totalorder %s130, %s131
      %p140 = scmp.eq.s32.totalorder %s24, 0
      %p141 = por %p139, %p140
      %p142 = scmp.ne.s32.totalorder %s130, %s131
      %p143 = scmp.eq.s32.totalorder %s25, 7
      %p144 = por %p142, %p143
      %p146 = scmp.ne.s32.totalorder %s131, %s145
      %p147 = scmp.eq.s32.totalorder %s25, 0
      %p148 = por %p146, %p147
      %s149 = ssub.s32 %s26, %s38
      %s150 = ssub.s32 %s27, %s34
      %s151 = sor.u32 %s149, %s150
      %p152 = scmp.eq.s32.totalorder %s151, 0
      %s154 = sadd.s32 %s153, 1
      %s155 = scalar_select %p152, %s153, %s154
      %p158 = pneg %p152
      %p159 = scmp.eq.s32.totalorder %s19, 7
      %p160 = por %p158, %p159
      %p161 = scmp.ne.s32.totalorder %s153, %s156
      %p162 = scmp.eq.s32.totalorder %s19, 0
      %p163 = por %p161, %p162
      %p164 = scmp.ne.s32.totalorder %s153, %s156
      %p165 = scmp.eq.s32.totalorder %s24, 7
      %p166 = por %p164, %p165
      %p167 = scmp.ne.s32.totalorder %s156, %s157
      %p168 = scmp.eq.s32.totalorder %s24, 0
      %p169 = por %p167, %p168
      %p170 = scmp.ne.s32.totalorder %s156, %s157
      %p171 = scmp.eq.s32.totalorder %s25, 7
      %p172 = por %p170, %p171
      %p174 = scmp.ne.s32.totalorder %s157, %s173
      %p175 = scmp.eq.s32.totalorder %s25, 0
      %p176 = por %p174, %p175
      %p177 = scmp.le.s32.totalorder 1, %s19
      %p178 = scmp.lt.s32.totalorder %s19, 9
      %p179 = pnand %p177, %p178
      %p180 = pneg %p179
      // Predicated region
      $region9: #{tpu_custom_call.1} parent=5 // pred_check
        _
      $region10: #{tpu_custom_call.1} parent=5 // pred_check_branch
        %182 = sbr.rel (%p179) target = $region12
      $region11: #{tpu_custom_call.1} parent=5 // pred_region
        %s183 = ssub.s32 %s19, 1
        // Predicated region
        $region13: #{tpu_custom_call.1} parent=11 // pred_check
          %p184 = pneg %p78
        $region14: #{tpu_custom_call.1} parent=11 // pred_check_branch
          %186 = sbr.rel (%p184) target = $region16
        $region15: #{tpu_custom_call.1} parent=11 // pred_region
          %s188 = ssub.s32 192, 192
          %189 = vsyncadd [#allocation6], %s188
          %s190 = sshll.u32 [#allocation5], 4
          %s191 = int_to_ptr.vmem [resolvable:$true] %s190
          %196 = dma.hbm_to_vmem [thread:$0]  %s1, 192, %s191, [#allocation6], 16, 16, 1
        $region16: #{tpu_custom_call.1} parent=11 // pred_fallthru
          _
        // Predicated region
        $region17: #{tpu_custom_call.1} parent=11 // pred_check
          %p197 = pneg %p99
        $region18: #{tpu_custom_call.1} parent=11 // pred_check_branch
          %199 = sbr.rel (%p197) target = $region20
        $region19: #{tpu_custom_call.1} parent=11 // pred_region
          %s201 = ssub.s32 16, 16
          %202 = vsyncadd [#allocation6], %s201
          %s204 = sshll.u32 [#allocation7], 4
          %s205 = int_to_ptr.vmem [resolvable:$true] %s204
          %207 = dma.hbm_to_vmem [thread:$0]  %s2, 16, %s205, [#allocation6]
        $region20: #{tpu_custom_call.1} parent=11 // pred_fallthru
          _
        // Predicated region
        $region21: #{tpu_custom_call.1} parent=11 // pred_check
          %p208 = pneg %p120
        $region22: #{tpu_custom_call.1} parent=11 // pred_check_branch
          %210 = sbr.rel (%p208) target = $region24
        $region23: #{tpu_custom_call.1} parent=11 // pred_region
          %s212 = ssub.s32 16, 16
          %213 = vsyncadd [#allocation9], %s212
          %s215 = sshll.u32 [#allocation8], 4
          %s216 = int_to_ptr.vmem [resolvable:$true] %s215
          %218 = dma.hbm_to_vmem [thread:$0]  %s3, 16, %s216, [#allocation9]
        $region24: #{tpu_custom_call.1} parent=11 // pred_fallthru
          _
        // Predicated region
        $region25: #{tpu_custom_call.1} parent=11 // pred_check
          %p219 = pneg %p141
        $region26: #{tpu_custom_call.1} parent=11 // pred_check_branch
          %221 = sbr.rel (%p219) target = $region28
        $region27: #{tpu_custom_call.1} parent=11 // pred_region
          %s223 = ssub.s32 16, 16
          %224 = vsyncadd [#allocation9], %s223
          %s226 = sshll.u32 [#allocation10], 4
          %s227 = int_to_ptr.vmem [resolvable:$true] %s226
          %229 = dma.hbm_to_vmem [thread:$0]  %s4, 16, %s227, [#allocation9]
        $region28: #{tpu_custom_call.1} parent=11 // pred_fallthru
          _
      $region12: #{tpu_custom_call.1} parent=5 // pred_fallthru
        _
      %p230 = scmp.lt.s32.totalorder %s19, 8
      // Predicated region
      $region29: #{tpu_custom_call.1} parent=5 // pred_check
        %p231 = pneg %p230
      $region30: #{tpu_custom_call.1} parent=5 // pred_check_branch
        %233 = sbr.rel (%p231) target = $region32
      $region31: #{tpu_custom_call.1} parent=5 // pred_region
        // Predicated region
        $region33: #{tpu_custom_call.1} parent=31 // pred_check
          %p234 = pneg %p51
        $region34: #{tpu_custom_call.1} parent=31 // pred_check_branch
          %236 = sbr.rel (%p234) target = $region36
        $region35: #{tpu_custom_call.1} parent=31 // pred_region
          %s237 = sand.u32 %s41, 1
          %s238 = scalar_lea.sflag [#allocation3], %s237
          %s239 = sand.u32 %s41, 1
          %s240 = smul.addr %s239, 1720
          %s241 = scalar_lea.vmem [#allocation2], %s240
          %s243 = ssub.s32 27520, 27520
          %244 = vsyncadd %s238, %s243
          %s245 = smul.addr %s26, 430
          %s246 = smul.addr %s245, 64
          %s247 = scalar_lea.hbm %s0, %s246
          %s248 = sshll.u32 %s241, 4
          %s249 = int_to_ptr.vmem [resolvable:$true] %s248
          %254 = dma.hbm_to_vmem [thread:$0]  %s247, 27520, %s249, %s238, 64, 64, 4
        $region36: #{tpu_custom_call.1} parent=31 // pred_fallthru
          _
      $region32: #{tpu_custom_call.1} parent=5 // pred_fallthru
        _
      %p255 = scmp.le.s32.totalorder 1, %s19
      %p256 = scmp.lt.s32.totalorder %s19, 9
      %p257 = pnand %p255, %p256
      %p258 = pneg %p257
      // Predicated region
      $region37: #{tpu_custom_call.1} parent=5 // pred_check
        _
      $region38: #{tpu_custom_call.1} parent=5 // pred_check_branch
        %260 = sbr.rel (%p257) target = $region40
      $region39: #{tpu_custom_call.1} parent=5 // pred_region
        %s261 = ssub.s32 %s19, 1
        %s262 = sand.u32 %s44, 1
        %s263 = scalar_lea.sflag [#allocation3], %s262
        %s264 = sand.u32 %s44, 1
        %s265 = smul.addr %s264, 1720
        %s266 = scalar_lea.vmem [#allocation2], %s265
        // Predicated region
        $region41: #{tpu_custom_call.1} parent=39 // pred_check
          %p267 = pneg %p57
        $region42: #{tpu_custom_call.1} parent=39 // pred_check_branch
          %269 = sbr.rel (%p267) target = $region44
        $region43: #{tpu_custom_call.1} parent=39 // pred_region
          %270 = dma.done %s263, 27520
        $region44: #{tpu_custom_call.1} parent=39 // pred_fallthru
          _
        // Predicated region
        $region45: #{tpu_custom_call.1} parent=39 // pred_check
          %p271 = pneg %p78
        $region46: #{tpu_custom_call.1} parent=39 // pred_check_branch
          %273 = sbr.rel (%p271) target = $region48
        $region47: #{tpu_custom_call.1} parent=39 // pred_region
          %274 = dma.done [#allocation6], 192
        $region48: #{tpu_custom_call.1} parent=39 // pred_fallthru
          _
        // Predicated region
        $region49: #{tpu_custom_call.1} parent=39 // pred_check
          %p275 = pneg %p99
        $region50: #{tpu_custom_call.1} parent=39 // pred_check_branch
          %277 = sbr.rel (%p275) target = $region52
        $region51: #{tpu_custom_call.1} parent=39 // pred_region
          %278 = dma.done [#allocation6], 16
        $region52: #{tpu_custom_call.1} parent=39 // pred_fallthru
          _
        // Predicated region
        $region53: #{tpu_custom_call.1} parent=39 // pred_check
          %p279 = pneg %p120
        $region54: #{tpu_custom_call.1} parent=39 // pred_check_branch
          %281 = sbr.rel (%p279) target = $region56
        $region55: #{tpu_custom_call.1} parent=39 // pred_region
          %282 = dma.done [#allocation9], 16
        $region56: #{tpu_custom_call.1} parent=39 // pred_fallthru
          _
        // Predicated region
        $region57: #{tpu_custom_call.1} parent=39 // pred_check
          %p283 = pneg %p141
        $region58: #{tpu_custom_call.1} parent=39 // pred_check_branch
          %285 = sbr.rel (%p283) target = $region60
        $region59: #{tpu_custom_call.1} parent=39 // pred_region
          %286 = dma.done [#allocation9], 16
        $region60: #{tpu_custom_call.1} parent=39 // pred_fallthru
          _
        %s287 = sand.u32 %s44, 1
        %s288 = scalar_lea.sflag [#allocation3], %s287
        %s289 = sand.u32 %s44, 1
        %s290 = smul.addr %s289, 1720
        %s291 = scalar_lea.vmem [#allocation2], %s290
        %p292 = pneg %p57
        %p293 = pneg %p54
        %p294 = pneg %p78
        %p295 = pneg %p75
        %p296 = pneg %p99
        %p297 = pneg %p96
        %p298 = pneg %p120
        %p299 = pneg %p117
        %p300 = pneg %p141
        %p301 = pneg %p138
        %p302 = pneg %p169
        %p303 = pneg %p166
        %s304 = sand.u32 %s156, 1
        %s305 = scalar_lea.sflag [#allocation4], %s304
        %s306 = sand.u32 %s156, 1
        %s307 = smul.addr %s306, 288
        %s308 = scalar_lea.vmem [#allocation11], %s307
        %s309 = smul.u32 8, %s29
        %s310 = ssub.s32 25, %s309
        %p311 = scmp.lt.s32.totalorder %s310, 8
        %s312 = scalar_select %p311, %s310, 8
        %s313 = smul.u32 64, %s312
        %s314 = smul.u32 %s313, 9
        %s315 = smul.u32 %s29, 8
        %v316 = vld [vmem:[#allocation7] sm:$0x1]
        %v317 = vld [vmem:[#allocation8] sm:$0x1]
        %v318 = vld [vmem:[#allocation10] sm:$0x1]
        loop: start=0, step=1, limit=8
        $region61: #{tpu_custom_call.1} parent=39 // loop_pre_header
          _
        $region62: #{tpu_custom_call.1} parent=39 // loop_header
          %s320 = sphi 0, %s324
          %p321 = scmp.ge.s32.totalorder %s320, 8
        $region63: #{tpu_custom_call.1} parent=39 // loop_header_branch
          %323 = sbr.rel (%p321) target = $region67
        $region64: #{tpu_custom_call.1} parent=39 // loop_body
          %s325 = sadd.s32 %s315, %s320
          %s326 = smul.u32 %s325, 10
          %s327 = smul.addr %s326, 4
          %s328 = scalar_lea.vmem %s266, %s327 [#allocation2]
          %v329 = vld [vmem:[%s328] sm:$0xf]
          %v330 = vld [vmem:[%s328 + $0x4] sm:$0xf]
          %v331 = vld [vmem:[%s328 + $0x8] sm:$0xf]
          %v332 = vld [vmem:[%s328 + $0xc] sm:$0xf]
          %v333 = vld [vmem:[%s328 + $0x10] sm:$0xf]
          %v334 = vld [vmem:[%s328 + $0x14] sm:$0xf]
          %v335 = vld [vmem:[%s328 + $0x18] sm:$0xf]
          %v336 = vld [vmem:[%s328 + $0x1c] sm:$0xf]
          %v337 = vld [vmem:[%s328 + $0x20] sm:$0xf]
          %v338 = vld [vmem:[%s328 + $0x24] sm:$0x1]
          %v339 = vld [vmem:[#allocation5] sm:$0x1]
          %v340 = vunpack.c.l.bf16 %v329
          %v341 = vunpack.c.l.bf16 %v330
          %v342 = vunpack.c.l.bf16 %v331
          %v343 = vunpack.c.l.bf16 %v332
          %v344 = vunpack.c.l.bf16 %v333
          %v345 = vunpack.c.l.bf16 %v334
          %v346 = vunpack.c.l.bf16 %v335
          %v347 = vunpack.c.l.bf16 %v336
          %v348 = vunpack.c.l.bf16 %v337
          %v349 = vunpack.c.l.bf16 %v338
          %v350 = vunpack.c.l.bf16 %v339
          %352 = vset.pattern.permute.xlu0 0
          %353 = vperm.xlu0 %352, %v340
          %v354 = vpop.permute.xlu0 %353
          %357 = vset.pattern.permute.xlu0 0
          %358 = vperm.xlu0 %357, %v341
          %v359 = vpop.permute.xlu0 %358
          %362 = vset.pattern.permute.xlu0 0
          %363 = vperm.xlu0 %362, %v342
          %v364 = vpop.permute.xlu0 %363
          %367 = vset.pattern.permute.xlu0 0
          %368 = vperm.xlu0 %367, %v343
          %v369 = vpop.permute.xlu0 %368
          %372 = vset.pattern.permute.xlu0 0
          %373 = vperm.xlu0 %372, %v344
          %v374 = vpop.permute.xlu0 %373
          %377 = vset.pattern.permute.xlu0 0
          %378 = vperm.xlu0 %377, %v345
          %v379 = vpop.permute.xlu0 %378
          %382 = vset.pattern.permute.xlu0 0
          %383 = vperm.xlu0 %382, %v346
          %v384 = vpop.permute.xlu0 %383
          %387 = vset.pattern.permute.xlu0 0
          %388 = vperm.xlu0 %387, %v347
          %v389 = vpop.permute.xlu0 %388
          %392 = vset.pattern.permute.xlu0 0
          %393 = vperm.xlu0 %392, %v348
          %v394 = vpop.permute.xlu0 %393
          %397 = vset.pattern.permute.xlu0 0
          %398 = vperm.xlu0 %397, %v349
          %v399 = vpop.permute.xlu0 %398
          %v401 = vlaneseq
          %v402 = vshrl.u32 %v401, 7
          %v403 = vsub.s32 0, %v402
          %v404 = vrot.slane %v350, %v403
          %v405 = vmul.f32 %v354, %v404
          %v406 = vmul.f32 %v359, %v404
          %v407 = vmul.f32 %v364, %v404
          %v408 = vmul.f32 %v369, %v404
          %v409 = vmul.f32 %v374, %v404
          %v410 = vmul.f32 %v379, %v404
          %v411 = vmul.f32 %v384, %v404
          %v412 = vmul.f32 %v389, %v404
          %v413 = vmul.f32 %v394, %v404
          %v414 = vmul.f32 %v399, %v404
          %v415 = vadd.f32 %v405, 0.0
          %v416 = vadd.f32 %v406, 0.0
          %v417 = vadd.f32 %v407, 0.0
          %v418 = vadd.f32 %v408, 0.0
          %v419 = vadd.f32 %v409, 0.0
          %v420 = vadd.f32 %v410, 0.0
          %v421 = vadd.f32 %v411, 0.0
          %v422 = vadd.f32 %v412, 0.0
          %v423 = vadd.f32 %v413, 0.0
          %vm433 = vcmask 1046528
          %v434 = vrot.slane %v405, 1
          %v435 = vrot.slane %v406, 1
          %v436 = vsel %vm433, %v434, %v435
          %v437 = vrot.slane %v407, 1
          %v438 = vsel %vm433, %v435, %v437
          %v439 = vrot.slane %v408, 1
          %v440 = vsel %vm433, %v437, %v439
          %v441 = vrot.slane %v409, 1
          %v442 = vsel %vm433, %v439, %v441
          %v443 = vrot.slane %v410, 1
          %v444 = vsel %vm433, %v441, %v443
          %v445 = vrot.slane %v411, 1
          %v446 = vsel %vm433, %v443, %v445
          %v447 = vrot.slane %v412, 1
          %v448 = vsel %vm433, %v445, %v447
          %v449 = vrot.slane %v413, 1
          %v450 = vsel %vm433, %v447, %v449
          %451 = vrot.lane.b32.xlu0 %v436, 112
          %v452 = vpop.permute.xlu0 %451
          %453 = vrot.lane.b32.xlu0 %v438, 112
          %v454 = vpop.permute.xlu0 %453
          %455 = vrot.lane.b32.xlu0 %v440, 112
          %v456 = vpop.permute.xlu0 %455
          %457 = vrot.lane.b32.xlu0 %v442, 112
          %v458 = vpop.permute.xlu0 %457
          %459 = vrot.lane.b32.xlu0 %v444, 112
          %v460 = vpop.permute.xlu0 %459
          %461 = vrot.lane.b32.xlu0 %v446, 112
          %v462 = vpop.permute.xlu0 %461
          %463 = vrot.lane.b32.xlu0 %v448, 112
          %v464 = vpop.permute.xlu0 %463
          %465 = vrot.lane.b32.xlu0 %v450, 112
          %v466 = vpop.permute.xlu0 %465
          %467 = vrot.lane.b32.xlu0 %v449, 112
          %v468 = vpop.permute.xlu0 %467
          %v478 = vadd.f32 %v415, %v452
          %v479 = vadd.f32 %v416, %v454
          %v480 = vadd.f32 %v417, %v456
          %v481 = vadd.f32 %v418, %v458
          %v482 = vadd.f32 %v419, %v460
          %v483 = vadd.f32 %v420, %v462
          %v484 = vadd.f32 %v421, %v464
          %v485 = vadd.f32 %v422, %v466
          %v486 = vadd.f32 %v423, %v468
          %vm487 = vcmask 1045504
          %v488 = vrot.slane %v405, 2
          %v489 = vrot.slane %v406, 2
          %v490 = vsel %vm487, %v488, %v489
          %v491 = vrot.slane %v407, 2
          %v492 = vsel %vm487, %v489, %v491
          %v493 = vrot.slane %v408, 2
          %v494 = vsel %vm487, %v491, %v493
          %v495 = vrot.slane %v409, 2
          %v496 = vsel %vm487, %v493, %v495
          %v497 = vrot.slane %v410, 2
          %v498 = vsel %vm487, %v495, %v497
          %v499 = vrot.slane %v411, 2
          %v500 = vsel %vm487, %v497, %v499
          %v501 = vrot.slane %v412, 2
          %v502 = vsel %vm487, %v499, %v501
          %v503 = vrot.slane %v413, 2
          %v504 = vsel %vm487, %v501, %v503
          %505 = vrot.lane.b32.xlu0 %v490, 96
          %v506 = vpop.permute.xlu0 %505
          %507 = vrot.lane.b32.xlu0 %v492, 96
          %v508 = vpop.permute.xlu0 %507
          %509 = vrot.lane.b32.xlu0 %v494, 96
          %v510 = vpop.permute.xlu0 %509
          %511 = vrot.lane.b32.xlu0 %v496, 96
          %v512 = vpop.permute.xlu0 %511
          %513 = vrot.lane.b32.xlu0 %v498, 96
          %v514 = vpop.permute.xlu0 %513
          %515 = vrot.lane.b32.xlu0 %v500, 96
          %v516 = vpop.permute.xlu0 %515
          %517 = vrot.lane.b32.xlu0 %v502, 96
          %v518 = vpop.permute.xlu0 %517
          %519 = vrot.lane.b32.xlu0 %v504, 96
          %v520 = vpop.permute.xlu0 %519
          %521 = vrot.lane.b32.xlu0 %v503, 96
          %v522 = vpop.permute.xlu0 %521
          %v532 = vadd.f32 %v478, %v506
          %v533 = vadd.f32 %v479, %v508
          %v534 = vadd.f32 %v480, %v510
          %v535 = vadd.f32 %v481, %v512
          %v536 = vadd.f32 %v482, %v514
          %v537 = vadd.f32 %v483, %v516
          %v538 = vadd.f32 %v484, %v518
          %v539 = vadd.f32 %v485, %v520
          %v540 = vadd.f32 %v486, %v522
          %vm542 = vcmask 1044480
          %v543 = vrot.slane %v405, 3
          %v544 = vrot.slane %v406, 3
          %v545 = vsel %vm542, %v543, %v544
          %v546 = vrot.slane %v407, 3
          %v547 = vsel %vm542, %v544, %v546
          %v548 = vrot.slane %v408, 3
          %v549 = vsel %vm542, %v546, %v548
          %v550 = vrot.slane %v409, 3
          %v551 = vsel %vm542, %v548, %v550
          %v552 = vrot.slane %v410, 3
          %v553 = vsel %vm542, %v550, %v552
          %v554 = vrot.slane %v411, 3
          %v555 = vsel %vm542, %v552, %v554
          %v556 = vrot.slane %v412, 3
          %v557 = vsel %vm542, %v554, %v556
          %v558 = vrot.slane %v413, 3
          %v559 = vsel %vm542, %v556, %v558
          %v560 = vrot.slane %v414, 3
          %v561 = vsel %vm542, %v558, %v560
          %562 = vrot.lane.b32.xlu0 %v545, 80
          %v563 = vpop.permute.xlu0 %562
          %564 = vrot.lane.b32.xlu0 %v547, 80
          %v565 = vpop.permute.xlu0 %564
          %566 = vrot.lane.b32.xlu0 %v549, 80
          %v567 = vpop.permute.xlu0 %566
          %568 = vrot.lane.b32.xlu0 %v551, 80
          %v569 = vpop.permute.xlu0 %568
          %570 = vrot.lane.b32.xlu0 %v553, 80
          %v571 = vpop.permute.xlu0 %570
          %572 = vrot.lane.b32.xlu0 %v555, 80
          %v573 = vpop.permute.xlu0 %572
          %574 = vrot.lane.b32.xlu0 %v557, 80
          %v575 = vpop.permute.xlu0 %574
          %576 = vrot.lane.b32.xlu0 %v559, 80
          %v577 = vpop.permute.xlu0 %576
          %578 = vrot.lane.b32.xlu0 %v561, 80
          %v579 = vpop.permute.xlu0 %578
          %v589 = vadd.f32 %v532, %v563
          %v590 = vadd.f32 %v533, %v565
          %v591 = vadd.f32 %v534, %v567
          %v592 = vadd.f32 %v535, %v569
          %v593 = vadd.f32 %v536, %v571
          %v594 = vadd.f32 %v537, %v573
          %v595 = vadd.f32 %v538, %v575
          %v596 = vadd.f32 %v539, %v577
          %v597 = vadd.f32 %v540, %v579
          %vm598 = vcmask 1043456
          %v599 = vrot.slane %v405, 4
          %v600 = vrot.slane %v406, 4
          %v601 = vsel %vm598, %v599, %v600
          %v602 = vrot.slane %v407, 4
          %v603 = vsel %vm598, %v600, %v602
          %v604 = vrot.slane %v408, 4
          %v605 = vsel %vm598, %v602, %v604
          %v606 = vrot.slane %v409, 4
          %v607 = vsel %vm598, %v604, %v606
          %v608 = vrot.slane %v410, 4
          %v609 = vsel %vm598, %v606, %v608
          %v610 = vrot.slane %v411, 4
          %v611 = vsel %vm598, %v608, %v610
          %v612 = vrot.slane %v412, 4
          %v613 = vsel %vm598, %v610, %v612
          %v614 = vrot.slane %v413, 4
          %v615 = vsel %vm598, %v612, %v614
          %v616 = vrot.slane %v414, 4
          %v617 = vsel %vm598, %v614, %v616
          %618 = vrot.lane.b32.xlu0 %v601, 64
          %v619 = vpop.permute.xlu0 %618
          %620 = vrot.lane.b32.xlu0 %v603, 64
          %v621 = vpop.permute.xlu0 %620
          %622 = vrot.lane.b32.xlu0 %v605, 64
          %v623 = vpop.permute.xlu0 %622
          %624 = vrot.lane.b32.xlu0 %v607, 64
          %v625 = vpop.permute.xlu0 %624
          %626 = vrot.lane.b32.xlu0 %v609, 64
          %v627 = vpop.permute.xlu0 %626
          %628 = vrot.lane.b32.xlu0 %v611, 64
          %v629 = vpop.permute.xlu0 %628
          %630 = vrot.lane.b32.xlu0 %v613, 64
          %v631 = vpop.permute.xlu0 %630
          %632 = vrot.lane.b32.xlu0 %v615, 64
          %v633 = vpop.permute.xlu0 %632
          %634 = vrot.lane.b32.xlu0 %v617, 64
          %v635 = vpop.permute.xlu0 %634
          %v645 = vadd.f32 %v589, %v619
          %v646 = vadd.f32 %v590, %v621
          %v647 = vadd.f32 %v591, %v623
          %v648 = vadd.f32 %v592, %v625
          %v649 = vadd.f32 %v593, %v627
          %v650 = vadd.f32 %v594, %v629
          %v651 = vadd.f32 %v595, %v631
          %v652 = vadd.f32 %v596, %v633
          %v653 = vadd.f32 %v597, %v635
          %s654 = sadd.s32 %s325, 1
          %s655 = smul.u32 %s654, 10
          %s656 = smul.addr %s655, 4
          %s657 = scalar_lea.vmem %s266, %s656 [#allocation2]
          %v658 = vld [vmem:[%s657] sm:$0xf]
          %v659 = vld [vmem:[%s657 + $0x4] sm:$0xf]
          %v660 = vld [vmem:[%s657 + $0x8] sm:$0xf]
          %v661 = vld [vmem:[%s657 + $0xc] sm:$0xf]
          %v662 = vld [vmem:[%s657 + $0x10] sm:$0xf]
          %v663 = vld [vmem:[%s657 + $0x14] sm:$0xf]
          %v664 = vld [vmem:[%s657 + $0x18] sm:$0xf]
          %v665 = vld [vmem:[%s657 + $0x1c] sm:$0xf]
          %v666 = vld [vmem:[%s657 + $0x20] sm:$0xf]
          %v667 = vld [vmem:[%s657 + $0x24] sm:$0x1]
          %s668 = scalar_lea.vmem [#allocation5], 1
          %v669 = vld [vmem:[%s668] sm:$0x1]
          %v670 = vunpack.c.l.bf16 %v658
          %v671 = vunpack.c.l.bf16 %v659
          %v672 = vunpack.c.l.bf16 %v660
          %v673 = vunpack.c.l.bf16 %v661
          %v674 = vunpack.c.l.bf16 %v662
          %v675 = vunpack.c.l.bf16 %v663
          %v676 = vunpack.c.l.bf16 %v664
          %v677 = vunpack.c.l.bf16 %v665
          %v678 = vunpack.c.l.bf16 %v666
          %v679 = vunpack.c.l.bf16 %v667
          %v680 = vunpack.c.l.bf16 %v669
          %682 = vset.pattern.permute.xlu0 0
          %683 = vperm.xlu0 %682, %v670
          %v684 = vpop.permute.xlu0 %683
          %687 = vset.pattern.permute.xlu0 0
          %688 = vperm.xlu0 %687, %v671
          %v689 = vpop.permute.xlu0 %688
          %692 = vset.pattern.permute.xlu0 0
          %693 = vperm.xlu0 %692, %v672
          %v694 = vpop.permute.xlu0 %693
          %697 = vset.pattern.permute.xlu0 0
          %698 = vperm.xlu0 %697, %v673
          %v699 = vpop.permute.xlu0 %698
          %702 = vset.pattern.permute.xlu0 0
          %703 = vperm.xlu0 %702, %v674
          %v704 = vpop.permute.xlu0 %703
          %707 = vset.pattern.permute.xlu0 0
          %708 = vperm.xlu0 %707, %v675
          %v709 = vpop.permute.xlu0 %708
          %712 = vset.pattern.permute.xlu0 0
          %713 = vperm.xlu0 %712, %v676
          %v714 = vpop.permute.xlu0 %713
          %717 = vset.pattern.permute.xlu0 0
          %718 = vperm.xlu0 %717, %v677
          %v719 = vpop.permute.xlu0 %718
          %722 = vset.pattern.permute.xlu0 0
          %723 = vperm.xlu0 %722, %v678
          %v724 = vpop.permute.xlu0 %723
          %727 = vset.pattern.permute.xlu0 0
          %728 = vperm.xlu0 %727, %v679
          %v729 = vpop.permute.xlu0 %728
          %v731 = vlaneseq
          %v732 = vshrl.u32 %v731, 7
          %v733 = vsub.s32 0, %v732
          %v734 = vrot.slane %v680, %v733
          %v735 = vmul.f32 %v684, %v734
          %v736 = vmul.f32 %v689, %v734
          %v737 = vmul.f32 %v694, %v734
          %v738 = vmul.f32 %v699, %v734
          %v739 = vmul.f32 %v704, %v734
          %v740 = vmul.f32 %v709, %v734
          %v741 = vmul.f32 %v714, %v734
          %v742 = vmul.f32 %v719, %v734
          %v743 = vmul.f32 %v724, %v734
          %v744 = vmul.f32 %v729, %v734
          %v745 = vadd.f32 %v645, %v735
          %v746 = vadd.f32 %v646, %v736
          %v747 = vadd.f32 %v647, %v737
          %v748 = vadd.f32 %v648, %v738
          %v749 = vadd.f32 %v649, %v739
          %v750 = vadd.f32 %v650, %v740
          %v751 = vadd.f32 %v651, %v741
          %v752 = vadd.f32 %v652, %v742
          %v753 = vadd.f32 %v653, %v743
          %v763 = vrot.slane %v735, 1
          %v764 = vrot.slane %v736, 1
          %v765 = vsel %vm433, %v763, %v764
          %v766 = vrot.slane %v737, 1
          %v767 = vsel %vm433, %v764, %v766
          %v768 = vrot.slane %v738, 1
          %v769 = vsel %vm433, %v766, %v768
          %v770 = vrot.slane %v739, 1
          %v771 = vsel %vm433, %v768, %v770
          %v772 = vrot.slane %v740, 1
          %v773 = vsel %vm433, %v770, %v772
          %v774 = vrot.slane %v741, 1
          %v775 = vsel %vm433, %v772, %v774
          %v776 = vrot.slane %v742, 1
          %v777 = vsel %vm433, %v774, %v776
          %v778 = vrot.slane %v743, 1
          %v779 = vsel %vm433, %v776, %v778
          %780 = vrot.lane.b32.xlu0 %v765, 112
          %v781 = vpop.permute.xlu0 %780
          %782 = vrot.lane.b32.xlu0 %v767, 112
          %v783 = vpop.permute.xlu0 %782
          %784 = vrot.lane.b32.xlu0 %v769, 112
          %v785 = vpop.permute.xlu0 %784
          %786 = vrot.lane.b32.xlu0 %v771, 112
          %v787 = vpop.permute.xlu0 %786
          %788 = vrot.lane.b32.xlu0 %v773, 112
          %v789 = vpop.permute.xlu0 %788
          %790 = vrot.lane.b32.xlu0 %v775, 112
          %v791 = vpop.permute.xlu0 %790
          %792 = vrot.lane.b32.xlu0 %v777, 112
          %v793 = vpop.permute.xlu0 %792
          %794 = vrot.lane.b32.xlu0 %v779, 112
          %v795 = vpop.permute.xlu0 %794
          %796 = vrot.lane.b32.xlu0 %v778, 112
          %v797 = vpop.permute.xlu0 %796
          %v807 = vadd.f32 %v745, %v781
          %v808 = vadd.f32 %v746, %v783
          %v809 = vadd.f32 %v747, %v785
          %v810 = vadd.f32 %v748, %v787
          %v811 = vadd.f32 %v749, %v789
          %v812 = vadd.f32 %v750, %v791
          %v813 = vadd.f32 %v751, %v793
          %v814 = vadd.f32 %v752, %v795
          %v815 = vadd.f32 %v753, %v797
          %v816 = vrot.slane %v735, 2
          %v817 = vrot.slane %v736, 2
          %v818 = vsel %vm487, %v816, %v817
          %v819 = vrot.slane %v737, 2
          %v820 = vsel %vm487, %v817, %v819
          %v821 = vrot.slane %v738, 2
          %v822 = vsel %vm487, %v819, %v821
          %v823 = vrot.slane %v739, 2
          %v824 = vsel %vm487, %v821, %v823
          %v825 = vrot.slane %v740, 2
          %v826 = vsel %vm487, %v823, %v825
          %v827 = vrot.slane %v741, 2
          %v828 = vsel %vm487, %v825, %v827
          %v829 = vrot.slane %v742, 2
          %v830 = vsel %vm487, %v827, %v829
          %v831 = vrot.slane %v743, 2
          %v832 = vsel %vm487, %v829, %v831
          %833 = vrot.lane.b32.xlu0 %v818, 96
          %v834 = vpop.permute.xlu0 %833
          %835 = vrot.lane.b32.xlu0 %v820, 96
          %v836 = vpop.permute.xlu0 %835
          %837 = vrot.lane.b32.xlu0 %v822, 96
          %v838 = vpop.permute.xlu0 %837
          %839 = vrot.lane.b32.xlu0 %v824, 96
          %v840 = vpop.permute.xlu0 %839
          %841 = vrot.lane.b32.xlu0 %v826, 96
          %v842 = vpop.permute.xlu0 %841
          %843 = vrot.lane.b32.xlu0 %v828, 96
          %v844 = vpop.permute.xlu0 %843
          %845 = vrot.lane.b32.xlu0 %v830, 96
          %v846 = vpop.permute.xlu0 %845
          %847 = vrot.lane.b32.xlu0 %v832, 96
          %v848 = vpop.permute.xlu0 %847
          %849 = vrot.lane.b32.xlu0 %v831, 96
          %v850 = vpop.permute.xlu0 %849
          %v860 = vadd.f32 %v807, %v834
          %v861 = vadd.f32 %v808, %v836
          %v862 = vadd.f32 %v809, %v838
          %v863 = vadd.f32 %v810, %v840
          %v864 = vadd.f32 %v811, %v842
          %v865 = vadd.f32 %v812, %v844
          %v866 = vadd.f32 %v813, %v846
          %v867 = vadd.f32 %v814, %v848
          %v868 = vadd.f32 %v815, %v850
          %v870 = vrot.slane %v735, 3
          %v871 = vrot.slane %v736, 3
          %v872 = vsel %vm542, %v870, %v871
          %v873 = vrot.slane %v737, 3
          %v874 = vsel %vm542, %v871, %v873
          %v875 = vrot.slane %v738, 3
          %v876 = vsel %vm542, %v873, %v875
          %v877 = vrot.slane %v739, 3
          %v878 = vsel %vm542, %v875, %v877
          %v879 = vrot.slane %v740, 3
          %v880 = vsel %vm542, %v877, %v879
          %v881 = vrot.slane %v741, 3
          %v882 = vsel %vm542, %v879, %v881
          %v883 = vrot.slane %v742, 3
          %v884 = vsel %vm542, %v881, %v883
          %v885 = vrot.slane %v743, 3
          %v886 = vsel %vm542, %v883, %v885
          %v887 = vrot.slane %v744, 3
          %v888 = vsel %vm542, %v885, %v887
          %889 = vrot.lane.b32.xlu0 %v872, 80
          %v890 = vpop.permute.xlu0 %889
          %891 = vrot.lane.b32.xlu0 %v874, 80
          %v892 = vpop.permute.xlu0 %891
          %893 = vrot.lane.b32.xlu0 %v876, 80
          %v894 = vpop.permute.xlu0 %893
          %895 = vrot.lane.b32.xlu0 %v878, 80
          %v896 = vpop.permute.xlu0 %895
          %897 = vrot.lane.b32.xlu0 %v880, 80
          %v898 = vpop.permute.xlu0 %897
          %899 = vrot.lane.b32.xlu0 %v882, 80
          %v900 = vpop.permute.xlu0 %899
          %901 = vrot.lane.b32.xlu0 %v884, 80
          %v902 = vpop.permute.xlu0 %901
          %903 = vrot.lane.b32.xlu0 %v886, 80
          %v904 = vpop.permute.xlu0 %903
          %905 = vrot.lane.b32.xlu0 %v888, 80
          %v906 = vpop.permute.xlu0 %905
          %v916 = vadd.f32 %v860, %v890
          %v917 = vadd.f32 %v861, %v892
          %v918 = vadd.f32 %v862, %v894
          %v919 = vadd.f32 %v863, %v896
          %v920 = vadd.f32 %v864, %v898
          %v921 = vadd.f32 %v865, %v900
          %v922 = vadd.f32 %v866, %v902
          %v923 = vadd.f32 %v867, %v904
          %v924 = vadd.f32 %v868, %v906
          %v925 = vrot.slane %v735, 4
          %v926 = vrot.slane %v736, 4
          %v927 = vsel %vm598, %v925, %v926
          %v928 = vrot.slane %v737, 4
          %v929 = vsel %vm598, %v926, %v928
          %v930 = vrot.slane %v738, 4
          %v931 = vsel %vm598, %v928, %v930
          %v932 = vrot.slane %v739, 4
          %v933 = vsel %vm598, %v930, %v932
          %v934 = vrot.slane %v740, 4
          %v935 = vsel %vm598, %v932, %v934
          %v936 = vrot.slane %v741, 4
          %v937 = vsel %vm598, %v934, %v936
          %v938 = vrot.slane %v742, 4
          %v939 = vsel %vm598, %v936, %v938
          %v940 = vrot.slane %v743, 4
          %v941 = vsel %vm598, %v938, %v940
          %v942 = vrot.slane %v744, 4
          %v943 = vsel %vm598, %v940, %v942
          %944 = vrot.lane.b32.xlu0 %v927, 64
          %v945 = vpop.permute.xlu0 %944
          %946 = vrot.lane.b32.xlu0 %v929, 64
          %v947 = vpop.permute.xlu0 %946
          %948 = vrot.lane.b32.xlu0 %v931, 64
          %v949 = vpop.permute.xlu0 %948
          %950 = vrot.lane.b32.xlu0 %v933, 64
          %v951 = vpop.permute.xlu0 %950
          %952 = vrot.lane.b32.xlu0 %v935, 64
          %v953 = vpop.permute.xlu0 %952
          %954 = vrot.lane.b32.xlu0 %v937, 64
          %v955 = vpop.permute.xlu0 %954
          %956 = vrot.lane.b32.xlu0 %v939, 64
          %v957 = vpop.permute.xlu0 %956
          %958 = vrot.lane.b32.xlu0 %v941, 64
          %v959 = vpop.permute.xlu0 %958
          %960 = vrot.lane.b32.xlu0 %v943, 64
          %v961 = vpop.permute.xlu0 %960
          %v971 = vadd.f32 %v916, %v945
          %v972 = vadd.f32 %v917, %v947
          %v973 = vadd.f32 %v918, %v949
          %v974 = vadd.f32 %v919, %v951
          %v975 = vadd.f32 %v920, %v953
          %v976 = vadd.f32 %v921, %v955
          %v977 = vadd.f32 %v922, %v957
          %v978 = vadd.f32 %v923, %v959
          %v979 = vadd.f32 %v924, %v961
          %s980 = sadd.s32 %s325, 2
          %s981 = smul.u32 %s980, 10
          %s982 = smul.addr %s981, 4
          %s983 = scalar_lea.vmem %s266, %s982 [#allocation2]
          %v984 = vld [vmem:[%s983] sm:$0xf]
          %v985 = vld [vmem:[%s983 + $0x4] sm:$0xf]
          %v986 = vld [vmem:[%s983 + $0x8] sm:$0xf]
          %v987 = vld [vmem:[%s983 + $0xc] sm:$0xf]
          %v988 = vld [vmem:[%s983 + $0x10] sm:$0xf]
          %v989 = vld [vmem:[%s983 + $0x14] sm:$0xf]
          %v990 = vld [vmem:[%s983 + $0x18] sm:$0xf]
          %v991 = vld [vmem:[%s983 + $0x1c] sm:$0xf]
          %v992 = vld [vmem:[%s983 + $0x20] sm:$0xf]
          %v993 = vld [vmem:[%s983 + $0x24] sm:$0x1]
          %s994 = scalar_lea.vmem [#allocation5], 2
          %v995 = vld [vmem:[%s994] sm:$0x1]
          %v996 = vunpack.c.l.bf16 %v984
          %v997 = vunpack.c.l.bf16 %v985
          %v998 = vunpack.c.l.bf16 %v986
          %v999 = vunpack.c.l.bf16 %v987
          %v1000 = vunpack.c.l.bf16 %v988
          %v1001 = vunpack.c.l.bf16 %v989
          %v1002 = vunpack.c.l.bf16 %v990
          %v1003 = vunpack.c.l.bf16 %v991
          %v1004 = vunpack.c.l.bf16 %v992
          %v1005 = vunpack.c.l.bf16 %v993
          %v1006 = vunpack.c.l.bf16 %v995
          %1008 = vset.pattern.permute.xlu0 0
          %1009 = vperm.xlu0 %1008, %v996
          %v1010 = vpop.permute.xlu0 %1009
          %1013 = vset.pattern.permute.xlu0 0
          %1014 = vperm.xlu0 %1013, %v997
          %v1015 = vpop.permute.xlu0 %1014
          %1018 = vset.pattern.permute.xlu0 0
          %1019 = vperm.xlu0 %1018, %v998
          %v1020 = vpop.permute.xlu0 %1019
          %1023 = vset.pattern.permute.xlu0 0
          %1024 = vperm.xlu0 %1023, %v999
          %v1025 = vpop.permute.xlu0 %1024
          %1028 = vset.pattern.permute.xlu0 0
          %1029 = vperm.xlu0 %1028, %v1000
          %v1030 = vpop.permute.xlu0 %1029
          %1033 = vset.pattern.permute.xlu0 0
          %1034 = vperm.xlu0 %1033, %v1001
          %v1035 = vpop.permute.xlu0 %1034
          %1038 = vset.pattern.permute.xlu0 0
          %1039 = vperm.xlu0 %1038, %v1002
          %v1040 = vpop.permute.xlu0 %1039
          %1043 = vset.pattern.permute.xlu0 0
          %1044 = vperm.xlu0 %1043, %v1003
          %v1045 = vpop.permute.xlu0 %1044
          %1048 = vset.pattern.permute.xlu0 0
          %1049 = vperm.xlu0 %1048, %v1004
          %v1050 = vpop.permute.xlu0 %1049
          %1053 = vset.pattern.permute.xlu0 0
          %1054 = vperm.xlu0 %1053, %v1005
          %v1055 = vpop.permute.xlu0 %1054
          %v1057 = vlaneseq
          %v1058 = vshrl.u32 %v1057, 7
          %v1059 = vsub.s32 0, %v1058
          %v1060 = vrot.slane %v1006, %v1059
          %v1061 = vmul.f32 %v1010, %v1060
          %v1062 = vmul.f32 %v1015, %v1060
          %v1063 = vmul.f32 %v1020, %v1060
          %v1064 = vmul.f32 %v1025, %v1060
          %v1065 = vmul.f32 %v1030, %v1060
          %v1066 = vmul.f32 %v1035, %v1060
          %v1067 = vmul.f32 %v1040, %v1060
          %v1068 = vmul.f32 %v1045, %v1060
          %v1069 = vmul.f32 %v1050, %v1060
          %v1070 = vmul.f32 %v1055, %v1060
          %v1071 = vadd.f32 %v971, %v1061
          %v1072 = vadd.f32 %v972, %v1062
          %v1073 = vadd.f32 %v973, %v1063
          %v1074 = vadd.f32 %v974, %v1064
          %v1075 = vadd.f32 %v975, %v1065
          %v1076 = vadd.f32 %v976, %v1066
          %v1077 = vadd.f32 %v977, %v1067
          %v1078 = vadd.f32 %v978, %v1068
          %v1079 = vadd.f32 %v979, %v1069
          %v1089 = vrot.slane %v1061, 1
          %v1090 = vrot.slane %v1062, 1
          %v1091 = vsel %vm433, %v1089, %v1090
          %v1092 = vrot.slane %v1063, 1
          %v1093 = vsel %vm433, %v1090, %v1092
          %v1094 = vrot.slane %v1064, 1
          %v1095 = vsel %vm433, %v1092, %v1094
          %v1096 = vrot.slane %v1065, 1
          %v1097 = vsel %vm433, %v1094, %v1096
          %v1098 = vrot.slane %v1066, 1
          %v1099 = vsel %vm433, %v1096, %v1098
          %v1100 = vrot.slane %v1067, 1
          %v1101 = vsel %vm433, %v1098, %v1100
          %v1102 = vrot.slane %v1068, 1
          %v1103 = vsel %vm433, %v1100, %v1102
          %v1104 = vrot.slane %v1069, 1
          %v1105 = vsel %vm433, %v1102, %v1104
          %1106 = vrot.lane.b32.xlu0 %v1091, 112
          %v1107 = vpop.permute.xlu0 %1106
          %1108 = vrot.lane.b32.xlu0 %v1093, 112
          %v1109 = vpop.permute.xlu0 %1108
          %1110 = vrot.lane.b32.xlu0 %v1095, 112
          %v1111 = vpop.permute.xlu0 %1110
          %1112 = vrot.lane.b32.xlu0 %v1097, 112
          %v1113 = vpop.permute.xlu0 %1112
          %1114 = vrot.lane.b32.xlu0 %v1099, 112
          %v1115 = vpop.permute.xlu0 %1114
          %1116 = vrot.lane.b32.xlu0 %v1101, 112
          %v1117 = vpop.permute.xlu0 %1116
          %1118 = vrot.lane.b32.xlu0 %v1103, 112
          %v1119 = vpop.permute.xlu0 %1118
          %1120 = vrot.lane.b32.xlu0 %v1105, 112
          %v1121 = vpop.permute.xlu0 %1120
          %1122 = vrot.lane.b32.xlu0 %v1104, 112
          %v1123 = vpop.permute.xlu0 %1122
          %v1133 = vadd.f32 %v1071, %v1107
          %v1134 = vadd.f32 %v1072, %v1109
          %v1135 = vadd.f32 %v1073, %v1111
          %v1136 = vadd.f32 %v1074, %v1113
          %v1137 = vadd.f32 %v1075, %v1115
          %v1138 = vadd.f32 %v1076, %v1117
          %v1139 = vadd.f32 %v1077, %v1119
          %v1140 = vadd.f32 %v1078, %v1121
          %v1141 = vadd.f32 %v1079, %v1123
          %v1142 = vrot.slane %v1061, 2
          %v1143 = vrot.slane %v1062, 2
          %v1144 = vsel %vm487, %v1142, %v1143
          %v1145 = vrot.slane %v1063, 2
          %v1146 = vsel %vm487, %v1143, %v1145
          %v1147 = vrot.slane %v1064, 2
          %v1148 = vsel %vm487, %v1145, %v1147
          %v1149 = vrot.slane %v1065, 2
          %v1150 = vsel %vm487, %v1147, %v1149
          %v1151 = vrot.slane %v1066, 2
          %v1152 = vsel %vm487, %v1149, %v1151
          %v1153 = vrot.slane %v1067, 2
          %v1154 = vsel %vm487, %v1151, %v1153
          %v1155 = vrot.slane %v1068, 2
          %v1156 = vsel %vm487, %v1153, %v1155
          %v1157 = vrot.slane %v1069, 2
          %v1158 = vsel %vm487, %v1155, %v1157
          %1159 = vrot.lane.b32.xlu0 %v1144, 96
          %v1160 = vpop.permute.xlu0 %1159
          %1161 = vrot.lane.b32.xlu0 %v1146, 96
          %v1162 = vpop.permute.xlu0 %1161
          %1163 = vrot.lane.b32.xlu0 %v1148, 96
          %v1164 = vpop.permute.xlu0 %1163
          %1165 = vrot.lane.b32.xlu0 %v1150, 96
          %v1166 = vpop.permute.xlu0 %1165
          %1167 = vrot.lane.b32.xlu0 %v1152, 96
          %v1168 = vpop.permute.xlu0 %1167
          %1169 = vrot.lane.b32.xlu0 %v1154, 96
          %v1170 = vpop.permute.xlu0 %1169
          %1171 = vrot.lane.b32.xlu0 %v1156, 96
          %v1172 = vpop.permute.xlu0 %1171
          %1173 = vrot.lane.b32.xlu0 %v1158, 96
          %v1174 = vpop.permute.xlu0 %1173
          %1175 = vrot.lane.b32.xlu0 %v1157, 96
          %v1176 = vpop.permute.xlu0 %1175
          %v1186 = vadd.f32 %v1133, %v1160
          %v1187 = vadd.f32 %v1134, %v1162
          %v1188 = vadd.f32 %v1135, %v1164
          %v1189 = vadd.f32 %v1136, %v1166
          %v1190 = vadd.f32 %v1137, %v1168
          %v1191 = vadd.f32 %v1138, %v1170
          %v1192 = vadd.f32 %v1139, %v1172
          %v1193 = vadd.f32 %v1140, %v1174
          %v1194 = vadd.f32 %v1141, %v1176
          %v1196 = vrot.slane %v1061, 3
          %v1197 = vrot.slane %v1062, 3
          %v1198 = vsel %vm542, %v1196, %v1197
          %v1199 = vrot.slane %v1063, 3
          %v1200 = vsel %vm542, %v1197, %v1199
          %v1201 = vrot.slane %v1064, 3
          %v1202 = vsel %vm542, %v1199, %v1201
          %v1203 = vrot.slane %v1065, 3
          %v1204 = vsel %vm542, %v1201, %v1203
          %v1205 = vrot.slane %v1066, 3
          %v1206 = vsel %vm542, %v1203, %v1205
          %v1207 = vrot.slane %v1067, 3
          %v1208 = vsel %vm542, %v1205, %v1207
          %v1209 = vrot.slane %v1068, 3
          %v1210 = vsel %vm542, %v1207, %v1209
          %v1211 = vrot.slane %v1069, 3
          %v1212 = vsel %vm542, %v1209, %v1211
          %v1213 = vrot.slane %v1070, 3
          %v1214 = vsel %vm542, %v1211, %v1213
          %1215 = vrot.lane.b32.xlu0 %v1198, 80
          %v1216 = vpop.permute.xlu0 %1215
          %1217 = vrot.lane.b32.xlu0 %v1200, 80
          %v1218 = vpop.permute.xlu0 %1217
          %1219 = vrot.lane.b32.xlu0 %v1202, 80
          %v1220 = vpop.permute.xlu0 %1219
          %1221 = vrot.lane.b32.xlu0 %v1204, 80
          %v1222 = vpop.permute.xlu0 %1221
          %1223 = vrot.lane.b32.xlu0 %v1206, 80
          %v1224 = vpop.permute.xlu0 %1223
          %1225 = vrot.lane.b32.xlu0 %v1208, 80
          %v1226 = vpop.permute.xlu0 %1225
          %1227 = vrot.lane.b32.xlu0 %v1210, 80
          %v1228 = vpop.permute.xlu0 %1227
          %1229 = vrot.lane.b32.xlu0 %v1212, 80
          %v1230 = vpop.permute.xlu0 %1229
          %1231 = vrot.lane.b32.xlu0 %v1214, 80
          %v1232 = vpop.permute.xlu0 %1231
          %v1242 = vadd.f32 %v1186, %v1216
          %v1243 = vadd.f32 %v1187, %v1218
          %v1244 = vadd.f32 %v1188, %v1220
          %v1245 = vadd.f32 %v1189, %v1222
          %v1246 = vadd.f32 %v1190, %v1224
          %v1247 = vadd.f32 %v1191, %v1226
          %v1248 = vadd.f32 %v1192, %v1228
          %v1249 = vadd.f32 %v1193, %v1230
          %v1250 = vadd.f32 %v1194, %v1232
          %v1251 = vrot.slane %v1061, 4
          %v1252 = vrot.slane %v1062, 4
          %v1253 = vsel %vm598, %v1251, %v1252
          %v1254 = vrot.slane %v1063, 4
          %v1255 = vsel %vm598, %v1252, %v1254
          %v1256 = vrot.slane %v1064, 4
          %v1257 = vsel %vm598, %v1254, %v1256
          %v1258 = vrot.slane %v1065, 4
          %v1259 = vsel %vm598, %v1256, %v1258
          %v1260 = vrot.slane %v1066, 4
          %v1261 = vsel %vm598, %v1258, %v1260
          %v1262 = vrot.slane %v1067, 4
          %v1263 = vsel %vm598, %v1260, %v1262
          %v1264 = vrot.slane %v1068, 4
          %v1265 = vsel %vm598, %v1262, %v1264
          %v1266 = vrot.slane %v1069, 4
          %v1267 = vsel %vm598, %v1264, %v1266
          %v1268 = vrot.slane %v1070, 4
          %v1269 = vsel %vm598, %v1266, %v1268
          %1270 = vrot.lane.b32.xlu0 %v1253, 64
          %v1271 = vpop.permute.xlu0 %1270
          %1272 = vrot.lane.b32.xlu0 %v1255, 64
          %v1273 = vpop.permute.xlu0 %1272
          %1274 = vrot.lane.b32.xlu0 %v1257, 64
          %v1275 = vpop.permute.xlu0 %1274
          %1276 = vrot.lane.b32.xlu0 %v1259, 64
          %v1277 = vpop.permute.xlu0 %1276
          %1278 = vrot.lane.b32.xlu0 %v1261, 64
          %v1279 = vpop.permute.xlu0 %1278
          %1280 = vrot.lane.b32.xlu0 %v1263, 64
          %v1281 = vpop.permute.xlu0 %1280
          %1282 = vrot.lane.b32.xlu0 %v1265, 64
          %v1283 = vpop.permute.xlu0 %1282
          %1284 = vrot.lane.b32.xlu0 %v1267, 64
          %v1285 = vpop.permute.xlu0 %1284
          %1286 = vrot.lane.b32.xlu0 %v1269, 64
          %v1287 = vpop.permute.xlu0 %1286
          %v1297 = vadd.f32 %v1242, %v1271
          %v1298 = vadd.f32 %v1243, %v1273
          %v1299 = vadd.f32 %v1244, %v1275
          %v1300 = vadd.f32 %v1245, %v1277
          %v1301 = vadd.f32 %v1246, %v1279
          %v1302 = vadd.f32 %v1247, %v1281
          %v1303 = vadd.f32 %v1248, %v1283
          %v1304 = vadd.f32 %v1249, %v1285
          %v1305 = vadd.f32 %v1250, %v1287
          %s1306 = sadd.s32 %s325, 3
          %s1307 = smul.u32 %s1306, 10
          %s1308 = smul.addr %s1307, 4
          %s1309 = scalar_lea.vmem %s266, %s1308 [#allocation2]
          %v1310 = vld [vmem:[%s1309] sm:$0xf]
          %v1311 = vld [vmem:[%s1309 + $0x4] sm:$0xf]
          %v1312 = vld [vmem:[%s1309 + $0x8] sm:$0xf]
          %v1313 = vld [vmem:[%s1309 + $0xc] sm:$0xf]
          %v1314 = vld [vmem:[%s1309 + $0x10] sm:$0xf]
          %v1315 = vld [vmem:[%s1309 + $0x14] sm:$0xf]
          %v1316 = vld [vmem:[%s1309 + $0x18] sm:$0xf]
          %v1317 = vld [vmem:[%s1309 + $0x1c] sm:$0xf]
          %v1318 = vld [vmem:[%s1309 + $0x20] sm:$0xf]
          %v1319 = vld [vmem:[%s1309 + $0x24] sm:$0x1]
          %s1320 = scalar_lea.vmem [#allocation5], 3
          %v1321 = vld [vmem:[%s1320] sm:$0x1]
          %v1322 = vunpack.c.l.bf16 %v1310
          %v1323 = vunpack.c.l.bf16 %v1311
          %v1324 = vunpack.c.l.bf16 %v1312
          %v1325 = vunpack.c.l.bf16 %v1313
          %v1326 = vunpack.c.l.bf16 %v1314
          %v1327 = vunpack.c.l.bf16 %v1315
          %v1328 = vunpack.c.l.bf16 %v1316
          %v1329 = vunpack.c.l.bf16 %v1317
          %v1330 = vunpack.c.l.bf16 %v1318
          %v1331 = vunpack.c.l.bf16 %v1319
          %v1332 = vunpack.c.l.bf16 %v1321
          %1334 = vset.pattern.permute.xlu0 0
          %1335 = vperm.xlu0 %1334, %v1322
          %v1336 = vpop.permute.xlu0 %1335
          %1339 = vset.pattern.permute.xlu0 0
          %1340 = vperm.xlu0 %1339, %v1323
          %v1341 = vpop.permute.xlu0 %1340
          %1344 = vset.pattern.permute.xlu0 0
          %1345 = vperm.xlu0 %1344, %v1324
          %v1346 = vpop.permute.xlu0 %1345
          %1349 = vset.pattern.permute.xlu0 0
          %1350 = vperm.xlu0 %1349, %v1325
          %v1351 = vpop.permute.xlu0 %1350
          %1354 = vset.pattern.permute.xlu0 0
          %1355 = vperm.xlu0 %1354, %v1326
          %v1356 = vpop.permute.xlu0 %1355
          %1359 = vset.pattern.permute.xlu0 0
          %1360 = vperm.xlu0 %1359, %v1327
          %v1361 = vpop.permute.xlu0 %1360
          %1364 = vset.pattern.permute.xlu0 0
          %1365 = vperm.xlu0 %1364, %v1328
          %v1366 = vpop.permute.xlu0 %1365
          %1369 = vset.pattern.permute.xlu0 0
          %1370 = vperm.xlu0 %1369, %v1329
          %v1371 = vpop.permute.xlu0 %1370
          %1374 = vset.pattern.permute.xlu0 0
          %1375 = vperm.xlu0 %1374, %v1330
          %v1376 = vpop.permute.xlu0 %1375
          %1379 = vset.pattern.permute.xlu0 0
          %1380 = vperm.xlu0 %1379, %v1331
          %v1381 = vpop.permute.xlu0 %1380
          %v1383 = vlaneseq
          %v1384 = vshrl.u32 %v1383, 7
          %v1385 = vsub.s32 0, %v1384
          %v1386 = vrot.slane %v1332, %v1385
          %v1387 = vmul.f32 %v1336, %v1386
          %v1388 = vmul.f32 %v1341, %v1386
          %v1389 = vmul.f32 %v1346, %v1386
          %v1390 = vmul.f32 %v1351, %v1386
          %v1391 = vmul.f32 %v1356, %v1386
          %v1392 = vmul.f32 %v1361, %v1386
          %v1393 = vmul.f32 %v1366, %v1386
          %v1394 = vmul.f32 %v1371, %v1386
          %v1395 = vmul.f32 %v1376, %v1386
          %v1396 = vmul.f32 %v1381, %v1386
          %v1397 = vadd.f32 %v1297, %v1387
          %v1398 = vadd.f32 %v1298, %v1388
          %v1399 = vadd.f32 %v1299, %v1389
          %v1400 = vadd.f32 %v1300, %v1390
          %v1401 = vadd.f32 %v1301, %v1391
          %v1402 = vadd.f32 %v1302, %v1392
          %v1403 = vadd.f32 %v1303, %v1393
          %v1404 = vadd.f32 %v1304, %v1394
          %v1405 = vadd.f32 %v1305, %v1395
          %v1415 = vrot.slane %v1387, 1
          %v1416 = vrot.slane %v1388, 1
          %v1417 = vsel %vm433, %v1415, %v1416
          %v1418 = vrot.slane %v1389, 1
          %v1419 = vsel %vm433, %v1416, %v1418
          %v1420 = vrot.slane %v1390, 1
          %v1421 = vsel %vm433, %v1418, %v1420
          %v1422 = vrot.slane %v1391, 1
          %v1423 = vsel %vm433, %v1420, %v1422
          %v1424 = vrot.slane %v1392, 1
          %v1425 = vsel %vm433, %v1422, %v1424
          %v1426 = vrot.slane %v1393, 1
          %v1427 = vsel %vm433, %v1424, %v1426
          %v1428 = vrot.slane %v1394, 1
          %v1429 = vsel %vm433, %v1426, %v1428
          %v1430 = vrot.slane %v1395, 1
          %v1431 = vsel %vm433, %v1428, %v1430
          %1432 = vrot.lane.b32.xlu0 %v1417, 112
          %v1433 = vpop.permute.xlu0 %1432
          %1434 = vrot.lane.b32.xlu0 %v1419, 112
          %v1435 = vpop.permute.xlu0 %1434
          %1436 = vrot.lane.b32.xlu0 %v1421, 112
          %v1437 = vpop.permute.xlu0 %1436
          %1438 = vrot.lane.b32.xlu0 %v1423, 112
          %v1439 = vpop.permute.xlu0 %1438
          %1440 = vrot.lane.b32.xlu0 %v1425, 112
          %v1441 = vpop.permute.xlu0 %1440
          %1442 = vrot.lane.b32.xlu0 %v1427, 112
          %v1443 = vpop.permute.xlu0 %1442
          %1444 = vrot.lane.b32.xlu0 %v1429, 112
          %v1445 = vpop.permute.xlu0 %1444
          %1446 = vrot.lane.b32.xlu0 %v1431, 112
          %v1447 = vpop.permute.xlu0 %1446
          %1448 = vrot.lane.b32.xlu0 %v1430, 112
          %v1449 = vpop.permute.xlu0 %1448
          %v1459 = vadd.f32 %v1397, %v1433
          %v1460 = vadd.f32 %v1398, %v1435
          %v1461 = vadd.f32 %v1399, %v1437
          %v1462 = vadd.f32 %v1400, %v1439
          %v1463 = vadd.f32 %v1401, %v1441
          %v1464 = vadd.f32 %v1402, %v1443
          %v1465 = vadd.f32 %v1403, %v1445
          %v1466 = vadd.f32 %v1404, %v1447
          %v1467 = vadd.f32 %v1405, %v1449
          %v1468 = vrot.slane %v1387, 2
          %v1469 = vrot.slane %v1388, 2
          %v1470 = vsel %vm487, %v1468, %v1469
          %v1471 = vrot.slane %v1389, 2
          %v1472 = vsel %vm487, %v1469, %v1471
          %v1473 = vrot.slane %v1390, 2
          %v1474 = vsel %vm487, %v1471, %v1473
          %v1475 = vrot.slane %v1391, 2
          %v1476 = vsel %vm487, %v1473, %v1475
          %v1477 = vrot.slane %v1392, 2
          %v1478 = vsel %vm487, %v1475, %v1477
          %v1479 = vrot.slane %v1393, 2
          %v1480 = vsel %vm487, %v1477, %v1479
          %v1481 = vrot.slane %v1394, 2
          %v1482 = vsel %vm487, %v1479, %v1481
          %v1483 = vrot.slane %v1395, 2
          %v1484 = vsel %vm487, %v1481, %v1483
          %1485 = vrot.lane.b32.xlu0 %v1470, 96
          %v1486 = vpop.permute.xlu0 %1485
          %1487 = vrot.lane.b32.xlu0 %v1472, 96
          %v1488 = vpop.permute.xlu0 %1487
          %1489 = vrot.lane.b32.xlu0 %v1474, 96
          %v1490 = vpop.permute.xlu0 %1489
          %1491 = vrot.lane.b32.xlu0 %v1476, 96
          %v1492 = vpop.permute.xlu0 %1491
          %1493 = vrot.lane.b32.xlu0 %v1478, 96
          %v1494 = vpop.permute.xlu0 %1493
          %1495 = vrot.lane.b32.xlu0 %v1480, 96
          %v1496 = vpop.permute.xlu0 %1495
          %1497 = vrot.lane.b32.xlu0 %v1482, 96
          %v1498 = vpop.permute.xlu0 %1497
          %1499 = vrot.lane.b32.xlu0 %v1484, 96
          %v1500 = vpop.permute.xlu0 %1499
          %1501 = vrot.lane.b32.xlu0 %v1483, 96
          %v1502 = vpop.permute.xlu0 %1501
          %v1512 = vadd.f32 %v1459, %v1486
          %v1513 = vadd.f32 %v1460, %v1488
          %v1514 = vadd.f32 %v1461, %v1490
          %v1515 = vadd.f32 %v1462, %v1492
          %v1516 = vadd.f32 %v1463, %v1494
          %v1517 = vadd.f32 %v1464, %v1496
          %v1518 = vadd.f32 %v1465, %v1498
          %v1519 = vadd.f32 %v1466, %v1500
          %v1520 = vadd.f32 %v1467, %v1502
          %v1522 = vrot.slane %v1387, 3
          %v1523 = vrot.slane %v1388, 3
          %v1524 = vsel %vm542, %v1522, %v1523
          %v1525 = vrot.slane %v1389, 3
          %v1526 = vsel %vm542, %v1523, %v1525
          %v1527 = vrot.slane %v1390, 3
          %v1528 = vsel %vm542, %v1525, %v1527
          %v1529 = vrot.slane %v1391, 3
          %v1530 = vsel %vm542, %v1527, %v1529
          %v1531 = vrot.slane %v1392, 3
          %v1532 = vsel %vm542, %v1529, %v1531
          %v1533 = vrot.slane %v1393, 3
          %v1534 = vsel %vm542, %v1531, %v1533
          %v1535 = vrot.slane %v1394, 3
          %v1536 = vsel %vm542, %v1533, %v1535
          %v1537 = vrot.slane %v1395, 3
          %v1538 = vsel %vm542, %v1535, %v1537
          %v1539 = vrot.slane %v1396, 3
          %v1540 = vsel %vm542, %v1537, %v1539
          %1541 = vrot.lane.b32.xlu0 %v1524, 80
          %v1542 = vpop.permute.xlu0 %1541
          %1543 = vrot.lane.b32.xlu0 %v1526, 80
          %v1544 = vpop.permute.xlu0 %1543
          %1545 = vrot.lane.b32.xlu0 %v1528, 80
          %v1546 = vpop.permute.xlu0 %1545
          %1547 = vrot.lane.b32.xlu0 %v1530, 80
          %v1548 = vpop.permute.xlu0 %1547
          %1549 = vrot.lane.b32.xlu0 %v1532, 80
          %v1550 = vpop.permute.xlu0 %1549
          %1551 = vrot.lane.b32.xlu0 %v1534, 80
          %v1552 = vpop.permute.xlu0 %1551
          %1553 = vrot.lane.b32.xlu0 %v1536, 80
          %v1554 = vpop.permute.xlu0 %1553
          %1555 = vrot.lane.b32.xlu0 %v1538, 80
          %v1556 = vpop.permute.xlu0 %1555
          %1557 = vrot.lane.b32.xlu0 %v1540, 80
          %v1558 = vpop.permute.xlu0 %1557
          %v1568 = vadd.f32 %v1512, %v1542
          %v1569 = vadd.f32 %v1513, %v1544
          %v1570 = vadd.f32 %v1514, %v1546
          %v1571 = vadd.f32 %v1515, %v1548
          %v1572 = vadd.f32 %v1516, %v1550
          %v1573 = vadd.f32 %v1517, %v1552
          %v1574 = vadd.f32 %v1518, %v1554
          %v1575 = vadd.f32 %v1519, %v1556
          %v1576 = vadd.f32 %v1520, %v1558
          %v1577 = vrot.slane %v1387, 4
          %v1578 = vrot.slane %v1388, 4
          %v1579 = vsel %vm598, %v1577, %v1578
          %v1580 = vrot.slane %v1389, 4
          %v1581 = vsel %vm598, %v1578, %v1580
          %v1582 = vrot.slane %v1390, 4
          %v1583 = vsel %vm598, %v1580, %v1582
          %v1584 = vrot.slane %v1391, 4
          %v1585 = vsel %vm598, %v1582, %v1584
          %v1586 = vrot.slane %v1392, 4
          %v1587 = vsel %vm598, %v1584, %v1586
          %v1588 = vrot.slane %v1393, 4
          %v1589 = vsel %vm598, %v1586, %v1588
          %v1590 = vrot.slane %v1394, 4
          %v1591 = vsel %vm598, %v1588, %v1590
          %v1592 = vrot.slane %v1395, 4
          %v1593 = vsel %vm598, %v1590, %v1592
          %v1594 = vrot.slane %v1396, 4
          %v1595 = vsel %vm598, %v1592, %v1594
          %1596 = vrot.lane.b32.xlu0 %v1579, 64
          %v1597 = vpop.permute.xlu0 %1596
          %1598 = vrot.lane.b32.xlu0 %v1581, 64
          %v1599 = vpop.permute.xlu0 %1598
          %1600 = vrot.lane.b32.xlu0 %v1583, 64
          %v1601 = vpop.permute.xlu0 %1600
          %1602 = vrot.lane.b32.xlu0 %v1585, 64
          %v1603 = vpop.permute.xlu0 %1602
          %1604 = vrot.lane.b32.xlu0 %v1587, 64
          %v1605 = vpop.permute.xlu0 %1604
          %1606 = vrot.lane.b32.xlu0 %v1589, 64
          %v1607 = vpop.permute.xlu0 %1606
          %1608 = vrot.lane.b32.xlu0 %v1591, 64
          %v1609 = vpop.permute.xlu0 %1608
          %1610 = vrot.lane.b32.xlu0 %v1593, 64
          %v1611 = vpop.permute.xlu0 %1610
          %1612 = vrot.lane.b32.xlu0 %v1595, 64
          %v1613 = vpop.permute.xlu0 %1612
          %v1623 = vadd.f32 %v1568, %v1597
          %v1624 = vadd.f32 %v1569, %v1599
          %v1625 = vadd.f32 %v1570, %v1601
          %v1626 = vadd.f32 %v1571, %v1603
          %v1627 = vadd.f32 %v1572, %v1605
          %v1628 = vadd.f32 %v1573, %v1607
          %v1629 = vadd.f32 %v1574, %v1609
          %v1630 = vadd.f32 %v1575, %v1611
          %v1631 = vadd.f32 %v1576, %v1613
          %s1632 = sadd.s32 %s325, 4
          %s1633 = smul.u32 %s1632, 10
          %s1634 = smul.addr %s1633, 4
          %s1635 = scalar_lea.vmem %s266, %s1634 [#allocation2]
          %v1636 = vld [vmem:[%s1635] sm:$0xf]
          %v1637 = vld [vmem:[%s1635 + $0x4] sm:$0xf]
          %v1638 = vld [vmem:[%s1635 + $0x8] sm:$0xf]
          %v1639 = vld [vmem:[%s1635 + $0xc] sm:$0xf]
          %v1640 = vld [vmem:[%s1635 + $0x10] sm:$0xf]
          %v1641 = vld [vmem:[%s1635 + $0x14] sm:$0xf]
          %v1642 = vld [vmem:[%s1635 + $0x18] sm:$0xf]
          %v1643 = vld [vmem:[%s1635 + $0x1c] sm:$0xf]
          %v1644 = vld [vmem:[%s1635 + $0x20] sm:$0xf]
          %v1645 = vld [vmem:[%s1635 + $0x24] sm:$0x1]
          %s1646 = scalar_lea.vmem [#allocation5], 4
          %v1647 = vld [vmem:[%s1646] sm:$0x1]
          %v1648 = vunpack.c.l.bf16 %v1636
          %v1649 = vunpack.c.l.bf16 %v1637
          %v1650 = vunpack.c.l.bf16 %v1638
          %v1651 = vunpack.c.l.bf16 %v1639
          %v1652 = vunpack.c.l.bf16 %v1640
          %v1653 = vunpack.c.l.bf16 %v1641
          %v1654 = vunpack.c.l.bf16 %v1642
          %v1655 = vunpack.c.l.bf16 %v1643
          %v1656 = vunpack.c.l.bf16 %v1644
          %v1657 = vunpack.c.l.bf16 %v1645
          %v1658 = vunpack.c.l.bf16 %v1647
          %1660 = vset.pattern.permute.xlu0 0
          %1661 = vperm.xlu0 %1660, %v1648
          %v1662 = vpop.permute.xlu0 %1661
          %1665 = vset.pattern.permute.xlu0 0
          %1666 = vperm.xlu0 %1665, %v1649
          %v1667 = vpop.permute.xlu0 %1666
          %1670 = vset.pattern.permute.xlu0 0
          %1671 = vperm.xlu0 %1670, %v1650
          %v1672 = vpop.permute.xlu0 %1671
          %1675 = vset.pattern.permute.xlu0 0
          %1676 = vperm.xlu0 %1675, %v1651
          %v1677 = vpop.permute.xlu0 %1676
          %1680 = vset.pattern.permute.xlu0 0
          %1681 = vperm.xlu0 %1680, %v1652
          %v1682 = vpop.permute.xlu0 %1681
          %1685 = vset.pattern.permute.xlu0 0
          %1686 = vperm.xlu0 %1685, %v1653
          %v1687 = vpop.permute.xlu0 %1686
          %1690 = vset.pattern.permute.xlu0 0
          %1691 = vperm.xlu0 %1690, %v1654
          %v1692 = vpop.permute.xlu0 %1691
          %1695 = vset.pattern.permute.xlu0 0
          %1696 = vperm.xlu0 %1695, %v1655
          %v1697 = vpop.permute.xlu0 %1696
          %1700 = vset.pattern.permute.xlu0 0
          %1701 = vperm.xlu0 %1700, %v1656
          %v1702 = vpop.permute.xlu0 %1701
          %1705 = vset.pattern.permute.xlu0 0
          %1706 = vperm.xlu0 %1705, %v1657
          %v1707 = vpop.permute.xlu0 %1706
          %v1709 = vlaneseq
          %v1710 = vshrl.u32 %v1709, 7
          %v1711 = vsub.s32 0, %v1710
          %v1712 = vrot.slane %v1658, %v1711
          %v1713 = vmul.f32 %v1662, %v1712
          %v1714 = vmul.f32 %v1667, %v1712
          %v1715 = vmul.f32 %v1672, %v1712
          %v1716 = vmul.f32 %v1677, %v1712
          %v1717 = vmul.f32 %v1682, %v1712
          %v1718 = vmul.f32 %v1687, %v1712
          %v1719 = vmul.f32 %v1692, %v1712
          %v1720 = vmul.f32 %v1697, %v1712
          %v1721 = vmul.f32 %v1702, %v1712
          %v1722 = vmul.f32 %v1707, %v1712
          %v1723 = vadd.f32 %v1623, %v1713
          %v1724 = vadd.f32 %v1624, %v1714
          %v1725 = vadd.f32 %v1625, %v1715
          %v1726 = vadd.f32 %v1626, %v1716
          %v1727 = vadd.f32 %v1627, %v1717
          %v1728 = vadd.f32 %v1628, %v1718
          %v1729 = vadd.f32 %v1629, %v1719
          %v1730 = vadd.f32 %v1630, %v1720
          %v1731 = vadd.f32 %v1631, %v1721
          %v1741 = vrot.slane %v1713, 1
          %v1742 = vrot.slane %v1714, 1
          %v1743 = vsel %vm433, %v1741, %v1742
          %v1744 = vrot.slane %v1715, 1
          %v1745 = vsel %vm433, %v1742, %v1744
          %v1746 = vrot.slane %v1716, 1
          %v1747 = vsel %vm433, %v1744, %v1746
          %v1748 = vrot.slane %v1717, 1
          %v1749 = vsel %vm433, %v1746, %v1748
          %v1750 = vrot.slane %v1718, 1
          %v1751 = vsel %vm433, %v1748, %v1750
          %v1752 = vrot.slane %v1719, 1
          %v1753 = vsel %vm433, %v1750, %v1752
          %v1754 = vrot.slane %v1720, 1
          %v1755 = vsel %vm433, %v1752, %v1754
          %v1756 = vrot.slane %v1721, 1
          %v1757 = vsel %vm433, %v1754, %v1756
          %1758 = vrot.lane.b32.xlu0 %v1743, 112
          %v1759 = vpop.permute.xlu0 %1758
          %1760 = vrot.lane.b32.xlu0 %v1745, 112
          %v1761 = vpop.permute.xlu0 %1760
          %1762 = vrot.lane.b32.xlu0 %v1747, 112
          %v1763 = vpop.permute.xlu0 %1762
          %1764 = vrot.lane.b32.xlu0 %v1749, 112
          %v1765 = vpop.permute.xlu0 %1764
          %1766 = vrot.lane.b32.xlu0 %v1751, 112
          %v1767 = vpop.permute.xlu0 %1766
          %1768 = vrot.lane.b32.xlu0 %v1753, 112
          %v1769 = vpop.permute.xlu0 %1768
          %1770 = vrot.lane.b32.xlu0 %v1755, 112
          %v1771 = vpop.permute.xlu0 %1770
          %1772 = vrot.lane.b32.xlu0 %v1757, 112
          %v1773 = vpop.permute.xlu0 %1772
          %1774 = vrot.lane.b32.xlu0 %v1756, 112
          %v1775 = vpop.permute.xlu0 %1774
          %v1785 = vadd.f32 %v1723, %v1759
          %v1786 = vadd.f32 %v1724, %v1761
          %v1787 = vadd.f32 %v1725, %v1763
          %v1788 = vadd.f32 %v1726, %v1765
          %v1789 = vadd.f32 %v1727, %v1767
          %v1790 = vadd.f32 %v1728, %v1769
          %v1791 = vadd.f32 %v1729, %v1771
          %v1792 = vadd.f32 %v1730, %v1773
          %v1793 = vadd.f32 %v1731, %v1775
          %v1794 = vrot.slane %v1713, 2
          %v1795 = vrot.slane %v1714, 2
          %v1796 = vsel %vm487, %v1794, %v1795
          %v1797 = vrot.slane %v1715, 2
          %v1798 = vsel %vm487, %v1795, %v1797
          %v1799 = vrot.slane %v1716, 2
          %v1800 = vsel %vm487, %v1797, %v1799
          %v1801 = vrot.slane %v1717, 2
          %v1802 = vsel %vm487, %v1799, %v1801
          %v1803 = vrot.slane %v1718, 2
          %v1804 = vsel %vm487, %v1801, %v1803
          %v1805 = vrot.slane %v1719, 2
          %v1806 = vsel %vm487, %v1803, %v1805
          %v1807 = vrot.slane %v1720, 2
          %v1808 = vsel %vm487, %v1805, %v1807
          %v1809 = vrot.slane %v1721, 2
          %v1810 = vsel %vm487, %v1807, %v1809
          %1811 = vrot.lane.b32.xlu0 %v1796, 96
          %v1812 = vpop.permute.xlu0 %1811
          %1813 = vrot.lane.b32.xlu0 %v1798, 96
          %v1814 = vpop.permute.xlu0 %1813
          %1815 = vrot.lane.b32.xlu0 %v1800, 96
          %v1816 = vpop.permute.xlu0 %1815
          %1817 = vrot.lane.b32.xlu0 %v1802, 96
          %v1818 = vpop.permute.xlu0 %1817
          %1819 = vrot.lane.b32.xlu0 %v1804, 96
          %v1820 = vpop.permute.xlu0 %1819
          %1821 = vrot.lane.b32.xlu0 %v1806, 96
          %v1822 = vpop.permute.xlu0 %1821
          %1823 = vrot.lane.b32.xlu0 %v1808, 96
          %v1824 = vpop.permute.xlu0 %1823
          %1825 = vrot.lane.b32.xlu0 %v1810, 96
          %v1826 = vpop.permute.xlu0 %1825
          %1827 = vrot.lane.b32.xlu0 %v1809, 96
          %v1828 = vpop.permute.xlu0 %1827
          %v1838 = vadd.f32 %v1785, %v1812
          %v1839 = vadd.f32 %v1786, %v1814
          %v1840 = vadd.f32 %v1787, %v1816
          %v1841 = vadd.f32 %v1788, %v1818
          %v1842 = vadd.f32 %v1789, %v1820
          %v1843 = vadd.f32 %v1790, %v1822
          %v1844 = vadd.f32 %v1791, %v1824
          %v1845 = vadd.f32 %v1792, %v1826
          %v1846 = vadd.f32 %v1793, %v1828
          %v1848 = vrot.slane %v1713, 3
          %v1849 = vrot.slane %v1714, 3
          %v1850 = vsel %vm542, %v1848, %v1849
          %v1851 = vrot.slane %v1715, 3
          %v1852 = vsel %vm542, %v1849, %v1851
          %v1853 = vrot.slane %v1716, 3
          %v1854 = vsel %vm542, %v1851, %v1853
          %v1855 = vrot.slane %v1717, 3
          %v1856 = vsel %vm542, %v1853, %v1855
          %v1857 = vrot.slane %v1718, 3
          %v1858 = vsel %vm542, %v1855, %v1857
          %v1859 = vrot.slane %v1719, 3
          %v1860 = vsel %vm542, %v1857, %v1859
          %v1861 = vrot.slane %v1720, 3
          %v1862 = vsel %vm542, %v1859, %v1861
          %v1863 = vrot.slane %v1721, 3
          %v1864 = vsel %vm542, %v1861, %v1863
          %v1865 = vrot.slane %v1722, 3
          %v1866 = vsel %vm542, %v1863, %v1865
          %1867 = vrot.lane.b32.xlu0 %v1850, 80
          %v1868 = vpop.permute.xlu0 %1867
          %1869 = vrot.lane.b32.xlu0 %v1852, 80
          %v1870 = vpop.permute.xlu0 %1869
          %1871 = vrot.lane.b32.xlu0 %v1854, 80
          %v1872 = vpop.permute.xlu0 %1871
          %1873 = vrot.lane.b32.xlu0 %v1856, 80
          %v1874 = vpop.permute.xlu0 %1873
          %1875 = vrot.lane.b32.xlu0 %v1858, 80
          %v1876 = vpop.permute.xlu0 %1875
          %1877 = vrot.lane.b32.xlu0 %v1860, 80
          %v1878 = vpop.permute.xlu0 %1877
          %1879 = vrot.lane.b32.xlu0 %v1862, 80
          %v1880 = vpop.permute.xlu0 %1879
          %1881 = vrot.lane.b32.xlu0 %v1864, 80
          %v1882 = vpop.permute.xlu0 %1881
          %1883 = vrot.lane.b32.xlu0 %v1866, 80
          %v1884 = vpop.permute.xlu0 %1883
          %v1894 = vadd.f32 %v1838, %v1868
          %v1895 = vadd.f32 %v1839, %v1870
          %v1896 = vadd.f32 %v1840, %v1872
          %v1897 = vadd.f32 %v1841, %v1874
          %v1898 = vadd.f32 %v1842, %v1876
          %v1899 = vadd.f32 %v1843, %v1878
          %v1900 = vadd.f32 %v1844, %v1880
          %v1901 = vadd.f32 %v1845, %v1882
          %v1902 = vadd.f32 %v1846, %v1884
          %v1903 = vrot.slane %v1713, 4
          %v1904 = vrot.slane %v1714, 4
          %v1905 = vsel %vm598, %v1903, %v1904
          %v1906 = vrot.slane %v1715, 4
          %v1907 = vsel %vm598, %v1904, %v1906
          %v1908 = vrot.slane %v1716, 4
          %v1909 = vsel %vm598, %v1906, %v1908
          %v1910 = vrot.slane %v1717, 4
          %v1911 = vsel %vm598, %v1908, %v1910
          %v1912 = vrot.slane %v1718, 4
          %v1913 = vsel %vm598, %v1910, %v1912
          %v1914 = vrot.slane %v1719, 4
          %v1915 = vsel %vm598, %v1912, %v1914
          %v1916 = vrot.slane %v1720, 4
          %v1917 = vsel %vm598, %v1914, %v1916
          %v1918 = vrot.slane %v1721, 4
          %v1919 = vsel %vm598, %v1916, %v1918
          %v1920 = vrot.slane %v1722, 4
          %v1921 = vsel %vm598, %v1918, %v1920
          %1922 = vrot.lane.b32.xlu0 %v1905, 64
          %v1923 = vpop.permute.xlu0 %1922
          %1924 = vrot.lane.b32.xlu0 %v1907, 64
          %v1925 = vpop.permute.xlu0 %1924
          %1926 = vrot.lane.b32.xlu0 %v1909, 64
          %v1927 = vpop.permute.xlu0 %1926
          %1928 = vrot.lane.b32.xlu0 %v1911, 64
          %v1929 = vpop.permute.xlu0 %1928
          %1930 = vrot.lane.b32.xlu0 %v1913, 64
          %v1931 = vpop.permute.xlu0 %1930
          %1932 = vrot.lane.b32.xlu0 %v1915, 64
          %v1933 = vpop.permute.xlu0 %1932
          %1934 = vrot.lane.b32.xlu0 %v1917, 64
          %v1935 = vpop.permute.xlu0 %1934
          %1936 = vrot.lane.b32.xlu0 %v1919, 64
          %v1937 = vpop.permute.xlu0 %1936
          %1938 = vrot.lane.b32.xlu0 %v1921, 64
          %v1939 = vpop.permute.xlu0 %1938
          %v1949 = vadd.f32 %v1894, %v1923
          %v1950 = vadd.f32 %v1895, %v1925
          %v1951 = vadd.f32 %v1896, %v1927
          %v1952 = vadd.f32 %v1897, %v1929
          %v1953 = vadd.f32 %v1898, %v1931
          %v1954 = vadd.f32 %v1899, %v1933
          %v1955 = vadd.f32 %v1900, %v1935
          %v1956 = vadd.f32 %v1901, %v1937
          %v1957 = vadd.f32 %v1902, %v1939
          %s1958 = sadd.s32 %s325, 5
          %s1959 = smul.u32 %s1958, 10
          %s1960 = smul.addr %s1959, 4
          %s1961 = scalar_lea.vmem %s266, %s1960 [#allocation2]
          %v1962 = vld [vmem:[%s1961] sm:$0xf]
          %v1963 = vld [vmem:[%s1961 + $0x4] sm:$0xf]
          %v1964 = vld [vmem:[%s1961 + $0x8] sm:$0xf]
          %v1965 = vld [vmem:[%s1961 + $0xc] sm:$0xf]
          %v1966 = vld [vmem:[%s1961 + $0x10] sm:$0xf]
          %v1967 = vld [vmem:[%s1961 + $0x14] sm:$0xf]
          %v1968 = vld [vmem:[%s1961 + $0x18] sm:$0xf]
          %v1969 = vld [vmem:[%s1961 + $0x1c] sm:$0xf]
          %v1970 = vld [vmem:[%s1961 + $0x20] sm:$0xf]
          %v1971 = vld [vmem:[%s1961 + $0x24] sm:$0x1]
          %s1972 = scalar_lea.vmem [#allocation5], 5
          %v1973 = vld [vmem:[%s1972] sm:$0x1]
          %v1974 = vunpack.c.l.bf16 %v1962
          %v1975 = vunpack.c.l.bf16 %v1963
          %v1976 = vunpack.c.l.bf16 %v1964
          %v1977 = vunpack.c.l.bf16 %v1965
          %v1978 = vunpack.c.l.bf16 %v1966
          %v1979 = vunpack.c.l.bf16 %v1967
          %v1980 = vunpack.c.l.bf16 %v1968
          %v1981 = vunpack.c.l.bf16 %v1969
          %v1982 = vunpack.c.l.bf16 %v1970
          %v1983 = vunpack.c.l.bf16 %v1971
          %v1984 = vunpack.c.l.bf16 %v1973
          %1986 = vset.pattern.permute.xlu0 0
          %1987 = vperm.xlu0 %1986, %v1974
          %v1988 = vpop.permute.xlu0 %1987
          %1991 = vset.pattern.permute.xlu0 0
          %1992 = vperm.xlu0 %1991, %v1975
          %v1993 = vpop.permute.xlu0 %1992
          %1996 = vset.pattern.permute.xlu0 0
          %1997 = vperm.xlu0 %1996, %v1976
          %v1998 = vpop.permute.xlu0 %1997
          %2001 = vset.pattern.permute.xlu0 0
          %2002 = vperm.xlu0 %2001, %v1977
          %v2003 = vpop.permute.xlu0 %2002
          %2006 = vset.pattern.permute.xlu0 0
          %2007 = vperm.xlu0 %2006, %v1978
          %v2008 = vpop.permute.xlu0 %2007
          %2011 = vset.pattern.permute.xlu0 0
          %2012 = vperm.xlu0 %2011, %v1979
          %v2013 = vpop.permute.xlu0 %2012
          %2016 = vset.pattern.permute.xlu0 0
          %2017 = vperm.xlu0 %2016, %v1980
          %v2018 = vpop.permute.xlu0 %2017
          %2021 = vset.pattern.permute.xlu0 0
          %2022 = vperm.xlu0 %2021, %v1981
          %v2023 = vpop.permute.xlu0 %2022
          %2026 = vset.pattern.permute.xlu0 0
          %2027 = vperm.xlu0 %2026, %v1982
          %v2028 = vpop.permute.xlu0 %2027
          %2031 = vset.pattern.permute.xlu0 0
          %2032 = vperm.xlu0 %2031, %v1983
          %v2033 = vpop.permute.xlu0 %2032
          %v2035 = vlaneseq
          %v2036 = vshrl.u32 %v2035, 7
          %v2037 = vsub.s32 0, %v2036
          %v2038 = vrot.slane %v1984, %v2037
          %v2039 = vmul.f32 %v1988, %v2038
          %v2040 = vmul.f32 %v1993, %v2038
          %v2041 = vmul.f32 %v1998, %v2038
          %v2042 = vmul.f32 %v2003, %v2038
          %v2043 = vmul.f32 %v2008, %v2038
          %v2044 = vmul.f32 %v2013, %v2038
          %v2045 = vmul.f32 %v2018, %v2038
          %v2046 = vmul.f32 %v2023, %v2038
          %v2047 = vmul.f32 %v2028, %v2038
          %v2048 = vmul.f32 %v2033, %v2038
          %v2049 = vadd.f32 %v1949, %v2039
          %v2050 = vadd.f32 %v1950, %v2040
          %v2051 = vadd.f32 %v1951, %v2041
          %v2052 = vadd.f32 %v1952, %v2042
          %v2053 = vadd.f32 %v1953, %v2043
          %v2054 = vadd.f32 %v1954, %v2044
          %v2055 = vadd.f32 %v1955, %v2045
          %v2056 = vadd.f32 %v1956, %v2046
          %v2057 = vadd.f32 %v1957, %v2047
          %v2067 = vrot.slane %v2039, 1
          %v2068 = vrot.slane %v2040, 1
          %v2069 = vsel %vm433, %v2067, %v2068
          %v2070 = vrot.slane %v2041, 1
          %v2071 = vsel %vm433, %v2068, %v2070
          %v2072 = vrot.slane %v2042, 1
          %v2073 = vsel %vm433, %v2070, %v2072
          %v2074 = vrot.slane %v2043, 1
          %v2075 = vsel %vm433, %v2072, %v2074
          %v2076 = vrot.slane %v2044, 1
          %v2077 = vsel %vm433, %v2074, %v2076
          %v2078 = vrot.slane %v2045, 1
          %v2079 = vsel %vm433, %v2076, %v2078
          %v2080 = vrot.slane %v2046, 1
          %v2081 = vsel %vm433, %v2078, %v2080
          %v2082 = vrot.slane %v2047, 1
          %v2083 = vsel %vm433, %v2080, %v2082
          %2084 = vrot.lane.b32.xlu0 %v2069, 112
          %v2085 = vpop.permute.xlu0 %2084
          %2086 = vrot.lane.b32.xlu0 %v2071, 112
          %v2087 = vpop.permute.xlu0 %2086
          %2088 = vrot.lane.b32.xlu0 %v2073, 112
          %v2089 = vpop.permute.xlu0 %2088
          %2090 = vrot.lane.b32.xlu0 %v2075, 112
          %v2091 = vpop.permute.xlu0 %2090
          %2092 = vrot.lane.b32.xlu0 %v2077, 112
          %v2093 = vpop.permute.xlu0 %2092
          %2094 = vrot.lane.b32.xlu0 %v2079, 112
          %v2095 = vpop.permute.xlu0 %2094
          %2096 = vrot.lane.b32.xlu0 %v2081, 112
          %v2097 = vpop.permute.xlu0 %2096
          %2098 = vrot.lane.b32.xlu0 %v2083, 112
          %v2099 = vpop.permute.xlu0 %2098
          %2100 = vrot.lane.b32.xlu0 %v2082, 112
          %v2101 = vpop.permute.xlu0 %2100
          %v2111 = vadd.f32 %v2049, %v2085
          %v2112 = vadd.f32 %v2050, %v2087
          %v2113 = vadd.f32 %v2051, %v2089
          %v2114 = vadd.f32 %v2052, %v2091
          %v2115 = vadd.f32 %v2053, %v2093
          %v2116 = vadd.f32 %v2054, %v2095
          %v2117 = vadd.f32 %v2055, %v2097
          %v2118 = vadd.f32 %v2056, %v2099
          %v2119 = vadd.f32 %v2057, %v2101
          %v2120 = vrot.slane %v2039, 2
          %v2121 = vrot.slane %v2040, 2
          %v2122 = vsel %vm487, %v2120, %v2121
          %v2123 = vrot.slane %v2041, 2
          %v2124 = vsel %vm487, %v2121, %v2123
          %v2125 = vrot.slane %v2042, 2
          %v2126 = vsel %vm487, %v2123, %v2125
          %v2127 = vrot.slane %v2043, 2
          %v2128 = vsel %vm487, %v2125, %v2127
          %v2129 = vrot.slane %v2044, 2
          %v2130 = vsel %vm487, %v2127, %v2129
          %v2131 = vrot.slane %v2045, 2
          %v2132 = vsel %vm487, %v2129, %v2131
          %v2133 = vrot.slane %v2046, 2
          %v2134 = vsel %vm487, %v2131, %v2133
          %v2135 = vrot.slane %v2047, 2
          %v2136 = vsel %vm487, %v2133, %v2135
          %2137 = vrot.lane.b32.xlu0 %v2122, 96
          %v2138 = vpop.permute.xlu0 %2137
          %2139 = vrot.lane.b32.xlu0 %v2124, 96
          %v2140 = vpop.permute.xlu0 %2139
          %2141 = vrot.lane.b32.xlu0 %v2126, 96
          %v2142 = vpop.permute.xlu0 %2141
          %2143 = vrot.lane.b32.xlu0 %v2128, 96
          %v2144 = vpop.permute.xlu0 %2143
          %2145 = vrot.lane.b32.xlu0 %v2130, 96
          %v2146 = vpop.permute.xlu0 %2145
          %2147 = vrot.lane.b32.xlu0 %v2132, 96
          %v2148 = vpop.permute.xlu0 %2147
          %2149 = vrot.lane.b32.xlu0 %v2134, 96
          %v2150 = vpop.permute.xlu0 %2149
          %2151 = vrot.lane.b32.xlu0 %v2136, 96
          %v2152 = vpop.permute.xlu0 %2151
          %2153 = vrot.lane.b32.xlu0 %v2135, 96
          %v2154 = vpop.permute.xlu0 %2153
          %v2164 = vadd.f32 %v2111, %v2138
          %v2165 = vadd.f32 %v2112, %v2140
          %v2166 = vadd.f32 %v2113, %v2142
          %v2167 = vadd.f32 %v2114, %v2144
          %v2168 = vadd.f32 %v2115, %v2146
          %v2169 = vadd.f32 %v2116, %v2148
          %v2170 = vadd.f32 %v2117, %v2150
          %v2171 = vadd.f32 %v2118, %v2152
          %v2172 = vadd.f32 %v2119, %v2154
          %v2174 = vrot.slane %v2039, 3
          %v2175 = vrot.slane %v2040, 3
          %v2176 = vsel %vm542, %v2174, %v2175
          %v2177 = vrot.slane %v2041, 3
          %v2178 = vsel %vm542, %v2175, %v2177
          %v2179 = vrot.slane %v2042, 3
          %v2180 = vsel %vm542, %v2177, %v2179
          %v2181 = vrot.slane %v2043, 3
          %v2182 = vsel %vm542, %v2179, %v2181
          %v2183 = vrot.slane %v2044, 3
          %v2184 = vsel %vm542, %v2181, %v2183
          %v2185 = vrot.slane %v2045, 3
          %v2186 = vsel %vm542, %v2183, %v2185
          %v2187 = vrot.slane %v2046, 3
          %v2188 = vsel %vm542, %v2185, %v2187
          %v2189 = vrot.slane %v2047, 3
          %v2190 = vsel %vm542, %v2187, %v2189
          %v2191 = vrot.slane %v2048, 3
          %v2192 = vsel %vm542, %v2189, %v2191
          %2193 = vrot.lane.b32.xlu0 %v2176, 80
          %v2194 = vpop.permute.xlu0 %2193
          %2195 = vrot.lane.b32.xlu0 %v2178, 80
          %v2196 = vpop.permute.xlu0 %2195
          %2197 = vrot.lane.b32.xlu0 %v2180, 80
          %v2198 = vpop.permute.xlu0 %2197
          %2199 = vrot.lane.b32.xlu0 %v2182, 80
          %v2200 = vpop.permute.xlu0 %2199
          %2201 = vrot.lane.b32.xlu0 %v2184, 80
          %v2202 = vpop.permute.xlu0 %2201
          %2203 = vrot.lane.b32.xlu0 %v2186, 80
          %v2204 = vpop.permute.xlu0 %2203
          %2205 = vrot.lane.b32.xlu0 %v2188, 80
          %v2206 = vpop.permute.xlu0 %2205
          %2207 = vrot.lane.b32.xlu0 %v2190, 80
          %v2208 = vpop.permute.xlu0 %2207
          %2209 = vrot.lane.b32.xlu0 %v2192, 80
          %v2210 = vpop.permute.xlu0 %2209
          %v2220 = vadd.f32 %v2164, %v2194
          %v2221 = vadd.f32 %v2165, %v2196
          %v2222 = vadd.f32 %v2166, %v2198
          %v2223 = vadd.f32 %v2167, %v2200
          %v2224 = vadd.f32 %v2168, %v2202
          %v2225 = vadd.f32 %v2169, %v2204
          %v2226 = vadd.f32 %v2170, %v2206
          %v2227 = vadd.f32 %v2171, %v2208
          %v2228 = vadd.f32 %v2172, %v2210
          %v2229 = vrot.slane %v2039, 4
          %v2230 = vrot.slane %v2040, 4
          %v2231 = vsel %vm598, %v2229, %v2230
          %v2232 = vrot.slane %v2041, 4
          %v2233 = vsel %vm598, %v2230, %v2232
          %v2234 = vrot.slane %v2042, 4
          %v2235 = vsel %vm598, %v2232, %v2234
          %v2236 = vrot.slane %v2043, 4
          %v2237 = vsel %vm598, %v2234, %v2236
          %v2238 = vrot.slane %v2044, 4
          %v2239 = vsel %vm598, %v2236, %v2238
          %v2240 = vrot.slane %v2045, 4
          %v2241 = vsel %vm598, %v2238, %v2240
          %v2242 = vrot.slane %v2046, 4
          %v2243 = vsel %vm598, %v2240, %v2242
          %v2244 = vrot.slane %v2047, 4
          %v2245 = vsel %vm598, %v2242, %v2244
          %v2246 = vrot.slane %v2048, 4
          %v2247 = vsel %vm598, %v2244, %v2246
          %2248 = vrot.lane.b32.xlu0 %v2231, 64
          %v2249 = vpop.permute.xlu0 %2248
          %2250 = vrot.lane.b32.xlu0 %v2233, 64
          %v2251 = vpop.permute.xlu0 %2250
          %2252 = vrot.lane.b32.xlu0 %v2235, 64
          %v2253 = vpop.permute.xlu0 %2252
          %2254 = vrot.lane.b32.xlu0 %v2237, 64
          %v2255 = vpop.permute.xlu0 %2254
          %2256 = vrot.lane.b32.xlu0 %v2239, 64
          %v2257 = vpop.permute.xlu0 %2256
          %2258 = vrot.lane.b32.xlu0 %v2241, 64
          %v2259 = vpop.permute.xlu0 %2258
          %2260 = vrot.lane.b32.xlu0 %v2243, 64
          %v2261 = vpop.permute.xlu0 %2260
          %2262 = vrot.lane.b32.xlu0 %v2245, 64
          %v2263 = vpop.permute.xlu0 %2262
          %2264 = vrot.lane.b32.xlu0 %v2247, 64
          %v2265 = vpop.permute.xlu0 %2264
          %v2275 = vadd.f32 %v2220, %v2249
          %v2276 = vadd.f32 %v2221, %v2251
          %v2277 = vadd.f32 %v2222, %v2253
          %v2278 = vadd.f32 %v2223, %v2255
          %v2279 = vadd.f32 %v2224, %v2257
          %v2280 = vadd.f32 %v2225, %v2259
          %v2281 = vadd.f32 %v2226, %v2261
          %v2282 = vadd.f32 %v2227, %v2263
          %v2283 = vadd.f32 %v2228, %v2265
          %s2284 = sadd.s32 %s325, 6
          %s2285 = smul.u32 %s2284, 10
          %s2286 = smul.addr %s2285, 4
          %s2287 = scalar_lea.vmem %s266, %s2286 [#allocation2]
          %v2288 = vld [vmem:[%s2287] sm:$0xf]
          %v2289 = vld [vmem:[%s2287 + $0x4] sm:$0xf]
          %v2290 = vld [vmem:[%s2287 + $0x8] sm:$0xf]
          %v2291 = vld [vmem:[%s2287 + $0xc] sm:$0xf]
          %v2292 = vld [vmem:[%s2287 + $0x10] sm:$0xf]
          %v2293 = vld [vmem:[%s2287 + $0x14] sm:$0xf]
          %v2294 = vld [vmem:[%s2287 + $0x18] sm:$0xf]
          %v2295 = vld [vmem:[%s2287 + $0x1c] sm:$0xf]
          %v2296 = vld [vmem:[%s2287 + $0x20] sm:$0xf]
          %v2297 = vld [vmem:[%s2287 + $0x24] sm:$0x1]
          %s2298 = scalar_lea.vmem [#allocation5], 6
          %v2299 = vld [vmem:[%s2298] sm:$0x1]
          %v2300 = vunpack.c.l.bf16 %v2288
          %v2301 = vunpack.c.l.bf16 %v2289
          %v2302 = vunpack.c.l.bf16 %v2290
          %v2303 = vunpack.c.l.bf16 %v2291
          %v2304 = vunpack.c.l.bf16 %v2292
          %v2305 = vunpack.c.l.bf16 %v2293
          %v2306 = vunpack.c.l.bf16 %v2294
          %v2307 = vunpack.c.l.bf16 %v2295
          %v2308 = vunpack.c.l.bf16 %v2296
          %v2309 = vunpack.c.l.bf16 %v2297
          %v2310 = vunpack.c.l.bf16 %v2299
          %2312 = vset.pattern.permute.xlu0 0
          %2313 = vperm.xlu0 %2312, %v2300
          %v2314 = vpop.permute.xlu0 %2313
          %2317 = vset.pattern.permute.xlu0 0
          %2318 = vperm.xlu0 %2317, %v2301
          %v2319 = vpop.permute.xlu0 %2318
          %2322 = vset.pattern.permute.xlu0 0
          %2323 = vperm.xlu0 %2322, %v2302
          %v2324 = vpop.permute.xlu0 %2323
          %2327 = vset.pattern.permute.xlu0 0
          %2328 = vperm.xlu0 %2327, %v2303
          %v2329 = vpop.permute.xlu0 %2328
          %2332 = vset.pattern.permute.xlu0 0
          %2333 = vperm.xlu0 %2332, %v2304
          %v2334 = vpop.permute.xlu0 %2333
          %2337 = vset.pattern.permute.xlu0 0
          %2338 = vperm.xlu0 %2337, %v2305
          %v2339 = vpop.permute.xlu0 %2338
          %2342 = vset.pattern.permute.xlu0 0
          %2343 = vperm.xlu0 %2342, %v2306
          %v2344 = vpop.permute.xlu0 %2343
          %2347 = vset.pattern.permute.xlu0 0
          %2348 = vperm.xlu0 %2347, %v2307
          %v2349 = vpop.permute.xlu0 %2348
          %2352 = vset.pattern.permute.xlu0 0
          %2353 = vperm.xlu0 %2352, %v2308
          %v2354 = vpop.permute.xlu0 %2353
          %2357 = vset.pattern.permute.xlu0 0
          %2358 = vperm.xlu0 %2357, %v2309
          %v2359 = vpop.permute.xlu0 %2358
          %v2361 = vlaneseq
          %v2362 = vshrl.u32 %v2361, 7
          %v2363 = vsub.s32 0, %v2362
          %v2364 = vrot.slane %v2310, %v2363
          %v2365 = vmul.f32 %v2314, %v2364
          %v2366 = vmul.f32 %v2319, %v2364
          %v2367 = vmul.f32 %v2324, %v2364
          %v2368 = vmul.f32 %v2329, %v2364
          %v2369 = vmul.f32 %v2334, %v2364
          %v2370 = vmul.f32 %v2339, %v2364
          %v2371 = vmul.f32 %v2344, %v2364
          %v2372 = vmul.f32 %v2349, %v2364
          %v2373 = vmul.f32 %v2354, %v2364
          %v2374 = vmul.f32 %v2359, %v2364
          %v2375 = vadd.f32 %v2275, %v2365
          %v2376 = vadd.f32 %v2276, %v2366
          %v2377 = vadd.f32 %v2277, %v2367
          %v2378 = vadd.f32 %v2278, %v2368
          %v2379 = vadd.f32 %v2279, %v2369
          %v2380 = vadd.f32 %v2280, %v2370
          %v2381 = vadd.f32 %v2281, %v2371
          %v2382 = vadd.f32 %v2282, %v2372
          %v2383 = vadd.f32 %v2283, %v2373
          %v2393 = vrot.slane %v2365, 1
          %v2394 = vrot.slane %v2366, 1
          %v2395 = vsel %vm433, %v2393, %v2394
          %v2396 = vrot.slane %v2367, 1
          %v2397 = vsel %vm433, %v2394, %v2396
          %v2398 = vrot.slane %v2368, 1
          %v2399 = vsel %vm433, %v2396, %v2398
          %v2400 = vrot.slane %v2369, 1
          %v2401 = vsel %vm433, %v2398, %v2400
          %v2402 = vrot.slane %v2370, 1
          %v2403 = vsel %vm433, %v2400, %v2402
          %v2404 = vrot.slane %v2371, 1
          %v2405 = vsel %vm433, %v2402, %v2404
          %v2406 = vrot.slane %v2372, 1
          %v2407 = vsel %vm433, %v2404, %v2406
          %v2408 = vrot.slane %v2373, 1
          %v2409 = vsel %vm433, %v2406, %v2408
          %2410 = vrot.lane.b32.xlu0 %v2395, 112
          %v2411 = vpop.permute.xlu0 %2410
          %2412 = vrot.lane.b32.xlu0 %v2397, 112
          %v2413 = vpop.permute.xlu0 %2412
          %2414 = vrot.lane.b32.xlu0 %v2399, 112
          %v2415 = vpop.permute.xlu0 %2414
          %2416 = vrot.lane.b32.xlu0 %v2401, 112
          %v2417 = vpop.permute.xlu0 %2416
          %2418 = vrot.lane.b32.xlu0 %v2403, 112
          %v2419 = vpop.permute.xlu0 %2418
          %2420 = vrot.lane.b32.xlu0 %v2405, 112
          %v2421 = vpop.permute.xlu0 %2420
          %2422 = vrot.lane.b32.xlu0 %v2407, 112
          %v2423 = vpop.permute.xlu0 %2422
          %2424 = vrot.lane.b32.xlu0 %v2409, 112
          %v2425 = vpop.permute.xlu0 %2424
          %2426 = vrot.lane.b32.xlu0 %v2408, 112
          %v2427 = vpop.permute.xlu0 %2426
          %v2437 = vadd.f32 %v2375, %v2411
          %v2438 = vadd.f32 %v2376, %v2413
          %v2439 = vadd.f32 %v2377, %v2415
          %v2440 = vadd.f32 %v2378, %v2417
          %v2441 = vadd.f32 %v2379, %v2419
          %v2442 = vadd.f32 %v2380, %v2421
          %v2443 = vadd.f32 %v2381, %v2423
          %v2444 = vadd.f32 %v2382, %v2425
          %v2445 = vadd.f32 %v2383, %v2427
          %v2446 = vrot.slane %v2365, 2
          %v2447 = vrot.slane %v2366, 2
          %v2448 = vsel %vm487, %v2446, %v2447
          %v2449 = vrot.slane %v2367, 2
          %v2450 = vsel %vm487, %v2447, %v2449
          %v2451 = vrot.slane %v2368, 2
          %v2452 = vsel %vm487, %v2449, %v2451
          %v2453 = vrot.slane %v2369, 2
          %v2454 = vsel %vm487, %v2451, %v2453
          %v2455 = vrot.slane %v2370, 2
          %v2456 = vsel %vm487, %v2453, %v2455
          %v2457 = vrot.slane %v2371, 2
          %v2458 = vsel %vm487, %v2455, %v2457
          %v2459 = vrot.slane %v2372, 2
          %v2460 = vsel %vm487, %v2457, %v2459
          %v2461 = vrot.slane %v2373, 2
          %v2462 = vsel %vm487, %v2459, %v2461
          %2463 = vrot.lane.b32.xlu0 %v2448, 96
          %v2464 = vpop.permute.xlu0 %2463
          %2465 = vrot.lane.b32.xlu0 %v2450, 96
          %v2466 = vpop.permute.xlu0 %2465
          %2467 = vrot.lane.b32.xlu0 %v2452, 96
          %v2468 = vpop.permute.xlu0 %2467
          %2469 = vrot.lane.b32.xlu0 %v2454, 96
          %v2470 = vpop.permute.xlu0 %2469
          %2471 = vrot.lane.b32.xlu0 %v2456, 96
          %v2472 = vpop.permute.xlu0 %2471
          %2473 = vrot.lane.b32.xlu0 %v2458, 96
          %v2474 = vpop.permute.xlu0 %2473
          %2475 = vrot.lane.b32.xlu0 %v2460, 96
          %v2476 = vpop.permute.xlu0 %2475
          %2477 = vrot.lane.b32.xlu0 %v2462, 96
          %v2478 = vpop.permute.xlu0 %2477
          %2479 = vrot.lane.b32.xlu0 %v2461, 96
          %v2480 = vpop.permute.xlu0 %2479
          %v2490 = vadd.f32 %v2437, %v2464
          %v2491 = vadd.f32 %v2438, %v2466
          %v2492 = vadd.f32 %v2439, %v2468
          %v2493 = vadd.f32 %v2440, %v2470
          %v2494 = vadd.f32 %v2441, %v2472
          %v2495 = vadd.f32 %v2442, %v2474
          %v2496 = vadd.f32 %v2443, %v2476
          %v2497 = vadd.f32 %v2444, %v2478
          %v2498 = vadd.f32 %v2445, %v2480
          %v2500 = vrot.slane %v2365, 3
          %v2501 = vrot.slane %v2366, 3
          %v2502 = vsel %vm542, %v2500, %v2501
          %v2503 = vrot.slane %v2367, 3
          %v2504 = vsel %vm542, %v2501, %v2503
          %v2505 = vrot.slane %v2368, 3
          %v2506 = vsel %vm542, %v2503, %v2505
          %v2507 = vrot.slane %v2369, 3
          %v2508 = vsel %vm542, %v2505, %v2507
          %v2509 = vrot.slane %v2370, 3
          %v2510 = vsel %vm542, %v2507, %v2509
          %v2511 = vrot.slane %v2371, 3
          %v2512 = vsel %vm542, %v2509, %v2511
          %v2513 = vrot.slane %v2372, 3
          %v2514 = vsel %vm542, %v2511, %v2513
          %v2515 = vrot.slane %v2373, 3
          %v2516 = vsel %vm542, %v2513, %v2515
          %v2517 = vrot.slane %v2374, 3
          %v2518 = vsel %vm542, %v2515, %v2517
          %2519 = vrot.lane.b32.xlu0 %v2502, 80
          %v2520 = vpop.permute.xlu0 %2519
          %2521 = vrot.lane.b32.xlu0 %v2504, 80
          %v2522 = vpop.permute.xlu0 %2521
          %2523 = vrot.lane.b32.xlu0 %v2506, 80
          %v2524 = vpop.permute.xlu0 %2523
          %2525 = vrot.lane.b32.xlu0 %v2508, 80
          %v2526 = vpop.permute.xlu0 %2525
          %2527 = vrot.lane.b32.xlu0 %v2510, 80
          %v2528 = vpop.permute.xlu0 %2527
          %2529 = vrot.lane.b32.xlu0 %v2512, 80
          %v2530 = vpop.permute.xlu0 %2529
          %2531 = vrot.lane.b32.xlu0 %v2514, 80
          %v2532 = vpop.permute.xlu0 %2531
          %2533 = vrot.lane.b32.xlu0 %v2516, 80
          %v2534 = vpop.permute.xlu0 %2533
          %2535 = vrot.lane.b32.xlu0 %v2518, 80
          %v2536 = vpop.permute.xlu0 %2535
          %v2546 = vadd.f32 %v2490, %v2520
          %v2547 = vadd.f32 %v2491, %v2522
          %v2548 = vadd.f32 %v2492, %v2524
          %v2549 = vadd.f32 %v2493, %v2526
          %v2550 = vadd.f32 %v2494, %v2528
          %v2551 = vadd.f32 %v2495, %v2530
          %v2552 = vadd.f32 %v2496, %v2532
          %v2553 = vadd.f32 %v2497, %v2534
          %v2554 = vadd.f32 %v2498, %v2536
          %v2555 = vrot.slane %v2365, 4
          %v2556 = vrot.slane %v2366, 4
          %v2557 = vsel %vm598, %v2555, %v2556
          %v2558 = vrot.slane %v2367, 4
          %v2559 = vsel %vm598, %v2556, %v2558
          %v2560 = vrot.slane %v2368, 4
          %v2561 = vsel %vm598, %v2558, %v2560
          %v2562 = vrot.slane %v2369, 4
          %v2563 = vsel %vm598, %v2560, %v2562
          %v2564 = vrot.slane %v2370, 4
          %v2565 = vsel %vm598, %v2562, %v2564
          %v2566 = vrot.slane %v2371, 4
          %v2567 = vsel %vm598, %v2564, %v2566
          %v2568 = vrot.slane %v2372, 4
          %v2569 = vsel %vm598, %v2566, %v2568
          %v2570 = vrot.slane %v2373, 4
          %v2571 = vsel %vm598, %v2568, %v2570
          %v2572 = vrot.slane %v2374, 4
          %v2573 = vsel %vm598, %v2570, %v2572
          %2574 = vrot.lane.b32.xlu0 %v2557, 64
          %v2575 = vpop.permute.xlu0 %2574
          %2576 = vrot.lane.b32.xlu0 %v2559, 64
          %v2577 = vpop.permute.xlu0 %2576
          %2578 = vrot.lane.b32.xlu0 %v2561, 64
          %v2579 = vpop.permute.xlu0 %2578
          %2580 = vrot.lane.b32.xlu0 %v2563, 64
          %v2581 = vpop.permute.xlu0 %2580
          %2582 = vrot.lane.b32.xlu0 %v2565, 64
          %v2583 = vpop.permute.xlu0 %2582
          %2584 = vrot.lane.b32.xlu0 %v2567, 64
          %v2585 = vpop.permute.xlu0 %2584
          %2586 = vrot.lane.b32.xlu0 %v2569, 64
          %v2587 = vpop.permute.xlu0 %2586
          %2588 = vrot.lane.b32.xlu0 %v2571, 64
          %v2589 = vpop.permute.xlu0 %2588
          %2590 = vrot.lane.b32.xlu0 %v2573, 64
          %v2591 = vpop.permute.xlu0 %2590
          %v2601 = vadd.f32 %v2546, %v2575
          %v2602 = vadd.f32 %v2547, %v2577
          %v2603 = vadd.f32 %v2548, %v2579
          %v2604 = vadd.f32 %v2549, %v2581
          %v2605 = vadd.f32 %v2550, %v2583
          %v2606 = vadd.f32 %v2551, %v2585
          %v2607 = vadd.f32 %v2552, %v2587
          %v2608 = vadd.f32 %v2553, %v2589
          %v2609 = vadd.f32 %v2554, %v2591
          %s2610 = sadd.s32 %s325, 7
          %s2611 = smul.u32 %s2610, 10
          %s2612 = smul.addr %s2611, 4
          %s2613 = scalar_lea.vmem %s266, %s2612 [#allocation2]
          %v2614 = vld [vmem:[%s2613] sm:$0xf]
          %v2615 = vld [vmem:[%s2613 + $0x4] sm:$0xf]
          %v2616 = vld [vmem:[%s2613 + $0x8] sm:$0xf]
          %v2617 = vld [vmem:[%s2613 + $0xc] sm:$0xf]
          %v2618 = vld [vmem:[%s2613 + $0x10] sm:$0xf]
          %v2619 = vld [vmem:[%s2613 + $0x14] sm:$0xf]
          %v2620 = vld [vmem:[%s2613 + $0x18] sm:$0xf]
          %v2621 = vld [vmem:[%s2613 + $0x1c] sm:$0xf]
          %v2622 = vld [vmem:[%s2613 + $0x20] sm:$0xf]
          %v2623 = vld [vmem:[%s2613 + $0x24] sm:$0x1]
          %s2624 = scalar_lea.vmem [#allocation5], 7
          %v2625 = vld [vmem:[%s2624] sm:$0x1]
          %v2626 = vunpack.c.l.bf16 %v2614
          %v2627 = vunpack.c.l.bf16 %v2615
          %v2628 = vunpack.c.l.bf16 %v2616
          %v2629 = vunpack.c.l.bf16 %v2617
          %v2630 = vunpack.c.l.bf16 %v2618
          %v2631 = vunpack.c.l.bf16 %v2619
          %v2632 = vunpack.c.l.bf16 %v2620
          %v2633 = vunpack.c.l.bf16 %v2621
          %v2634 = vunpack.c.l.bf16 %v2622
          %v2635 = vunpack.c.l.bf16 %v2623
          %v2636 = vunpack.c.l.bf16 %v2625
          %2638 = vset.pattern.permute.xlu0 0
          %2639 = vperm.xlu0 %2638, %v2626
          %v2640 = vpop.permute.xlu0 %2639
          %2643 = vset.pattern.permute.xlu0 0
          %2644 = vperm.xlu0 %2643, %v2627
          %v2645 = vpop.permute.xlu0 %2644
          %2648 = vset.pattern.permute.xlu0 0
          %2649 = vperm.xlu0 %2648, %v2628
          %v2650 = vpop.permute.xlu0 %2649
          %2653 = vset.pattern.permute.xlu0 0
          %2654 = vperm.xlu0 %2653, %v2629
          %v2655 = vpop.permute.xlu0 %2654
          %2658 = vset.pattern.permute.xlu0 0
          %2659 = vperm.xlu0 %2658, %v2630
          %v2660 = vpop.permute.xlu0 %2659
          %2663 = vset.pattern.permute.xlu0 0
          %2664 = vperm.xlu0 %2663, %v2631
          %v2665 = vpop.permute.xlu0 %2664
          %2668 = vset.pattern.permute.xlu0 0
          %2669 = vperm.xlu0 %2668, %v2632
          %v2670 = vpop.permute.xlu0 %2669
          %2673 = vset.pattern.permute.xlu0 0
          %2674 = vperm.xlu0 %2673, %v2633
          %v2675 = vpop.permute.xlu0 %2674
          %2678 = vset.pattern.permute.xlu0 0
          %2679 = vperm.xlu0 %2678, %v2634
          %v2680 = vpop.permute.xlu0 %2679
          %2683 = vset.pattern.permute.xlu0 0
          %2684 = vperm.xlu0 %2683, %v2635
          %v2685 = vpop.permute.xlu0 %2684
          %v2687 = vlaneseq
          %v2688 = vshrl.u32 %v2687, 7
          %v2689 = vsub.s32 0, %v2688
          %v2690 = vrot.slane %v2636, %v2689
          %v2691 = vmul.f32 %v2640, %v2690
          %v2692 = vmul.f32 %v2645, %v2690
          %v2693 = vmul.f32 %v2650, %v2690
          %v2694 = vmul.f32 %v2655, %v2690
          %v2695 = vmul.f32 %v2660, %v2690
          %v2696 = vmul.f32 %v2665, %v2690
          %v2697 = vmul.f32 %v2670, %v2690
          %v2698 = vmul.f32 %v2675, %v2690
          %v2699 = vmul.f32 %v2680, %v2690
          %v2700 = vmul.f32 %v2685, %v2690
          %v2701 = vadd.f32 %v2601, %v2691
          %v2702 = vadd.f32 %v2602, %v2692
          %v2703 = vadd.f32 %v2603, %v2693
          %v2704 = vadd.f32 %v2604, %v2694
          %v2705 = vadd.f32 %v2605, %v2695
          %v2706 = vadd.f32 %v2606, %v2696
          %v2707 = vadd.f32 %v2607, %v2697
          %v2708 = vadd.f32 %v2608, %v2698
          %v2709 = vadd.f32 %v2609, %v2699
          %v2719 = vrot.slane %v2691, 1
          %v2720 = vrot.slane %v2692, 1
          %v2721 = vsel %vm433, %v2719, %v2720
          %v2722 = vrot.slane %v2693, 1
          %v2723 = vsel %vm433, %v2720, %v2722
          %v2724 = vrot.slane %v2694, 1
          %v2725 = vsel %vm433, %v2722, %v2724
          %v2726 = vrot.slane %v2695, 1
          %v2727 = vsel %vm433, %v2724, %v2726
          %v2728 = vrot.slane %v2696, 1
          %v2729 = vsel %vm433, %v2726, %v2728
          %v2730 = vrot.slane %v2697, 1
          %v2731 = vsel %vm433, %v2728, %v2730
          %v2732 = vrot.slane %v2698, 1
          %v2733 = vsel %vm433, %v2730, %v2732
          %v2734 = vrot.slane %v2699, 1
          %v2735 = vsel %vm433, %v2732, %v2734
          %2736 = vrot.lane.b32.xlu0 %v2721, 112
          %v2737 = vpop.permute.xlu0 %2736
          %2738 = vrot.lane.b32.xlu0 %v2723, 112
          %v2739 = vpop.permute.xlu0 %2738
          %2740 = vrot.lane.b32.xlu0 %v2725, 112
          %v2741 = vpop.permute.xlu0 %2740
          %2742 = vrot.lane.b32.xlu0 %v2727, 112
          %v2743 = vpop.permute.xlu0 %2742
          %2744 = vrot.lane.b32.xlu0 %v2729, 112
          %v2745 = vpop.permute.xlu0 %2744
          %2746 = vrot.lane.b32.xlu0 %v2731, 112
          %v2747 = vpop.permute.xlu0 %2746
          %2748 = vrot.lane.b32.xlu0 %v2733, 112
          %v2749 = vpop.permute.xlu0 %2748
          %2750 = vrot.lane.b32.xlu0 %v2735, 112
          %v2751 = vpop.permute.xlu0 %2750
          %2752 = vrot.lane.b32.xlu0 %v2734, 112
          %v2753 = vpop.permute.xlu0 %2752
          %v2763 = vadd.f32 %v2701, %v2737
          %v2764 = vadd.f32 %v2702, %v2739
          %v2765 = vadd.f32 %v2703, %v2741
          %v2766 = vadd.f32 %v2704, %v2743
          %v2767 = vadd.f32 %v2705, %v2745
          %v2768 = vadd.f32 %v2706, %v2747
          %v2769 = vadd.f32 %v2707, %v2749
          %v2770 = vadd.f32 %v2708, %v2751
          %v2771 = vadd.f32 %v2709, %v2753
          %v2772 = vrot.slane %v2691, 2
          %v2773 = vrot.slane %v2692, 2
          %v2774 = vsel %vm487, %v2772, %v2773
          %v2775 = vrot.slane %v2693, 2
          %v2776 = vsel %vm487, %v2773, %v2775
          %v2777 = vrot.slane %v2694, 2
          %v2778 = vsel %vm487, %v2775, %v2777
          %v2779 = vrot.slane %v2695, 2
          %v2780 = vsel %vm487, %v2777, %v2779
          %v2781 = vrot.slane %v2696, 2
          %v2782 = vsel %vm487, %v2779, %v2781
          %v2783 = vrot.slane %v2697, 2
          %v2784 = vsel %vm487, %v2781, %v2783
          %v2785 = vrot.slane %v2698, 2
          %v2786 = vsel %vm487, %v2783, %v2785
          %v2787 = vrot.slane %v2699, 2
          %v2788 = vsel %vm487, %v2785, %v2787
          %2789 = vrot.lane.b32.xlu0 %v2774, 96
          %v2790 = vpop.permute.xlu0 %2789
          %2791 = vrot.lane.b32.xlu0 %v2776, 96
          %v2792 = vpop.permute.xlu0 %2791
          %2793 = vrot.lane.b32.xlu0 %v2778, 96
          %v2794 = vpop.permute.xlu0 %2793
          %2795 = vrot.lane.b32.xlu0 %v2780, 96
          %v2796 = vpop.permute.xlu0 %2795
          %2797 = vrot.lane.b32.xlu0 %v2782, 96
          %v2798 = vpop.permute.xlu0 %2797
          %2799 = vrot.lane.b32.xlu0 %v2784, 96
          %v2800 = vpop.permute.xlu0 %2799
          %2801 = vrot.lane.b32.xlu0 %v2786, 96
          %v2802 = vpop.permute.xlu0 %2801
          %2803 = vrot.lane.b32.xlu0 %v2788, 96
          %v2804 = vpop.permute.xlu0 %2803
          %2805 = vrot.lane.b32.xlu0 %v2787, 96
          %v2806 = vpop.permute.xlu0 %2805
          %v2816 = vadd.f32 %v2763, %v2790
          %v2817 = vadd.f32 %v2764, %v2792
          %v2818 = vadd.f32 %v2765, %v2794
          %v2819 = vadd.f32 %v2766, %v2796
          %v2820 = vadd.f32 %v2767, %v2798
          %v2821 = vadd.f32 %v2768, %v2800
          %v2822 = vadd.f32 %v2769, %v2802
          %v2823 = vadd.f32 %v2770, %v2804
          %v2824 = vadd.f32 %v2771, %v2806
          %v2826 = vrot.slane %v2691, 3
          %v2827 = vrot.slane %v2692, 3
          %v2828 = vsel %vm542, %v2826, %v2827
          %v2829 = vrot.slane %v2693, 3
          %v2830 = vsel %vm542, %v2827, %v2829
          %v2831 = vrot.slane %v2694, 3
          %v2832 = vsel %vm542, %v2829, %v2831
          %v2833 = vrot.slane %v2695, 3
          %v2834 = vsel %vm542, %v2831, %v2833
          %v2835 = vrot.slane %v2696, 3
          %v2836 = vsel %vm542, %v2833, %v2835
          %v2837 = vrot.slane %v2697, 3
          %v2838 = vsel %vm542, %v2835, %v2837
          %v2839 = vrot.slane %v2698, 3
          %v2840 = vsel %vm542, %v2837, %v2839
          %v2841 = vrot.slane %v2699, 3
          %v2842 = vsel %vm542, %v2839, %v2841
          %v2843 = vrot.slane %v2700, 3
          %v2844 = vsel %vm542, %v2841, %v2843
          %2845 = vrot.lane.b32.xlu0 %v2828, 80
          %v2846 = vpop.permute.xlu0 %2845
          %2847 = vrot.lane.b32.xlu0 %v2830, 80
          %v2848 = vpop.permute.xlu0 %2847
          %2849 = vrot.lane.b32.xlu0 %v2832, 80
          %v2850 = vpop.permute.xlu0 %2849
          %2851 = vrot.lane.b32.xlu0 %v2834, 80
          %v2852 = vpop.permute.xlu0 %2851
          %2853 = vrot.lane.b32.xlu0 %v2836, 80
          %v2854 = vpop.permute.xlu0 %2853
          %2855 = vrot.lane.b32.xlu0 %v2838, 80
          %v2856 = vpop.permute.xlu0 %2855
          %2857 = vrot.lane.b32.xlu0 %v2840, 80
          %v2858 = vpop.permute.xlu0 %2857
          %2859 = vrot.lane.b32.xlu0 %v2842, 80
          %v2860 = vpop.permute.xlu0 %2859
          %2861 = vrot.lane.b32.xlu0 %v2844, 80
          %v2862 = vpop.permute.xlu0 %2861
          %v2872 = vadd.f32 %v2816, %v2846
          %v2873 = vadd.f32 %v2817, %v2848
          %v2874 = vadd.f32 %v2818, %v2850
          %v2875 = vadd.f32 %v2819, %v2852
          %v2876 = vadd.f32 %v2820, %v2854
          %v2877 = vadd.f32 %v2821, %v2856
          %v2878 = vadd.f32 %v2822, %v2858
          %v2879 = vadd.f32 %v2823, %v2860
          %v2880 = vadd.f32 %v2824, %v2862
          %v2881 = vrot.slane %v2691, 4
          %v2882 = vrot.slane %v2692, 4
          %v2883 = vsel %vm598, %v2881, %v2882
          %v2884 = vrot.slane %v2693, 4
          %v2885 = vsel %vm598, %v2882, %v2884
          %v2886 = vrot.slane %v2694, 4
          %v2887 = vsel %vm598, %v2884, %v2886
          %v2888 = vrot.slane %v2695, 4
          %v2889 = vsel %vm598, %v2886, %v2888
          %v2890 = vrot.slane %v2696, 4
          %v2891 = vsel %vm598, %v2888, %v2890
          %v2892 = vrot.slane %v2697, 4
          %v2893 = vsel %vm598, %v2890, %v2892
          %v2894 = vrot.slane %v2698, 4
          %v2895 = vsel %vm598, %v2892, %v2894
          %v2896 = vrot.slane %v2699, 4
          %v2897 = vsel %vm598, %v2894, %v2896
          %v2898 = vrot.slane %v2700, 4
          %v2899 = vsel %vm598, %v2896, %v2898
          %2900 = vrot.lane.b32.xlu0 %v2883, 64
          %v2901 = vpop.permute.xlu0 %2900
          %2902 = vrot.lane.b32.xlu0 %v2885, 64
          %v2903 = vpop.permute.xlu0 %2902
          %2904 = vrot.lane.b32.xlu0 %v2887, 64
          %v2905 = vpop.permute.xlu0 %2904
          %2906 = vrot.lane.b32.xlu0 %v2889, 64
          %v2907 = vpop.permute.xlu0 %2906
          %2908 = vrot.lane.b32.xlu0 %v2891, 64
          %v2909 = vpop.permute.xlu0 %2908
          %2910 = vrot.lane.b32.xlu0 %v2893, 64
          %v2911 = vpop.permute.xlu0 %2910
          %2912 = vrot.lane.b32.xlu0 %v2895, 64
          %v2913 = vpop.permute.xlu0 %2912
          %2914 = vrot.lane.b32.xlu0 %v2897, 64
          %v2915 = vpop.permute.xlu0 %2914
          %2916 = vrot.lane.b32.xlu0 %v2899, 64
          %v2917 = vpop.permute.xlu0 %2916
          %v2927 = vadd.f32 %v2872, %v2901
          %v2928 = vadd.f32 %v2873, %v2903
          %v2929 = vadd.f32 %v2874, %v2905
          %v2930 = vadd.f32 %v2875, %v2907
          %v2931 = vadd.f32 %v2876, %v2909
          %v2932 = vadd.f32 %v2877, %v2911
          %v2933 = vadd.f32 %v2878, %v2913
          %v2934 = vadd.f32 %v2879, %v2915
          %v2935 = vadd.f32 %v2880, %v2917
          %s2936 = sadd.s32 %s325, 8
          %s2937 = smul.u32 %s2936, 10
          %s2938 = smul.addr %s2937, 4
          %s2939 = scalar_lea.vmem %s266, %s2938 [#allocation2]
          %v2940 = vld [vmem:[%s2939] sm:$0xf]
          %v2941 = vld [vmem:[%s2939 + $0x4] sm:$0xf]
          %v2942 = vld [vmem:[%s2939 + $0x8] sm:$0xf]
          %v2943 = vld [vmem:[%s2939 + $0xc] sm:$0xf]
          %v2944 = vld [vmem:[%s2939 + $0x10] sm:$0xf]
          %v2945 = vld [vmem:[%s2939 + $0x14] sm:$0xf]
          %v2946 = vld [vmem:[%s2939 + $0x18] sm:$0xf]
          %v2947 = vld [vmem:[%s2939 + $0x1c] sm:$0xf]
          %v2948 = vld [vmem:[%s2939 + $0x20] sm:$0xf]
          %v2949 = vld [vmem:[%s2939 + $0x24] sm:$0x1]
          %s2950 = scalar_lea.vmem [#allocation5], 8
          %v2951 = vld [vmem:[%s2950] sm:$0x1]
          %v2952 = vunpack.c.l.bf16 %v2940
          %v2953 = vunpack.c.l.bf16 %v2941
          %v2954 = vunpack.c.l.bf16 %v2942
          %v2955 = vunpack.c.l.bf16 %v2943
          %v2956 = vunpack.c.l.bf16 %v2944
          %v2957 = vunpack.c.l.bf16 %v2945
          %v2958 = vunpack.c.l.bf16 %v2946
          %v2959 = vunpack.c.l.bf16 %v2947
          %v2960 = vunpack.c.l.bf16 %v2948
          %v2961 = vunpack.c.l.bf16 %v2949
          %v2962 = vunpack.c.l.bf16 %v2951
          %2964 = vset.pattern.permute.xlu0 0
          %2965 = vperm.xlu0 %2964, %v2952
          %v2966 = vpop.permute.xlu0 %2965
          %2969 = vset.pattern.permute.xlu0 0
          %2970 = vperm.xlu0 %2969, %v2953
          %v2971 = vpop.permute.xlu0 %2970
          %2974 = vset.pattern.permute.xlu0 0
          %2975 = vperm.xlu0 %2974, %v2954
          %v2976 = vpop.permute.xlu0 %2975
          %2979 = vset.pattern.permute.xlu0 0
          %2980 = vperm.xlu0 %2979, %v2955
          %v2981 = vpop.permute.xlu0 %2980
          %2984 = vset.pattern.permute.xlu0 0
          %2985 = vperm.xlu0 %2984, %v2956
          %v2986 = vpop.permute.xlu0 %2985
          %2989 = vset.pattern.permute.xlu0 0
          %2990 = vperm.xlu0 %2989, %v2957
          %v2991 = vpop.permute.xlu0 %2990
          %2994 = vset.pattern.permute.xlu0 0
          %2995 = vperm.xlu0 %2994, %v2958
          %v2996 = vpop.permute.xlu0 %2995
          %2999 = vset.pattern.permute.xlu0 0
          %3000 = vperm.xlu0 %2999, %v2959
          %v3001 = vpop.permute.xlu0 %3000
          %3004 = vset.pattern.permute.xlu0 0
          %3005 = vperm.xlu0 %3004, %v2960
          %v3006 = vpop.permute.xlu0 %3005
          %3009 = vset.pattern.permute.xlu0 0
          %3010 = vperm.xlu0 %3009, %v2961
          %v3011 = vpop.permute.xlu0 %3010
          %v3013 = vlaneseq
          %v3014 = vshrl.u32 %v3013, 7
          %v3015 = vsub.s32 0, %v3014
          %v3016 = vrot.slane %v2962, %v3015
          %v3017 = vmul.f32 %v2966, %v3016
          %v3018 = vmul.f32 %v2971, %v3016
          %v3019 = vmul.f32 %v2976, %v3016
          %v3020 = vmul.f32 %v2981, %v3016
          %v3021 = vmul.f32 %v2986, %v3016
          %v3022 = vmul.f32 %v2991, %v3016
          %v3023 = vmul.f32 %v2996, %v3016
          %v3024 = vmul.f32 %v3001, %v3016
          %v3025 = vmul.f32 %v3006, %v3016
          %v3026 = vmul.f32 %v3011, %v3016
          %v3027 = vadd.f32 %v2927, %v3017
          %v3028 = vadd.f32 %v2928, %v3018
          %v3029 = vadd.f32 %v2929, %v3019
          %v3030 = vadd.f32 %v2930, %v3020
          %v3031 = vadd.f32 %v2931, %v3021
          %v3032 = vadd.f32 %v2932, %v3022
          %v3033 = vadd.f32 %v2933, %v3023
          %v3034 = vadd.f32 %v2934, %v3024
          %v3035 = vadd.f32 %v2935, %v3025
          %v3045 = vrot.slane %v3017, 1
          %v3046 = vrot.slane %v3018, 1
          %v3047 = vsel %vm433, %v3045, %v3046
          %v3048 = vrot.slane %v3019, 1
          %v3049 = vsel %vm433, %v3046, %v3048
          %v3050 = vrot.slane %v3020, 1
          %v3051 = vsel %vm433, %v3048, %v3050
          %v3052 = vrot.slane %v3021, 1
          %v3053 = vsel %vm433, %v3050, %v3052
          %v3054 = vrot.slane %v3022, 1
          %v3055 = vsel %vm433, %v3052, %v3054
          %v3056 = vrot.slane %v3023, 1
          %v3057 = vsel %vm433, %v3054, %v3056
          %v3058 = vrot.slane %v3024, 1
          %v3059 = vsel %vm433, %v3056, %v3058
          %v3060 = vrot.slane %v3025, 1
          %v3061 = vsel %vm433, %v3058, %v3060
          %3062 = vrot.lane.b32.xlu0 %v3047, 112
          %v3063 = vpop.permute.xlu0 %3062
          %3064 = vrot.lane.b32.xlu0 %v3049, 112
          %v3065 = vpop.permute.xlu0 %3064
          %3066 = vrot.lane.b32.xlu0 %v3051, 112
          %v3067 = vpop.permute.xlu0 %3066
          %3068 = vrot.lane.b32.xlu0 %v3053, 112
          %v3069 = vpop.permute.xlu0 %3068
          %3070 = vrot.lane.b32.xlu0 %v3055, 112
          %v3071 = vpop.permute.xlu0 %3070
          %3072 = vrot.lane.b32.xlu0 %v3057, 112
          %v3073 = vpop.permute.xlu0 %3072
          %3074 = vrot.lane.b32.xlu0 %v3059, 112
          %v3075 = vpop.permute.xlu0 %3074
          %3076 = vrot.lane.b32.xlu0 %v3061, 112
          %v3077 = vpop.permute.xlu0 %3076
          %3078 = vrot.lane.b32.xlu0 %v3060, 112
          %v3079 = vpop.permute.xlu0 %3078
          %v3089 = vadd.f32 %v3027, %v3063
          %v3090 = vadd.f32 %v3028, %v3065
          %v3091 = vadd.f32 %v3029, %v3067
          %v3092 = vadd.f32 %v3030, %v3069
          %v3093 = vadd.f32 %v3031, %v3071
          %v3094 = vadd.f32 %v3032, %v3073
          %v3095 = vadd.f32 %v3033, %v3075
          %v3096 = vadd.f32 %v3034, %v3077
          %v3097 = vadd.f32 %v3035, %v3079
          %v3098 = vrot.slane %v3017, 2
          %v3099 = vrot.slane %v3018, 2
          %v3100 = vsel %vm487, %v3098, %v3099
          %v3101 = vrot.slane %v3019, 2
          %v3102 = vsel %vm487, %v3099, %v3101
          %v3103 = vrot.slane %v3020, 2
          %v3104 = vsel %vm487, %v3101, %v3103
          %v3105 = vrot.slane %v3021, 2
          %v3106 = vsel %vm487, %v3103, %v3105
          %v3107 = vrot.slane %v3022, 2
          %v3108 = vsel %vm487, %v3105, %v3107
          %v3109 = vrot.slane %v3023, 2
          %v3110 = vsel %vm487, %v3107, %v3109
          %v3111 = vrot.slane %v3024, 2
          %v3112 = vsel %vm487, %v3109, %v3111
          %v3113 = vrot.slane %v3025, 2
          %v3114 = vsel %vm487, %v3111, %v3113
          %3115 = vrot.lane.b32.xlu0 %v3100, 96
          %v3116 = vpop.permute.xlu0 %3115
          %3117 = vrot.lane.b32.xlu0 %v3102, 96
          %v3118 = vpop.permute.xlu0 %3117
          %3119 = vrot.lane.b32.xlu0 %v3104, 96
          %v3120 = vpop.permute.xlu0 %3119
          %3121 = vrot.lane.b32.xlu0 %v3106, 96
          %v3122 = vpop.permute.xlu0 %3121
          %3123 = vrot.lane.b32.xlu0 %v3108, 96
          %v3124 = vpop.permute.xlu0 %3123
          %3125 = vrot.lane.b32.xlu0 %v3110, 96
          %v3126 = vpop.permute.xlu0 %3125
          %3127 = vrot.lane.b32.xlu0 %v3112, 96
          %v3128 = vpop.permute.xlu0 %3127
          %3129 = vrot.lane.b32.xlu0 %v3114, 96
          %v3130 = vpop.permute.xlu0 %3129
          %3131 = vrot.lane.b32.xlu0 %v3113, 96
          %v3132 = vpop.permute.xlu0 %3131
          %v3142 = vadd.f32 %v3089, %v3116
          %v3143 = vadd.f32 %v3090, %v3118
          %v3144 = vadd.f32 %v3091, %v3120
          %v3145 = vadd.f32 %v3092, %v3122
          %v3146 = vadd.f32 %v3093, %v3124
          %v3147 = vadd.f32 %v3094, %v3126
          %v3148 = vadd.f32 %v3095, %v3128
          %v3149 = vadd.f32 %v3096, %v3130
          %v3150 = vadd.f32 %v3097, %v3132
          %v3152 = vrot.slane %v3017, 3
          %v3153 = vrot.slane %v3018, 3
          %v3154 = vsel %vm542, %v3152, %v3153
          %v3155 = vrot.slane %v3019, 3
          %v3156 = vsel %vm542, %v3153, %v3155
          %v3157 = vrot.slane %v3020, 3
          %v3158 = vsel %vm542, %v3155, %v3157
          %v3159 = vrot.slane %v3021, 3
          %v3160 = vsel %vm542, %v3157, %v3159
          %v3161 = vrot.slane %v3022, 3
          %v3162 = vsel %vm542, %v3159, %v3161
          %v3163 = vrot.slane %v3023, 3
          %v3164 = vsel %vm542, %v3161, %v3163
          %v3165 = vrot.slane %v3024, 3
          %v3166 = vsel %vm542, %v3163, %v3165
          %v3167 = vrot.slane %v3025, 3
          %v3168 = vsel %vm542, %v3165, %v3167
          %v3169 = vrot.slane %v3026, 3
          %v3170 = vsel %vm542, %v3167, %v3169
          %3171 = vrot.lane.b32.xlu0 %v3154, 80
          %v3172 = vpop.permute.xlu0 %3171
          %3173 = vrot.lane.b32.xlu0 %v3156, 80
          %v3174 = vpop.permute.xlu0 %3173
          %3175 = vrot.lane.b32.xlu0 %v3158, 80
          %v3176 = vpop.permute.xlu0 %3175
          %3177 = vrot.lane.b32.xlu0 %v3160, 80
          %v3178 = vpop.permute.xlu0 %3177
          %3179 = vrot.lane.b32.xlu0 %v3162, 80
          %v3180 = vpop.permute.xlu0 %3179
          %3181 = vrot.lane.b32.xlu0 %v3164, 80
          %v3182 = vpop.permute.xlu0 %3181
          %3183 = vrot.lane.b32.xlu0 %v3166, 80
          %v3184 = vpop.permute.xlu0 %3183
          %3185 = vrot.lane.b32.xlu0 %v3168, 80
          %v3186 = vpop.permute.xlu0 %3185
          %3187 = vrot.lane.b32.xlu0 %v3170, 80
          %v3188 = vpop.permute.xlu0 %3187
          %v3198 = vadd.f32 %v3142, %v3172
          %v3199 = vadd.f32 %v3143, %v3174
          %v3200 = vadd.f32 %v3144, %v3176
          %v3201 = vadd.f32 %v3145, %v3178
          %v3202 = vadd.f32 %v3146, %v3180
          %v3203 = vadd.f32 %v3147, %v3182
          %v3204 = vadd.f32 %v3148, %v3184
          %v3205 = vadd.f32 %v3149, %v3186
          %v3206 = vadd.f32 %v3150, %v3188
          %v3207 = vrot.slane %v3017, 4
          %v3208 = vrot.slane %v3018, 4
          %v3209 = vsel %vm598, %v3207, %v3208
          %v3210 = vrot.slane %v3019, 4
          %v3211 = vsel %vm598, %v3208, %v3210
          %v3212 = vrot.slane %v3020, 4
          %v3213 = vsel %vm598, %v3210, %v3212
          %v3214 = vrot.slane %v3021, 4
          %v3215 = vsel %vm598, %v3212, %v3214
          %v3216 = vrot.slane %v3022, 4
          %v3217 = vsel %vm598, %v3214, %v3216
          %v3218 = vrot.slane %v3023, 4
          %v3219 = vsel %vm598, %v3216, %v3218
          %v3220 = vrot.slane %v3024, 4
          %v3221 = vsel %vm598, %v3218, %v3220
          %v3222 = vrot.slane %v3025, 4
          %v3223 = vsel %vm598, %v3220, %v3222
          %v3224 = vrot.slane %v3026, 4
          %v3225 = vsel %vm598, %v3222, %v3224
          %3226 = vrot.lane.b32.xlu0 %v3209, 64
          %v3227 = vpop.permute.xlu0 %3226
          %3228 = vrot.lane.b32.xlu0 %v3211, 64
          %v3229 = vpop.permute.xlu0 %3228
          %3230 = vrot.lane.b32.xlu0 %v3213, 64
          %v3231 = vpop.permute.xlu0 %3230
          %3232 = vrot.lane.b32.xlu0 %v3215, 64
          %v3233 = vpop.permute.xlu0 %3232
          %3234 = vrot.lane.b32.xlu0 %v3217, 64
          %v3235 = vpop.permute.xlu0 %3234
          %3236 = vrot.lane.b32.xlu0 %v3219, 64
          %v3237 = vpop.permute.xlu0 %3236
          %3238 = vrot.lane.b32.xlu0 %v3221, 64
          %v3239 = vpop.permute.xlu0 %3238
          %3240 = vrot.lane.b32.xlu0 %v3223, 64
          %v3241 = vpop.permute.xlu0 %3240
          %3242 = vrot.lane.b32.xlu0 %v3225, 64
          %v3243 = vpop.permute.xlu0 %3242
          %v3253 = vadd.f32 %v3198, %v3227
          %v3254 = vadd.f32 %v3199, %v3229
          %v3255 = vadd.f32 %v3200, %v3231
          %v3256 = vadd.f32 %v3201, %v3233
          %v3257 = vadd.f32 %v3202, %v3235
          %v3258 = vadd.f32 %v3203, %v3237
          %v3259 = vadd.f32 %v3204, %v3239
          %v3260 = vadd.f32 %v3205, %v3241
          %v3261 = vadd.f32 %v3206, %v3243
          %s3262 = sadd.s32 %s325, 9
          %s3263 = smul.u32 %s3262, 10
          %s3264 = smul.addr %s3263, 4
          %s3265 = scalar_lea.vmem %s266, %s3264 [#allocation2]
          %v3266 = vld [vmem:[%s3265] sm:$0xf]
          %v3267 = vld [vmem:[%s3265 + $0x4] sm:$0xf]
          %v3268 = vld [vmem:[%s3265 + $0x8] sm:$0xf]
          %v3269 = vld [vmem:[%s3265 + $0xc] sm:$0xf]
          %v3270 = vld [vmem:[%s3265 + $0x10] sm:$0xf]
          %v3271 = vld [vmem:[%s3265 + $0x14] sm:$0xf]
          %v3272 = vld [vmem:[%s3265 + $0x18] sm:$0xf]
          %v3273 = vld [vmem:[%s3265 + $0x1c] sm:$0xf]
          %v3274 = vld [vmem:[%s3265 + $0x20] sm:$0xf]
          %v3275 = vld [vmem:[%s3265 + $0x24] sm:$0x1]
          %s3276 = scalar_lea.vmem [#allocation5], 9
          %v3277 = vld [vmem:[%s3276] sm:$0x1]
          %v3278 = vunpack.c.l.bf16 %v3266
          %v3279 = vunpack.c.l.bf16 %v3267
          %v3280 = vunpack.c.l.bf16 %v3268
          %v3281 = vunpack.c.l.bf16 %v3269
          %v3282 = vunpack.c.l.bf16 %v3270
          %v3283 = vunpack.c.l.bf16 %v3271
          %v3284 = vunpack.c.l.bf16 %v3272
          %v3285 = vunpack.c.l.bf16 %v3273
          %v3286 = vunpack.c.l.bf16 %v3274
          %v3287 = vunpack.c.l.bf16 %v3275
          %v3288 = vunpack.c.l.bf16 %v3277
          %3290 = vset.pattern.permute.xlu0 0
          %3291 = vperm.xlu0 %3290, %v3278
          %v3292 = vpop.permute.xlu0 %3291
          %3295 = vset.pattern.permute.xlu0 0
          %3296 = vperm.xlu0 %3295, %v3279
          %v3297 = vpop.permute.xlu0 %3296
          %3300 = vset.pattern.permute.xlu0 0
          %3301 = vperm.xlu0 %3300, %v3280
          %v3302 = vpop.permute.xlu0 %3301
          %3305 = vset.pattern.permute.xlu0 0
          %3306 = vperm.xlu0 %3305, %v3281
          %v3307 = vpop.permute.xlu0 %3306
          %3310 = vset.pattern.permute.xlu0 0
          %3311 = vperm.xlu0 %3310, %v3282
          %v3312 = vpop.permute.xlu0 %3311
          %3315 = vset.pattern.permute.xlu0 0
          %3316 = vperm.xlu0 %3315, %v3283
          %v3317 = vpop.permute.xlu0 %3316
          %3320 = vset.pattern.permute.xlu0 0
          %3321 = vperm.xlu0 %3320, %v3284
          %v3322 = vpop.permute.xlu0 %3321
          %3325 = vset.pattern.permute.xlu0 0
          %3326 = vperm.xlu0 %3325, %v3285
          %v3327 = vpop.permute.xlu0 %3326
          %3330 = vset.pattern.permute.xlu0 0
          %3331 = vperm.xlu0 %3330, %v3286
          %v3332 = vpop.permute.xlu0 %3331
          %3335 = vset.pattern.permute.xlu0 0
          %3336 = vperm.xlu0 %3335, %v3287
          %v3337 = vpop.permute.xlu0 %3336
          %v3339 = vlaneseq
          %v3340 = vshrl.u32 %v3339, 7
          %v3341 = vsub.s32 0, %v3340
          %v3342 = vrot.slane %v3288, %v3341
          %v3343 = vmul.f32 %v3292, %v3342
          %v3344 = vmul.f32 %v3297, %v3342
          %v3345 = vmul.f32 %v3302, %v3342
          %v3346 = vmul.f32 %v3307, %v3342
          %v3347 = vmul.f32 %v3312, %v3342
          %v3348 = vmul.f32 %v3317, %v3342
          %v3349 = vmul.f32 %v3322, %v3342
          %v3350 = vmul.f32 %v3327, %v3342
          %v3351 = vmul.f32 %v3332, %v3342
          %v3352 = vmul.f32 %v3337, %v3342
          %v3353 = vadd.f32 %v3253, %v3343
          %v3354 = vadd.f32 %v3254, %v3344
          %v3355 = vadd.f32 %v3255, %v3345
          %v3356 = vadd.f32 %v3256, %v3346
          %v3357 = vadd.f32 %v3257, %v3347
          %v3358 = vadd.f32 %v3258, %v3348
          %v3359 = vadd.f32 %v3259, %v3349
          %v3360 = vadd.f32 %v3260, %v3350
          %v3361 = vadd.f32 %v3261, %v3351
          %v3371 = vrot.slane %v3343, 1
          %v3372 = vrot.slane %v3344, 1
          %v3373 = vsel %vm433, %v3371, %v3372
          %v3374 = vrot.slane %v3345, 1
          %v3375 = vsel %vm433, %v3372, %v3374
          %v3376 = vrot.slane %v3346, 1
          %v3377 = vsel %vm433, %v3374, %v3376
          %v3378 = vrot.slane %v3347, 1
          %v3379 = vsel %vm433, %v3376, %v3378
          %v3380 = vrot.slane %v3348, 1
          %v3381 = vsel %vm433, %v3378, %v3380
          %v3382 = vrot.slane %v3349, 1
          %v3383 = vsel %vm433, %v3380, %v3382
          %v3384 = vrot.slane %v3350, 1
          %v3385 = vsel %vm433, %v3382, %v3384
          %v3386 = vrot.slane %v3351, 1
          %v3387 = vsel %vm433, %v3384, %v3386
          %3388 = vrot.lane.b32.xlu0 %v3373, 112
          %v3389 = vpop.permute.xlu0 %3388
          %3390 = vrot.lane.b32.xlu0 %v3375, 112
          %v3391 = vpop.permute.xlu0 %3390
          %3392 = vrot.lane.b32.xlu0 %v3377, 112
          %v3393 = vpop.permute.xlu0 %3392
          %3394 = vrot.lane.b32.xlu0 %v3379, 112
          %v3395 = vpop.permute.xlu0 %3394
          %3396 = vrot.lane.b32.xlu0 %v3381, 112
          %v3397 = vpop.permute.xlu0 %3396
          %3398 = vrot.lane.b32.xlu0 %v3383, 112
          %v3399 = vpop.permute.xlu0 %3398
          %3400 = vrot.lane.b32.xlu0 %v3385, 112
          %v3401 = vpop.permute.xlu0 %3400
          %3402 = vrot.lane.b32.xlu0 %v3387, 112
          %v3403 = vpop.permute.xlu0 %3402
          %3404 = vrot.lane.b32.xlu0 %v3386, 112
          %v3405 = vpop.permute.xlu0 %3404
          %v3415 = vadd.f32 %v3353, %v3389
          %v3416 = vadd.f32 %v3354, %v3391
          %v3417 = vadd.f32 %v3355, %v3393
          %v3418 = vadd.f32 %v3356, %v3395
          %v3419 = vadd.f32 %v3357, %v3397
          %v3420 = vadd.f32 %v3358, %v3399
          %v3421 = vadd.f32 %v3359, %v3401
          %v3422 = vadd.f32 %v3360, %v3403
          %v3423 = vadd.f32 %v3361, %v3405
          %v3424 = vrot.slane %v3343, 2
          %v3425 = vrot.slane %v3344, 2
          %v3426 = vsel %vm487, %v3424, %v3425
          %v3427 = vrot.slane %v3345, 2
          %v3428 = vsel %vm487, %v3425, %v3427
          %v3429 = vrot.slane %v3346, 2
          %v3430 = vsel %vm487, %v3427, %v3429
          %v3431 = vrot.slane %v3347, 2
          %v3432 = vsel %vm487, %v3429, %v3431
          %v3433 = vrot.slane %v3348, 2
          %v3434 = vsel %vm487, %v3431, %v3433
          %v3435 = vrot.slane %v3349, 2
          %v3436 = vsel %vm487, %v3433, %v3435
          %v3437 = vrot.slane %v3350, 2
          %v3438 = vsel %vm487, %v3435, %v3437
          %v3439 = vrot.slane %v3351, 2
          %v3440 = vsel %vm487, %v3437, %v3439
          %3441 = vrot.lane.b32.xlu0 %v3426, 96
          %v3442 = vpop.permute.xlu0 %3441
          %3443 = vrot.lane.b32.xlu0 %v3428, 96
          %v3444 = vpop.permute.xlu0 %3443
          %3445 = vrot.lane.b32.xlu0 %v3430, 96
          %v3446 = vpop.permute.xlu0 %3445
          %3447 = vrot.lane.b32.xlu0 %v3432, 96
          %v3448 = vpop.permute.xlu0 %3447
          %3449 = vrot.lane.b32.xlu0 %v3434, 96
          %v3450 = vpop.permute.xlu0 %3449
          %3451 = vrot.lane.b32.xlu0 %v3436, 96
          %v3452 = vpop.permute.xlu0 %3451
          %3453 = vrot.lane.b32.xlu0 %v3438, 96
          %v3454 = vpop.permute.xlu0 %3453
          %3455 = vrot.lane.b32.xlu0 %v3440, 96
          %v3456 = vpop.permute.xlu0 %3455
          %3457 = vrot.lane.b32.xlu0 %v3439, 96
          %v3458 = vpop.permute.xlu0 %3457
          %v3468 = vadd.f32 %v3415, %v3442
          %v3469 = vadd.f32 %v3416, %v3444
          %v3470 = vadd.f32 %v3417, %v3446
          %v3471 = vadd.f32 %v3418, %v3448
          %v3472 = vadd.f32 %v3419, %v3450
          %v3473 = vadd.f32 %v3420, %v3452
          %v3474 = vadd.f32 %v3421, %v3454
          %v3475 = vadd.f32 %v3422, %v3456
          %v3476 = vadd.f32 %v3423, %v3458
          %v3478 = vrot.slane %v3343, 3
          %v3479 = vrot.slane %v3344, 3
          %v3480 = vsel %vm542, %v3478, %v3479
          %v3481 = vrot.slane %v3345, 3
          %v3482 = vsel %vm542, %v3479, %v3481
          %v3483 = vrot.slane %v3346, 3
          %v3484 = vsel %vm542, %v3481, %v3483
          %v3485 = vrot.slane %v3347, 3
          %v3486 = vsel %vm542, %v3483, %v3485
          %v3487 = vrot.slane %v3348, 3
          %v3488 = vsel %vm542, %v3485, %v3487
          %v3489 = vrot.slane %v3349, 3
          %v3490 = vsel %vm542, %v3487, %v3489
          %v3491 = vrot.slane %v3350, 3
          %v3492 = vsel %vm542, %v3489, %v3491
          %v3493 = vrot.slane %v3351, 3
          %v3494 = vsel %vm542, %v3491, %v3493
          %v3495 = vrot.slane %v3352, 3
          %v3496 = vsel %vm542, %v3493, %v3495
          %3497 = vrot.lane.b32.xlu0 %v3480, 80
          %v3498 = vpop.permute.xlu0 %3497
          %3499 = vrot.lane.b32.xlu0 %v3482, 80
          %v3500 = vpop.permute.xlu0 %3499
          %3501 = vrot.lane.b32.xlu0 %v3484, 80
          %v3502 = vpop.permute.xlu0 %3501
          %3503 = vrot.lane.b32.xlu0 %v3486, 80
          %v3504 = vpop.permute.xlu0 %3503
          %3505 = vrot.lane.b32.xlu0 %v3488, 80
          %v3506 = vpop.permute.xlu0 %3505
          %3507 = vrot.lane.b32.xlu0 %v3490, 80
          %v3508 = vpop.permute.xlu0 %3507
          %3509 = vrot.lane.b32.xlu0 %v3492, 80
          %v3510 = vpop.permute.xlu0 %3509
          %3511 = vrot.lane.b32.xlu0 %v3494, 80
          %v3512 = vpop.permute.xlu0 %3511
          %3513 = vrot.lane.b32.xlu0 %v3496, 80
          %v3514 = vpop.permute.xlu0 %3513
          %v3524 = vadd.f32 %v3468, %v3498
          %v3525 = vadd.f32 %v3469, %v3500
          %v3526 = vadd.f32 %v3470, %v3502
          %v3527 = vadd.f32 %v3471, %v3504
          %v3528 = vadd.f32 %v3472, %v3506
          %v3529 = vadd.f32 %v3473, %v3508
          %v3530 = vadd.f32 %v3474, %v3510
          %v3531 = vadd.f32 %v3475, %v3512
          %v3532 = vadd.f32 %v3476, %v3514
          %v3533 = vrot.slane %v3343, 4
          %v3534 = vrot.slane %v3344, 4
          %v3535 = vsel %vm598, %v3533, %v3534
          %v3536 = vrot.slane %v3345, 4
          %v3537 = vsel %vm598, %v3534, %v3536
          %v3538 = vrot.slane %v3346, 4
          %v3539 = vsel %vm598, %v3536, %v3538
          %v3540 = vrot.slane %v3347, 4
          %v3541 = vsel %vm598, %v3538, %v3540
          %v3542 = vrot.slane %v3348, 4
          %v3543 = vsel %vm598, %v3540, %v3542
          %v3544 = vrot.slane %v3349, 4
          %v3545 = vsel %vm598, %v3542, %v3544
          %v3546 = vrot.slane %v3350, 4
          %v3547 = vsel %vm598, %v3544, %v3546
          %v3548 = vrot.slane %v3351, 4
          %v3549 = vsel %vm598, %v3546, %v3548
          %v3550 = vrot.slane %v3352, 4
          %v3551 = vsel %vm598, %v3548, %v3550
          %3552 = vrot.lane.b32.xlu0 %v3535, 64
          %v3553 = vpop.permute.xlu0 %3552
          %3554 = vrot.lane.b32.xlu0 %v3537, 64
          %v3555 = vpop.permute.xlu0 %3554
          %3556 = vrot.lane.b32.xlu0 %v3539, 64
          %v3557 = vpop.permute.xlu0 %3556
          %3558 = vrot.lane.b32.xlu0 %v3541, 64
          %v3559 = vpop.permute.xlu0 %3558
          %3560 = vrot.lane.b32.xlu0 %v3543, 64
          %v3561 = vpop.permute.xlu0 %3560
          %3562 = vrot.lane.b32.xlu0 %v3545, 64
          %v3563 = vpop.permute.xlu0 %3562
          %3564 = vrot.lane.b32.xlu0 %v3547, 64
          %v3565 = vpop.permute.xlu0 %3564
          %3566 = vrot.lane.b32.xlu0 %v3549, 64
          %v3567 = vpop.permute.xlu0 %3566
          %3568 = vrot.lane.b32.xlu0 %v3551, 64
          %v3569 = vpop.permute.xlu0 %3568
          %v3579 = vadd.f32 %v3524, %v3553
          %v3580 = vadd.f32 %v3525, %v3555
          %v3581 = vadd.f32 %v3526, %v3557
          %v3582 = vadd.f32 %v3527, %v3559
          %v3583 = vadd.f32 %v3528, %v3561
          %v3584 = vadd.f32 %v3529, %v3563
          %v3585 = vadd.f32 %v3530, %v3565
          %v3586 = vadd.f32 %v3531, %v3567
          %v3587 = vadd.f32 %v3532, %v3569
          %s3588 = sadd.s32 %s325, 10
          %s3589 = smul.u32 %s3588, 10
          %s3590 = smul.addr %s3589, 4
          %s3591 = scalar_lea.vmem %s266, %s3590 [#allocation2]
          %v3592 = vld [vmem:[%s3591] sm:$0xf]
          %v3593 = vld [vmem:[%s3591 + $0x4] sm:$0xf]
          %v3594 = vld [vmem:[%s3591 + $0x8] sm:$0xf]
          %v3595 = vld [vmem:[%s3591 + $0xc] sm:$0xf]
          %v3596 = vld [vmem:[%s3591 + $0x10] sm:$0xf]
          %v3597 = vld [vmem:[%s3591 + $0x14] sm:$0xf]
          %v3598 = vld [vmem:[%s3591 + $0x18] sm:$0xf]
          %v3599 = vld [vmem:[%s3591 + $0x1c] sm:$0xf]
          %v3600 = vld [vmem:[%s3591 + $0x20] sm:$0xf]
          %v3601 = vld [vmem:[%s3591 + $0x24] sm:$0x1]
          %s3602 = scalar_lea.vmem [#allocation5], 10
          %v3603 = vld [vmem:[%s3602] sm:$0x1]
          %v3604 = vunpack.c.l.bf16 %v3592
          %v3605 = vunpack.c.l.bf16 %v3593
          %v3606 = vunpack.c.l.bf16 %v3594
          %v3607 = vunpack.c.l.bf16 %v3595
          %v3608 = vunpack.c.l.bf16 %v3596
          %v3609 = vunpack.c.l.bf16 %v3597
          %v3610 = vunpack.c.l.bf16 %v3598
          %v3611 = vunpack.c.l.bf16 %v3599
          %v3612 = vunpack.c.l.bf16 %v3600
          %v3613 = vunpack.c.l.bf16 %v3601
          %v3614 = vunpack.c.l.bf16 %v3603
          %3616 = vset.pattern.permute.xlu0 0
          %3617 = vperm.xlu0 %3616, %v3604
          %v3618 = vpop.permute.xlu0 %3617
          %3621 = vset.pattern.permute.xlu0 0
          %3622 = vperm.xlu0 %3621, %v3605
          %v3623 = vpop.permute.xlu0 %3622
          %3626 = vset.pattern.permute.xlu0 0
          %3627 = vperm.xlu0 %3626, %v3606
          %v3628 = vpop.permute.xlu0 %3627
          %3631 = vset.pattern.permute.xlu0 0
          %3632 = vperm.xlu0 %3631, %v3607
          %v3633 = vpop.permute.xlu0 %3632
          %3636 = vset.pattern.permute.xlu0 0
          %3637 = vperm.xlu0 %3636, %v3608
          %v3638 = vpop.permute.xlu0 %3637
          %3641 = vset.pattern.permute.xlu0 0
          %3642 = vperm.xlu0 %3641, %v3609
          %v3643 = vpop.permute.xlu0 %3642
          %3646 = vset.pattern.permute.xlu0 0
          %3647 = vperm.xlu0 %3646, %v3610
          %v3648 = vpop.permute.xlu0 %3647
          %3651 = vset.pattern.permute.xlu0 0
          %3652 = vperm.xlu0 %3651, %v3611
          %v3653 = vpop.permute.xlu0 %3652
          %3656 = vset.pattern.permute.xlu0 0
          %3657 = vperm.xlu0 %3656, %v3612
          %v3658 = vpop.permute.xlu0 %3657
          %3661 = vset.pattern.permute.xlu0 0
          %3662 = vperm.xlu0 %3661, %v3613
          %v3663 = vpop.permute.xlu0 %3662
          %v3665 = vlaneseq
          %v3666 = vshrl.u32 %v3665, 7
          %v3667 = vsub.s32 0, %v3666
          %v3668 = vrot.slane %v3614, %v3667
          %v3669 = vmul.f32 %v3618, %v3668
          %v3670 = vmul.f32 %v3623, %v3668
          %v3671 = vmul.f32 %v3628, %v3668
          %v3672 = vmul.f32 %v3633, %v3668
          %v3673 = vmul.f32 %v3638, %v3668
          %v3674 = vmul.f32 %v3643, %v3668
          %v3675 = vmul.f32 %v3648, %v3668
          %v3676 = vmul.f32 %v3653, %v3668
          %v3677 = vmul.f32 %v3658, %v3668
          %v3678 = vmul.f32 %v3663, %v3668
          %v3679 = vadd.f32 %v3579, %v3669
          %v3680 = vadd.f32 %v3580, %v3670
          %v3681 = vadd.f32 %v3581, %v3671
          %v3682 = vadd.f32 %v3582, %v3672
          %v3683 = vadd.f32 %v3583, %v3673
          %v3684 = vadd.f32 %v3584, %v3674
          %v3685 = vadd.f32 %v3585, %v3675
          %v3686 = vadd.f32 %v3586, %v3676
          %v3687 = vadd.f32 %v3587, %v3677
          %v3697 = vrot.slane %v3669, 1
          %v3698 = vrot.slane %v3670, 1
          %v3699 = vsel %vm433, %v3697, %v3698
          %v3700 = vrot.slane %v3671, 1
          %v3701 = vsel %vm433, %v3698, %v3700
          %v3702 = vrot.slane %v3672, 1
          %v3703 = vsel %vm433, %v3700, %v3702
          %v3704 = vrot.slane %v3673, 1
          %v3705 = vsel %vm433, %v3702, %v3704
          %v3706 = vrot.slane %v3674, 1
          %v3707 = vsel %vm433, %v3704, %v3706
          %v3708 = vrot.slane %v3675, 1
          %v3709 = vsel %vm433, %v3706, %v3708
          %v3710 = vrot.slane %v3676, 1
          %v3711 = vsel %vm433, %v3708, %v3710
          %v3712 = vrot.slane %v3677, 1
          %v3713 = vsel %vm433, %v3710, %v3712
          %3714 = vrot.lane.b32.xlu0 %v3699, 112
          %v3715 = vpop.permute.xlu0 %3714
          %3716 = vrot.lane.b32.xlu0 %v3701, 112
          %v3717 = vpop.permute.xlu0 %3716
          %3718 = vrot.lane.b32.xlu0 %v3703, 112
          %v3719 = vpop.permute.xlu0 %3718
          %3720 = vrot.lane.b32.xlu0 %v3705, 112
          %v3721 = vpop.permute.xlu0 %3720
          %3722 = vrot.lane.b32.xlu0 %v3707, 112
          %v3723 = vpop.permute.xlu0 %3722
          %3724 = vrot.lane.b32.xlu0 %v3709, 112
          %v3725 = vpop.permute.xlu0 %3724
          %3726 = vrot.lane.b32.xlu0 %v3711, 112
          %v3727 = vpop.permute.xlu0 %3726
          %3728 = vrot.lane.b32.xlu0 %v3713, 112
          %v3729 = vpop.permute.xlu0 %3728
          %3730 = vrot.lane.b32.xlu0 %v3712, 112
          %v3731 = vpop.permute.xlu0 %3730
          %v3741 = vadd.f32 %v3679, %v3715
          %v3742 = vadd.f32 %v3680, %v3717
          %v3743 = vadd.f32 %v3681, %v3719
          %v3744 = vadd.f32 %v3682, %v3721
          %v3745 = vadd.f32 %v3683, %v3723
          %v3746 = vadd.f32 %v3684, %v3725
          %v3747 = vadd.f32 %v3685, %v3727
          %v3748 = vadd.f32 %v3686, %v3729
          %v3749 = vadd.f32 %v3687, %v3731
          %v3750 = vrot.slane %v3669, 2
          %v3751 = vrot.slane %v3670, 2
          %v3752 = vsel %vm487, %v3750, %v3751
          %v3753 = vrot.slane %v3671, 2
          %v3754 = vsel %vm487, %v3751, %v3753
          %v3755 = vrot.slane %v3672, 2
          %v3756 = vsel %vm487, %v3753, %v3755
          %v3757 = vrot.slane %v3673, 2
          %v3758 = vsel %vm487, %v3755, %v3757
          %v3759 = vrot.slane %v3674, 2
          %v3760 = vsel %vm487, %v3757, %v3759
          %v3761 = vrot.slane %v3675, 2
          %v3762 = vsel %vm487, %v3759, %v3761
          %v3763 = vrot.slane %v3676, 2
          %v3764 = vsel %vm487, %v3761, %v3763
          %v3765 = vrot.slane %v3677, 2
          %v3766 = vsel %vm487, %v3763, %v3765
          %3767 = vrot.lane.b32.xlu0 %v3752, 96
          %v3768 = vpop.permute.xlu0 %3767
          %3769 = vrot.lane.b32.xlu0 %v3754, 96
          %v3770 = vpop.permute.xlu0 %3769
          %3771 = vrot.lane.b32.xlu0 %v3756, 96
          %v3772 = vpop.permute.xlu0 %3771
          %3773 = vrot.lane.b32.xlu0 %v3758, 96
          %v3774 = vpop.permute.xlu0 %3773
          %3775 = vrot.lane.b32.xlu0 %v3760, 96
          %v3776 = vpop.permute.xlu0 %3775
          %3777 = vrot.lane.b32.xlu0 %v3762, 96
          %v3778 = vpop.permute.xlu0 %3777
          %3779 = vrot.lane.b32.xlu0 %v3764, 96
          %v3780 = vpop.permute.xlu0 %3779
          %3781 = vrot.lane.b32.xlu0 %v3766, 96
          %v3782 = vpop.permute.xlu0 %3781
          %3783 = vrot.lane.b32.xlu0 %v3765, 96
          %v3784 = vpop.permute.xlu0 %3783
          %v3794 = vadd.f32 %v3741, %v3768
          %v3795 = vadd.f32 %v3742, %v3770
          %v3796 = vadd.f32 %v3743, %v3772
          %v3797 = vadd.f32 %v3744, %v3774
          %v3798 = vadd.f32 %v3745, %v3776
          %v3799 = vadd.f32 %v3746, %v3778
          %v3800 = vadd.f32 %v3747, %v3780
          %v3801 = vadd.f32 %v3748, %v3782
          %v3802 = vadd.f32 %v3749, %v3784
          %v3804 = vrot.slane %v3669, 3
          %v3805 = vrot.slane %v3670, 3
          %v3806 = vsel %vm542, %v3804, %v3805
          %v3807 = vrot.slane %v3671, 3
          %v3808 = vsel %vm542, %v3805, %v3807
          %v3809 = vrot.slane %v3672, 3
          %v3810 = vsel %vm542, %v3807, %v3809
          %v3811 = vrot.slane %v3673, 3
          %v3812 = vsel %vm542, %v3809, %v3811
          %v3813 = vrot.slane %v3674, 3
          %v3814 = vsel %vm542, %v3811, %v3813
          %v3815 = vrot.slane %v3675, 3
          %v3816 = vsel %vm542, %v3813, %v3815
          %v3817 = vrot.slane %v3676, 3
          %v3818 = vsel %vm542, %v3815, %v3817
          %v3819 = vrot.slane %v3677, 3
          %v3820 = vsel %vm542, %v3817, %v3819
          %v3821 = vrot.slane %v3678, 3
          %v3822 = vsel %vm542, %v3819, %v3821
          %3823 = vrot.lane.b32.xlu0 %v3806, 80
          %v3824 = vpop.permute.xlu0 %3823
          %3825 = vrot.lane.b32.xlu0 %v3808, 80
          %v3826 = vpop.permute.xlu0 %3825
          %3827 = vrot.lane.b32.xlu0 %v3810, 80
          %v3828 = vpop.permute.xlu0 %3827
          %3829 = vrot.lane.b32.xlu0 %v3812, 80
          %v3830 = vpop.permute.xlu0 %3829
          %3831 = vrot.lane.b32.xlu0 %v3814, 80
          %v3832 = vpop.permute.xlu0 %3831
          %3833 = vrot.lane.b32.xlu0 %v3816, 80
          %v3834 = vpop.permute.xlu0 %3833
          %3835 = vrot.lane.b32.xlu0 %v3818, 80
          %v3836 = vpop.permute.xlu0 %3835
          %3837 = vrot.lane.b32.xlu0 %v3820, 80
          %v3838 = vpop.permute.xlu0 %3837
          %3839 = vrot.lane.b32.xlu0 %v3822, 80
          %v3840 = vpop.permute.xlu0 %3839
          %v3850 = vadd.f32 %v3794, %v3824
          %v3851 = vadd.f32 %v3795, %v3826
          %v3852 = vadd.f32 %v3796, %v3828
          %v3853 = vadd.f32 %v3797, %v3830
          %v3854 = vadd.f32 %v3798, %v3832
          %v3855 = vadd.f32 %v3799, %v3834
          %v3856 = vadd.f32 %v3800, %v3836
          %v3857 = vadd.f32 %v3801, %v3838
          %v3858 = vadd.f32 %v3802, %v3840
          %v3859 = vrot.slane %v3669, 4
          %v3860 = vrot.slane %v3670, 4
          %v3861 = vsel %vm598, %v3859, %v3860
          %v3862 = vrot.slane %v3671, 4
          %v3863 = vsel %vm598, %v3860, %v3862
          %v3864 = vrot.slane %v3672, 4
          %v3865 = vsel %vm598, %v3862, %v3864
          %v3866 = vrot.slane %v3673, 4
          %v3867 = vsel %vm598, %v3864, %v3866
          %v3868 = vrot.slane %v3674, 4
          %v3869 = vsel %vm598, %v3866, %v3868
          %v3870 = vrot.slane %v3675, 4
          %v3871 = vsel %vm598, %v3868, %v3870
          %v3872 = vrot.slane %v3676, 4
          %v3873 = vsel %vm598, %v3870, %v3872
          %v3874 = vrot.slane %v3677, 4
          %v3875 = vsel %vm598, %v3872, %v3874
          %v3876 = vrot.slane %v3678, 4
          %v3877 = vsel %vm598, %v3874, %v3876
          %3878 = vrot.lane.b32.xlu0 %v3861, 64
          %v3879 = vpop.permute.xlu0 %3878
          %3880 = vrot.lane.b32.xlu0 %v3863, 64
          %v3881 = vpop.permute.xlu0 %3880
          %3882 = vrot.lane.b32.xlu0 %v3865, 64
          %v3883 = vpop.permute.xlu0 %3882
          %3884 = vrot.lane.b32.xlu0 %v3867, 64
          %v3885 = vpop.permute.xlu0 %3884
          %3886 = vrot.lane.b32.xlu0 %v3869, 64
          %v3887 = vpop.permute.xlu0 %3886
          %3888 = vrot.lane.b32.xlu0 %v3871, 64
          %v3889 = vpop.permute.xlu0 %3888
          %3890 = vrot.lane.b32.xlu0 %v3873, 64
          %v3891 = vpop.permute.xlu0 %3890
          %3892 = vrot.lane.b32.xlu0 %v3875, 64
          %v3893 = vpop.permute.xlu0 %3892
          %3894 = vrot.lane.b32.xlu0 %v3877, 64
          %v3895 = vpop.permute.xlu0 %3894
          %v3905 = vadd.f32 %v3850, %v3879
          %v3906 = vadd.f32 %v3851, %v3881
          %v3907 = vadd.f32 %v3852, %v3883
          %v3908 = vadd.f32 %v3853, %v3885
          %v3909 = vadd.f32 %v3854, %v3887
          %v3910 = vadd.f32 %v3855, %v3889
          %v3911 = vadd.f32 %v3856, %v3891
          %v3912 = vadd.f32 %v3857, %v3893
          %v3913 = vadd.f32 %v3858, %v3895
          %s3914 = sadd.s32 %s325, 11
          %s3915 = smul.u32 %s3914, 10
          %s3916 = smul.addr %s3915, 4
          %s3917 = scalar_lea.vmem %s266, %s3916 [#allocation2]
          %v3918 = vld [vmem:[%s3917] sm:$0xf]
          %v3919 = vld [vmem:[%s3917 + $0x4] sm:$0xf]
          %v3920 = vld [vmem:[%s3917 + $0x8] sm:$0xf]
          %v3921 = vld [vmem:[%s3917 + $0xc] sm:$0xf]
          %v3922 = vld [vmem:[%s3917 + $0x10] sm:$0xf]
          %v3923 = vld [vmem:[%s3917 + $0x14] sm:$0xf]
          %v3924 = vld [vmem:[%s3917 + $0x18] sm:$0xf]
          %v3925 = vld [vmem:[%s3917 + $0x1c] sm:$0xf]
          %v3926 = vld [vmem:[%s3917 + $0x20] sm:$0xf]
          %v3927 = vld [vmem:[%s3917 + $0x24] sm:$0x1]
          %s3928 = scalar_lea.vmem [#allocation5], 11
          %v3929 = vld [vmem:[%s3928] sm:$0x1]
          %v3930 = vunpack.c.l.bf16 %v3918
          %v3931 = vunpack.c.l.bf16 %v3919
          %v3932 = vunpack.c.l.bf16 %v3920
          %v3933 = vunpack.c.l.bf16 %v3921
          %v3934 = vunpack.c.l.bf16 %v3922
          %v3935 = vunpack.c.l.bf16 %v3923
          %v3936 = vunpack.c.l.bf16 %v3924
          %v3937 = vunpack.c.l.bf16 %v3925
          %v3938 = vunpack.c.l.bf16 %v3926
          %v3939 = vunpack.c.l.bf16 %v3927
          %v3940 = vunpack.c.l.bf16 %v3929
          %3942 = vset.pattern.permute.xlu0 0
          %3943 = vperm.xlu0 %3942, %v3930
          %v3944 = vpop.permute.xlu0 %3943
          %3947 = vset.pattern.permute.xlu0 0
          %3948 = vperm.xlu0 %3947, %v3931
          %v3949 = vpop.permute.xlu0 %3948
          %3952 = vset.pattern.permute.xlu0 0
          %3953 = vperm.xlu0 %3952, %v3932
          %v3954 = vpop.permute.xlu0 %3953
          %3957 = vset.pattern.permute.xlu0 0
          %3958 = vperm.xlu0 %3957, %v3933
          %v3959 = vpop.permute.xlu0 %3958
          %3962 = vset.pattern.permute.xlu0 0
          %3963 = vperm.xlu0 %3962, %v3934
          %v3964 = vpop.permute.xlu0 %3963
          %3967 = vset.pattern.permute.xlu0 0
          %3968 = vperm.xlu0 %3967, %v3935
          %v3969 = vpop.permute.xlu0 %3968
          %3972 = vset.pattern.permute.xlu0 0
          %3973 = vperm.xlu0 %3972, %v3936
          %v3974 = vpop.permute.xlu0 %3973
          %3977 = vset.pattern.permute.xlu0 0
          %3978 = vperm.xlu0 %3977, %v3937
          %v3979 = vpop.permute.xlu0 %3978
          %3982 = vset.pattern.permute.xlu0 0
          %3983 = vperm.xlu0 %3982, %v3938
          %v3984 = vpop.permute.xlu0 %3983
          %3987 = vset.pattern.permute.xlu0 0
          %3988 = vperm.xlu0 %3987, %v3939
          %v3989 = vpop.permute.xlu0 %3988
          %v3991 = vlaneseq
          %v3992 = vshrl.u32 %v3991, 7
          %v3993 = vsub.s32 0, %v3992
          %v3994 = vrot.slane %v3940, %v3993
          %v3995 = vmul.f32 %v3944, %v3994
          %v3996 = vmul.f32 %v3949, %v3994
          %v3997 = vmul.f32 %v3954, %v3994
          %v3998 = vmul.f32 %v3959, %v3994
          %v3999 = vmul.f32 %v3964, %v3994
          %v4000 = vmul.f32 %v3969, %v3994
          %v4001 = vmul.f32 %v3974, %v3994
          %v4002 = vmul.f32 %v3979, %v3994
          %v4003 = vmul.f32 %v3984, %v3994
          %v4004 = vmul.f32 %v3989, %v3994
          %v4005 = vadd.f32 %v3905, %v3995
          %v4006 = vadd.f32 %v3906, %v3996
          %v4007 = vadd.f32 %v3907, %v3997
          %v4008 = vadd.f32 %v3908, %v3998
          %v4009 = vadd.f32 %v3909, %v3999
          %v4010 = vadd.f32 %v3910, %v4000
          %v4011 = vadd.f32 %v3911, %v4001
          %v4012 = vadd.f32 %v3912, %v4002
          %v4013 = vadd.f32 %v3913, %v4003
          %v4023 = vrot.slane %v3995, 1
          %v4024 = vrot.slane %v3996, 1
          %v4025 = vsel %vm433, %v4023, %v4024
          %v4026 = vrot.slane %v3997, 1
          %v4027 = vsel %vm433, %v4024, %v4026
          %v4028 = vrot.slane %v3998, 1
          %v4029 = vsel %vm433, %v4026, %v4028
          %v4030 = vrot.slane %v3999, 1
          %v4031 = vsel %vm433, %v4028, %v4030
          %v4032 = vrot.slane %v4000, 1
          %v4033 = vsel %vm433, %v4030, %v4032
          %v4034 = vrot.slane %v4001, 1
          %v4035 = vsel %vm433, %v4032, %v4034
          %v4036 = vrot.slane %v4002, 1
          %v4037 = vsel %vm433, %v4034, %v4036
          %v4038 = vrot.slane %v4003, 1
          %v4039 = vsel %vm433, %v4036, %v4038
          %4040 = vrot.lane.b32.xlu0 %v4025, 112
          %v4041 = vpop.permute.xlu0 %4040
          %4042 = vrot.lane.b32.xlu0 %v4027, 112
          %v4043 = vpop.permute.xlu0 %4042
          %4044 = vrot.lane.b32.xlu0 %v4029, 112
          %v4045 = vpop.permute.xlu0 %4044
          %4046 = vrot.lane.b32.xlu0 %v4031, 112
          %v4047 = vpop.permute.xlu0 %4046
          %4048 = vrot.lane.b32.xlu0 %v4033, 112
          %v4049 = vpop.permute.xlu0 %4048
          %4050 = vrot.lane.b32.xlu0 %v4035, 112
          %v4051 = vpop.permute.xlu0 %4050
          %4052 = vrot.lane.b32.xlu0 %v4037, 112
          %v4053 = vpop.permute.xlu0 %4052
          %4054 = vrot.lane.b32.xlu0 %v4039, 112
          %v4055 = vpop.permute.xlu0 %4054
          %4056 = vrot.lane.b32.xlu0 %v4038, 112
          %v4057 = vpop.permute.xlu0 %4056
          %v4067 = vadd.f32 %v4005, %v4041
          %v4068 = vadd.f32 %v4006, %v4043
          %v4069 = vadd.f32 %v4007, %v4045
          %v4070 = vadd.f32 %v4008, %v4047
          %v4071 = vadd.f32 %v4009, %v4049
          %v4072 = vadd.f32 %v4010, %v4051
          %v4073 = vadd.f32 %v4011, %v4053
          %v4074 = vadd.f32 %v4012, %v4055
          %v4075 = vadd.f32 %v4013, %v4057
          %v4076 = vrot.slane %v3995, 2
          %v4077 = vrot.slane %v3996, 2
          %v4078 = vsel %vm487, %v4076, %v4077
          %v4079 = vrot.slane %v3997, 2
          %v4080 = vsel %vm487, %v4077, %v4079
          %v4081 = vrot.slane %v3998, 2
          %v4082 = vsel %vm487, %v4079, %v4081
          %v4083 = vrot.slane %v3999, 2
          %v4084 = vsel %vm487, %v4081, %v4083
          %v4085 = vrot.slane %v4000, 2
          %v4086 = vsel %vm487, %v4083, %v4085
          %v4087 = vrot.slane %v4001, 2
          %v4088 = vsel %vm487, %v4085, %v4087
          %v4089 = vrot.slane %v4002, 2
          %v4090 = vsel %vm487, %v4087, %v4089
          %v4091 = vrot.slane %v4003, 2
          %v4092 = vsel %vm487, %v4089, %v4091
          %4093 = vrot.lane.b32.xlu0 %v4078, 96
          %v4094 = vpop.permute.xlu0 %4093
          %4095 = vrot.lane.b32.xlu0 %v4080, 96
          %v4096 = vpop.permute.xlu0 %4095
          %4097 = vrot.lane.b32.xlu0 %v4082, 96
          %v4098 = vpop.permute.xlu0 %4097
          %4099 = vrot.lane.b32.xlu0 %v4084, 96
          %v4100 = vpop.permute.xlu0 %4099
          %4101 = vrot.lane.b32.xlu0 %v4086, 96
          %v4102 = vpop.permute.xlu0 %4101
          %4103 = vrot.lane.b32.xlu0 %v4088, 96
          %v4104 = vpop.permute.xlu0 %4103
          %4105 = vrot.lane.b32.xlu0 %v4090, 96
          %v4106 = vpop.permute.xlu0 %4105
          %4107 = vrot.lane.b32.xlu0 %v4092, 96
          %v4108 = vpop.permute.xlu0 %4107
          %4109 = vrot.lane.b32.xlu0 %v4091, 96
          %v4110 = vpop.permute.xlu0 %4109
          %v4120 = vadd.f32 %v4067, %v4094
          %v4121 = vadd.f32 %v4068, %v4096
          %v4122 = vadd.f32 %v4069, %v4098
          %v4123 = vadd.f32 %v4070, %v4100
          %v4124 = vadd.f32 %v4071, %v4102
          %v4125 = vadd.f32 %v4072, %v4104
          %v4126 = vadd.f32 %v4073, %v4106
          %v4127 = vadd.f32 %v4074, %v4108
          %v4128 = vadd.f32 %v4075, %v4110
          %v4130 = vrot.slane %v3995, 3
          %v4131 = vrot.slane %v3996, 3
          %v4132 = vsel %vm542, %v4130, %v4131
          %v4133 = vrot.slane %v3997, 3
          %v4134 = vsel %vm542, %v4131, %v4133
          %v4135 = vrot.slane %v3998, 3
          %v4136 = vsel %vm542, %v4133, %v4135
          %v4137 = vrot.slane %v3999, 3
          %v4138 = vsel %vm542, %v4135, %v4137
          %v4139 = vrot.slane %v4000, 3
          %v4140 = vsel %vm542, %v4137, %v4139
          %v4141 = vrot.slane %v4001, 3
          %v4142 = vsel %vm542, %v4139, %v4141
          %v4143 = vrot.slane %v4002, 3
          %v4144 = vsel %vm542, %v4141, %v4143
          %v4145 = vrot.slane %v4003, 3
          %v4146 = vsel %vm542, %v4143, %v4145
          %v4147 = vrot.slane %v4004, 3
          %v4148 = vsel %vm542, %v4145, %v4147
          %4149 = vrot.lane.b32.xlu0 %v4132, 80
          %v4150 = vpop.permute.xlu0 %4149
          %4151 = vrot.lane.b32.xlu0 %v4134, 80
          %v4152 = vpop.permute.xlu0 %4151
          %4153 = vrot.lane.b32.xlu0 %v4136, 80
          %v4154 = vpop.permute.xlu0 %4153
          %4155 = vrot.lane.b32.xlu0 %v4138, 80
          %v4156 = vpop.permute.xlu0 %4155
          %4157 = vrot.lane.b32.xlu0 %v4140, 80
          %v4158 = vpop.permute.xlu0 %4157
          %4159 = vrot.lane.b32.xlu0 %v4142, 80
          %v4160 = vpop.permute.xlu0 %4159
          %4161 = vrot.lane.b32.xlu0 %v4144, 80
          %v4162 = vpop.permute.xlu0 %4161
          %4163 = vrot.lane.b32.xlu0 %v4146, 80
          %v4164 = vpop.permute.xlu0 %4163
          %4165 = vrot.lane.b32.xlu0 %v4148, 80
          %v4166 = vpop.permute.xlu0 %4165
          %v4176 = vadd.f32 %v4120, %v4150
          %v4177 = vadd.f32 %v4121, %v4152
          %v4178 = vadd.f32 %v4122, %v4154
          %v4179 = vadd.f32 %v4123, %v4156
          %v4180 = vadd.f32 %v4124, %v4158
          %v4181 = vadd.f32 %v4125, %v4160
          %v4182 = vadd.f32 %v4126, %v4162
          %v4183 = vadd.f32 %v4127, %v4164
          %v4184 = vadd.f32 %v4128, %v4166
          %v4185 = vrot.slane %v3995, 4
          %v4186 = vrot.slane %v3996, 4
          %v4187 = vsel %vm598, %v4185, %v4186
          %v4188 = vrot.slane %v3997, 4
          %v4189 = vsel %vm598, %v4186, %v4188
          %v4190 = vrot.slane %v3998, 4
          %v4191 = vsel %vm598, %v4188, %v4190
          %v4192 = vrot.slane %v3999, 4
          %v4193 = vsel %vm598, %v4190, %v4192
          %v4194 = vrot.slane %v4000, 4
          %v4195 = vsel %vm598, %v4192, %v4194
          %v4196 = vrot.slane %v4001, 4
          %v4197 = vsel %vm598, %v4194, %v4196
          %v4198 = vrot.slane %v4002, 4
          %v4199 = vsel %vm598, %v4196, %v4198
          %v4200 = vrot.slane %v4003, 4
          %v4201 = vsel %vm598, %v4198, %v4200
          %v4202 = vrot.slane %v4004, 4
          %v4203 = vsel %vm598, %v4200, %v4202
          %4204 = vrot.lane.b32.xlu0 %v4187, 64
          %v4205 = vpop.permute.xlu0 %4204
          %4206 = vrot.lane.b32.xlu0 %v4189, 64
          %v4207 = vpop.permute.xlu0 %4206
          %4208 = vrot.lane.b32.xlu0 %v4191, 64
          %v4209 = vpop.permute.xlu0 %4208
          %4210 = vrot.lane.b32.xlu0 %v4193, 64
          %v4211 = vpop.permute.xlu0 %4210
          %4212 = vrot.lane.b32.xlu0 %v4195, 64
          %v4213 = vpop.permute.xlu0 %4212
          %4214 = vrot.lane.b32.xlu0 %v4197, 64
          %v4215 = vpop.permute.xlu0 %4214
          %4216 = vrot.lane.b32.xlu0 %v4199, 64
          %v4217 = vpop.permute.xlu0 %4216
          %4218 = vrot.lane.b32.xlu0 %v4201, 64
          %v4219 = vpop.permute.xlu0 %4218
          %4220 = vrot.lane.b32.xlu0 %v4203, 64
          %v4221 = vpop.permute.xlu0 %4220
          %v4231 = vadd.f32 %v4176, %v4205
          %v4232 = vadd.f32 %v4177, %v4207
          %v4233 = vadd.f32 %v4178, %v4209
          %v4234 = vadd.f32 %v4179, %v4211
          %v4235 = vadd.f32 %v4180, %v4213
          %v4236 = vadd.f32 %v4181, %v4215
          %v4237 = vadd.f32 %v4182, %v4217
          %v4238 = vadd.f32 %v4183, %v4219
          %v4239 = vadd.f32 %v4184, %v4221
          %v4241 = vlaneseq
          %v4242 = vshrl.u32 %v4241, 7
          %v4243 = vsub.s32 0, %v4242
          %v4244 = vrot.slane %v316, %v4243
          %v4246 = vadd.f32 %v4231, %v4244
          %v4247 = vadd.f32 %v4232, %v4244
          %v4248 = vadd.f32 %v4233, %v4244
          %v4249 = vadd.f32 %v4234, %v4244
          %v4250 = vadd.f32 %v4235, %v4244
          %v4251 = vadd.f32 %v4236, %v4244
          %v4252 = vadd.f32 %v4237, %v4244
          %v4253 = vadd.f32 %v4238, %v4244
          %v4254 = vadd.f32 %v4239, %v4244
          %v4255 = vmax.f32 %v4246, 0.0
          %v4256 = vmax.f32 %v4247, 0.0
          %v4257 = vmax.f32 %v4248, 0.0
          %v4258 = vmax.f32 %v4249, 0.0
          %v4259 = vmax.f32 %v4250, 0.0
          %v4260 = vmax.f32 %v4251, 0.0
          %v4261 = vmax.f32 %v4252, 0.0
          %v4262 = vmax.f32 %v4253, 0.0
          %v4263 = vmax.f32 %v4254, 0.0
          %v4265 = vlaneseq
          %v4266 = vshrl.u32 %v4265, 7
          %v4267 = vsub.s32 0, %v4266
          %v4268 = vrot.slane %v317, %v4267
          %v4270 = vmul.f32 %v4255, %v4268
          %v4271 = vmul.f32 %v4256, %v4268
          %v4272 = vmul.f32 %v4257, %v4268
          %v4273 = vmul.f32 %v4258, %v4268
          %v4274 = vmul.f32 %v4259, %v4268
          %v4275 = vmul.f32 %v4260, %v4268
          %v4276 = vmul.f32 %v4261, %v4268
          %v4277 = vmul.f32 %v4262, %v4268
          %v4278 = vmul.f32 %v4263, %v4268
          %v4280 = vlaneseq
          %v4281 = vshrl.u32 %v4280, 7
          %v4282 = vsub.s32 0, %v4281
          %v4283 = vrot.slane %v318, %v4282
          %v4285 = vadd.f32 %v4270, %v4283
          %v4286 = vadd.f32 %v4271, %v4283
          %v4287 = vadd.f32 %v4272, %v4283
          %v4288 = vadd.f32 %v4273, %v4283
          %v4289 = vadd.f32 %v4274, %v4283
          %v4290 = vadd.f32 %v4275, %v4283
          %v4291 = vadd.f32 %v4276, %v4283
          %v4292 = vadd.f32 %v4277, %v4283
          %v4293 = vadd.f32 %v4278, %v4283
          %v4294 = vpack.c.bf16 %v4286, %v4285
          %v4295 = vpack.c.bf16 %v4288, %v4287
          %v4296 = vpack.c.bf16 %v4290, %v4289
          %v4297 = vpack.c.bf16 %v4292, %v4291
          %v4298 = vpack.c.bf16 %v4293, %v4293
          %v4304 = vunpack.c.l.b16 %v4294
          %v4305 = vunpack.c.h.b16 %v4294
          %v4306 = vunpack.c.l.b16 %v4295
          %v4307 = vunpack.c.h.b16 %v4295
          %v4308 = vunpack.c.l.b16 %v4296
          %v4309 = vunpack.c.h.b16 %v4296
          %v4310 = vunpack.c.l.b16 %v4297
          %v4311 = vunpack.c.h.b16 %v4297
          %v4312 = vunpack.c.l.b16 %v4298
          %v4313 = vpack.c.b16 %v4304, %v4304
          %v4314 = vpack.c.b16 %v4305, %v4305
          %v4315 = vpack.c.b16 %v4306, %v4306
          %v4316 = vpack.c.b16 %v4307, %v4307
          %v4317 = vpack.c.b16 %v4308, %v4308
          %v4318 = vpack.c.b16 %v4309, %v4309
          %v4319 = vpack.c.b16 %v4310, %v4310
          %v4320 = vpack.c.b16 %v4311, %v4311
          %v4321 = vpack.c.b16 %v4312, %v4312
          %s4331 = smul.u32 %s320, 9
          %s4332 = smul.addr %s4331, 4
          %s4333 = scalar_lea.vmem %s308, %s4332 [#allocation11]
          %vm4334 = vcmask 125952
          %4335 = vst.msk [vmem:[%s4333] sm:$0xf] %vm4334, %v4313
          %4336 = vst.msk [vmem:[%s4333 + $0x4] sm:$0xf] %vm4334, %v4314
          %4337 = vst.msk [vmem:[%s4333 + $0x8] sm:$0xf] %vm4334, %v4315
          %4338 = vst.msk [vmem:[%s4333 + $0xc] sm:$0xf] %vm4334, %v4316
          %4339 = vst.msk [vmem:[%s4333 + $0x10] sm:$0xf] %vm4334, %v4317
          %4340 = vst.msk [vmem:[%s4333 + $0x14] sm:$0xf] %vm4334, %v4318
          %4341 = vst.msk [vmem:[%s4333 + $0x18] sm:$0xf] %vm4334, %v4319
          %4342 = vst.msk [vmem:[%s4333 + $0x1c] sm:$0xf] %vm4334, %v4320
          %vm4343 = vcmask 124928
          %4344 = vst.msk [vmem:[%s4333 + $0x20] sm:$0x7] %vm4343, %v4321
        $region65: #{tpu_custom_call.1} parent=39 // loop_footer
          %s324 = sadd.s32 1, %s320
        $region66: #{tpu_custom_call.1} parent=39 // loop_footer_branch
          %319 = sbr.rel target = $region62
        $region67: #{tpu_custom_call.1} parent=39 // loop_exit
          _
        %s4345 = sand.u32 %s156, 1
        %s4346 = scalar_lea.sflag [#allocation4], %s4345
        %s4347 = sand.u32 %s156, 1
        %s4348 = smul.addr %s4347, 288
        %s4349 = scalar_lea.vmem [#allocation11], %s4348
        // Predicated region
        $region68: #{tpu_custom_call.1} parent=39 // pred_check
          %p4350 = pneg %p166
        $region69: #{tpu_custom_call.1} parent=39 // pred_check_branch
          %4352 = sbr.rel (%p4350) target = $region71
        $region70: #{tpu_custom_call.1} parent=39 // pred_region
          %s4353 = smul.u32 8, %s29
          %s4354 = ssub.s32 25, %s4353
          %p4355 = scmp.lt.s32.totalorder %s4354, 8
          %s4356 = scalar_select %p4355, %s4354, 8
          %s4357 = smul.u32 64, %s4356
          %s4358 = smul.u32 %s4357, 9
          %s4360 = ssub.s32 4608, %s4358
          %4361 = vsyncadd %s4346, %s4360
          %p4362 = scmp.ne.s32.totalorder 0, %s4358
          %s4363 = smul.addr %s4353, 9
          %s4364 = smul.addr %s28, 225
          %s4365 = sadd.s32 %s4363, %s4364
          %s4366 = smul.addr %s4365, 64
          %s4367 = scalar_lea.hbm %s5, %s4366
          %s4368 = smul.u32 %s4356, 9
          %s4369 = smul.u32 4, %s4368
          %s4370 = sshll.u32 %s4349, 4
          %s4371 = int_to_ptr.vmem [resolvable:$true] %s4370
          %s4372 = sshll.u32 %s4369, 4
          %4376 = dma.vmem_to_hbm [thread:$0]  (%p4362), %s4371, %s4372, %s4367, %s4346, 64, 64, 4
        $region71: #{tpu_custom_call.1} parent=39 // pred_fallthru
          _
      $region40: #{tpu_custom_call.1} parent=5 // pred_fallthru
        _
      %p4377 = scmp.le.s32.totalorder 2, %s19
      // Predicated region
      $region72: #{tpu_custom_call.1} parent=5 // pred_check
        %p4378 = pneg %p4377
      $region73: #{tpu_custom_call.1} parent=5 // pred_check_branch
        %4380 = sbr.rel (%p4378) target = $region75
      $region74: #{tpu_custom_call.1} parent=5 // pred_region
        %s4381 = ssub.s32 %s19, 2
        // Predicated region
        $region76: #{tpu_custom_call.1} parent=74 // pred_check
          %p4382 = pneg %p172
        $region77: #{tpu_custom_call.1} parent=74 // pred_check_branch
          %4384 = sbr.rel (%p4382) target = $region79
        $region78: #{tpu_custom_call.1} parent=74 // pred_region
          %s4385 = sand.u32 %s157, 1
          %s4386 = scalar_lea.sflag [#allocation4], %s4385
          %s4387 = sand.u32 %s157, 1
          %s4388 = smul.addr %s4387, 288
          %s4389 = scalar_lea.vmem [#allocation11], %s4388
          %4390 = dma.done %s4386, 4608
        $region79: #{tpu_custom_call.1} parent=74 // pred_fallthru
          _
      $region75: #{tpu_custom_call.1} parent=5 // pred_fallthru
        _
    $region6: #{tpu_custom_call.1} parent=1 // loop_footer
      %s23 = sadd.s32 1, %s19
    $region7: #{tpu_custom_call.1} parent=1 // loop_footer_branch
      %18 = sbr.rel target = $region3
    $region8: #{tpu_custom_call.1} parent=1 // loop_exit
      _
    %4391 = vsyncpa [#allocation3], 1
    %s4392 = scalar_lea.sflag [#allocation3], 1
    %4393 = vsyncpa %s4392, 1
    %4394 = vsyncpa [#allocation6], 1
    %4395 = vsyncpa [#allocation9], 1
    %4396 = vsyncpa [#allocation4], 1
    %s4397 = scalar_lea.sflag [#allocation4], 1
    %4398 = vsyncpa %s4397, 1

</llo_original>
